<compile_context>
chip_gen: v7x
topology: tpu7x:2x2x1
jax: 0.10.0
libtpu: 0.0.40
codegen_flags: <defaults>
</compile_context>

<pallas_src>
import functools

import numpy as np
import jax
import jax.numpy as jnp
from jax import lax
from jax.experimental import pallas as pl
from jax.experimental.pallas import tpu as pltpu

# ----------------------- small, module-consistent config -----------------------
RES_CHANNELS = 64      # params.residual_channels
N_MELS = 8             # params.n_mels (small for demo; real model uses 80)
N_LAYERS = 6           # params.residual_layers (real: 30)
DIL_CYCLE = 3          # params.dilation_cycle_length (real: 10)
MAX_STEPS = 50         # len(params.noise_schedule)
CROP_FRAMES = 2        # mel frames
HOP = 256              # total upsampling (16 * 16 from the two ConvTranspose2d)
AUDIO_LEN = CROP_FRAMES * HOP
BATCH = 2

MAX_DIL = 2 ** (DIL_CYCLE - 1)
PAD = ((MAX_DIL + 7) // 8) * 8            # sublane-aligned halo for the dilated conv
INV_SQRT2 = np.float32(1.0 / np.sqrt(2.0))


# ================================ fused Pallas kernel ================================
def _diffwave_stack_kernel(dil_ref,                       # SMEM (N_LAYERS,) int32
                           audio_ref, inw_ref, inb_ref,   # (1,L,1), (1,C), (1,C)
                           mel_ref, dstep_ref,            # (1,L,M) bf16, (1,1,1,C)
                           w_ref, b_ref,                  # (1,3C+M,2C) bf16, (1,1,2C)
                           wout_ref, bout_ref,            # (1,C,2C) bf16, (1,1,2C)
                           wskip_ref, bskip_ref,          # (C,C), (1,C)
                           wfin_ref, bfin_ref,            # (1,C), (1,1)
                           o_ref,                         # (1,L,1)
                           x_sc, skip_sc, ypad_sc):       # VMEM scratch
    l = pl.program_id(1)
    L, C = x_sc.shape

    # ---- layer 0: fused input_projection (Conv1d(1,C,1) + ReLU) + state init ----
    @pl.when(l == 0)
    def _():
        x_sc[...] = jnp.maximum(audio_ref[0] * inw_ref[...] + inb_ref[...], 0.0)
        skip_sc[...] = jnp.zeros_like(skip_sc)
        ypad_sc[...] = jnp.zeros_like(ypad_sc)          # halo rows stay 0 forever

    d = dil_ref[l]                                      # dilation for this layer
    x = x_sc[...]                                       # (L, C) resident in VMEM
    y = x + dstep_ref[0, 0]                             # + diffusion_projection(t)

    # dilated conv (k=3, padding=dilation): shifted views via padded f32 scratch
    ypad_sc[pl.ds(PAD, L), :] = y
    y_m = ypad_sc[pl.ds(PAD - d, L), :]                 # y[t - d] (zeros at t < d)
    y_p = ypad_sc[pl.ds(PAD + d, L), :]                 # y[t + d] (zeros at t >= L-d)

    # one MXU matmul: taps [-d, 0, +d] and the mel conditioner stacked on K.
    # Cast to bf16 before the concat: halves the staging copy + matches w dtype.
    stacked = jnp.concatenate(
        [y_m.astype(jnp.bfloat16), y.astype(jnp.bfloat16),
         y_p.astype(jnp.bfloat16), mel_ref[0]], axis=-1)                # (L, 3C+M) bf16
    acc = jnp.dot(stacked, w_ref[0],
                  preferred_element_type=jnp.float32) + b_ref[0]        # (L, 2C) f32

    g = jax.nn.sigmoid(acc[:, :C]) * jnp.tanh(acc[:, C:])               # gate * filter

    out = jnp.dot(g.astype(wout_ref.dtype), wout_ref[0],
                  preferred_element_type=jnp.float32) + bout_ref[0]     # (L, 2C) f32

    x_sc[...] = (x + out[:, :C]) * INV_SQRT2            # residual, stays in VMEM
    skip_sc[...] = skip_sc[...] + out[:, C:]            # running skip, stays in VMEM

    # ---- last layer: fused skip_projection + ReLU + output_projection ----
    @pl.when(l == pl.num_programs(1) - 1)
    def _():
        # 1/sqrt(N_LAYERS) is folded into wskip by the wrapper.
        v = jnp.dot(skip_sc[...], wskip_ref[...],
                    preferred_element_type=jnp.float32) + bskip_ref[...]
        v = jnp.maximum(v, 0.0)
        o = jnp.sum(v * wfin_ref[...], axis=-1, keepdims=True) + bfin_ref[...]
        o_ref[0] = o.astype(o_ref.dtype)


def diffwave_stack(audio3, mel, dstep_all, p):
    """Runs input proj + all residual layers + skip/output proj in one pallas_call."""
    B, L, _ = audio3.shape
    M = mel.shape[-1]
    C = RES_CHANNELS
    NL = p['w_stack'].shape[0]

    # bf16 streaming of the per-layer weight stream (storage/DMA + MXU inputs);
    # all accumulation and elementwise math stays f32 (safe on v5e/v6e/v7x).
    w_stack = p['w_stack'].astype(jnp.bfloat16)
    wout_stack = p['wout_stack'].astype(jnp.bfloat16)
    mel_bf16 = mel.astype(jnp.bfloat16)
    wskip = p['skip_w'] * np.float32(1.0 / np.sqrt(NL))   # fold skip/sqrt(N) scale

    grid_spec = pltpu.PrefetchScalarGridSpec(
        num_scalar_prefetch=1,                             # per-layer dilations -> SMEM
        grid=(B, NL),
        in_specs=[
            pl.BlockSpec((1, L, 1), lambda b, l, s: (b, 0, 0)),            # audio
            pl.BlockSpec((1, C), lambda b, l, s: (0, 0)),                  # in_w
            pl.BlockSpec((1, C), lambda b, l, s: (0, 0)),                  # in_b
            pl.BlockSpec((1, L, M), lambda b, l, s: (b, 0, 0)),            # mel (bf16)
            pl.BlockSpec((1, 1, 1, C), lambda b, l, s: (b, l, 0, 0)),      # dstep
            pl.BlockSpec((1, 3 * C + M, 2 * C), lambda b, l, s: (l, 0, 0)),  # w_stack
            pl.BlockSpec((1, 1, 2 * C), lambda b, l, s: (l, 0, 0)),          # b_stack
            pl.BlockSpec((1, C, 2 * C), lambda b, l, s: (l, 0, 0)),          # wout
            pl.BlockSpec((1, 1, 2 * C), lambda b, l, s: (l, 0, 0)),          # bout
            pl.BlockSpec((C, C), lambda b, l, s: (0, 0)),                  # wskip
            pl.BlockSpec((1, C), lambda b, l, s: (0, 0)),                  # bskip
            pl.BlockSpec((1, C), lambda b, l, s: (0, 0)),                  # wfin
            pl.BlockSpec((1, 1), lambda b, l, s: (0, 0)),                  # bfin
        ],
        out_specs=pl.BlockSpec((1, L, 1), lambda b, l, s: (b, 0, 0)),
        scratch_shapes=[
            pltpu.VMEM((L, C), jnp.float32),               # x
            pltpu.VMEM((L, C), jnp.float32),               # running skip
            pltpu.VMEM((L + 2 * PAD, C), jnp.float32),     # zero-padded y for dilation
        ],
    )
    # TODO(synk): at real sizes (L~16k, 30 layers) tile L on the grid with
    # dilation halos (max dilation 512), put batch innermost so the per-layer
    # weight stream is DMA'd once, and set vmem_limit_bytes for v7x's 64 MiB VMEM.
    return pl.pallas_call(
        _diffwave_stack_kernel,
        out_shape=jax.ShapeDtypeStruct((B, L, 1), jnp.float32),
        grid_spec=grid_spec,
        compiler_params=pltpu.CompilerParams(
            dimension_semantics=("parallel", "arbitrary")),
    )(p['dilations'], audio3, p['in_w'], p['in_b'], mel_bf16, dstep_all,
      w_stack, p['b_stack'], wout_stack, p['bout_stack'],
      wskip, p['skip_b'], p['out_w'], p['out_b'])


# ================================ plain-JAX glue ================================
def build_embedding(max_steps):
    steps = jnp.arange(max_steps, dtype=jnp.float32)[:, None]
    dims = jnp.arange(64, dtype=jnp.float32)[None, :]
    table = steps * 10.0 ** (dims * 4.0 / 63.0)
    return jnp.concatenate([jnp.sin(table), jnp.cos(table)], axis=1)  # (max_steps, 128)


def silu(x):
    return x * jax.nn.sigmoid(x)


def diffusion_embedding(p, t):
    # TODO(synk): float-step _lerp_embedding path not implemented; int32 lookup only.
    e = p['emb_table'][t]                      # (B, 128)
    e = silu(e @ p['p1_w'] + p['p1_b'])        # (B, 512)
    e = silu(e @ p['p2_w'] + p['p2_b'])        # (B, 512)
    return e


def _conv_transpose_2d_1ch(x, w, b):
    # PyTorch ConvTranspose2d(1, 1, (3, 32), stride=(1, 16), padding=(1, 8))
    # expressed as an lhs-dilated conv with spatially flipped kernel.
    w_flip = w[::-1, ::-1][None, None, :, :]
    y = lax.conv_general_dilated(
        x, w_flip,
        window_strides=(1, 1),
        padding=((1, 1), (23, 23)),            # (k - 1 - p) per spatial dim
        lhs_dilation=(1, 16),
        dimension_numbers=('NCHW', 'OIHW', 'NCHW'))
    return y + b


def spectrogram_upsample(spec, p):
    # TODO(synk): ConvTranspose2d upsampler kept in lax (strided-scatter access
    # pattern has no clean BlockSpec expression); tiny vs. the residual stack.
    x = spec[:, None, :, :]                    # (B, 1, n_mels, frames)
    x = _conv_transpose_2d_1ch(x, p['up1_w'], p['up1_b'])
    x = jnp.where(x >= 0, x, 0.4 * x)          # leaky_relu(0.4)
    x = _conv_transpose_2d_1ch(x, p['up2_w'], p['up2_b'])
    x = jnp.where(x >= 0, x, 0.4 * x)
    return x[:, 0, :, :]                       # (B, n_mels, L)


# ================================== parameters ==================================
def init_params(key):
    C, M = RES_CHANNELS, N_MELS
    keys = list(jax.random.split(key, 128))
    it = iter(keys)

    def nrm(shape, fan_in):                    # ~kaiming_normal_
        return jax.random.normal(next(it), shape, jnp.float32) * np.sqrt(2.0 / fan_in)

    def uni(shape, fan_in):                    # torch default bias init
        bound = 1.0 / np.sqrt(fan_in)
        return jax.random.uniform(next(it), shape, jnp.float32, -bound, bound)

    p = {}
    # input_projection: Conv1d(1, C, 1)
    p['in_w'] = nrm((1, C), 1)
    p['in_b'] = uni((1, C), 1)
    # diffusion embedding
    p['emb_table'] = build_embedding(MAX_STEPS)
    p['p1_w'] = nrm((128, 512), 128)
    p['p1_b'] = uni((512,), 128)
    p['p2_w'] = nrm((512, 512), 512)
    p['p2_b'] = uni((512,), 512)
    # spectrogram upsampler (two ConvTranspose2d(1,1,(3,32)))
    p['up1_w'] = nrm((3, 32), 3 * 32)
    p['up1_b'] = uni((), 3 * 32)
    p['up2_w'] = nrm((3, 32), 3 * 32)
    p['up2_b'] = uni((), 3 * 32)

    # residual layers -- stacked for the fused kernel
    w_stack, b_stack, wout_stack, bout_stack, dp_w, dp_b = [], [], [], [], [], []
    for _ in range(N_LAYERS):
        w_dil = nrm((3, C, 2 * C), 3 * C).reshape(3 * C, 2 * C)  # taps [-d, 0, +d]
        b_dil = uni((1, 2 * C), 3 * C)
        w_cond = nrm((M, 2 * C), M)                              # Conv1d(M, 2C, 1)
        b_cond = uni((1, 2 * C), M)
        w_stack.append(jnp.concatenate([w_dil, w_cond], axis=0))  # (3C+M, 2C)
        b_stack.append(b_dil + b_cond)                            # folded bias
        wout_stack.append(nrm((C, 2 * C), C))                     # Conv1d(C, 2C, 1)
        bout_stack.append(uni((1, 2 * C), C))
        dp_w.append(nrm((512, C), 512))                           # Linear(512, C)
        dp_b.append(uni((C,), 512))
    p['w_stack'] = jnp.stack(w_stack)         # (NL, 3C+M, 2C)
    p['b_stack'] = jnp.stack(b_stack)         # (NL, 1, 2C)
    p['wout_stack'] = jnp.stack(wout_stack)   # (NL, C, 2C)
    p['bout_stack'] = jnp.stack(bout_stack)   # (NL, 1, 2C)
    p['dp_w'] = jnp.stack(dp_w)               # (NL, 512, C)
    p['dp_b'] = jnp.stack(dp_b)               # (NL, C)
    p['dilations'] = jnp.array([2 ** (i % DIL_CYCLE) for i in range(N_LAYERS)],
                               dtype=jnp.int32)

    # skip / output projections
    p['skip_w'] = nrm((C, C), C)
    p['skip_b'] = uni((1, C), C)
    p['out_w'] = jnp.zeros((1, C), jnp.float32)      # nn.init.zeros_ on weight
    p['out_b'] = uni((1, 1), C)
    return p


# ================================== forward pass ==================================
def diffwave_forward(p, audio, diffusion_step, spectrogram):
    # audio: (B, L) f32 ; diffusion_step: (B,) int32 ; spectrogram: (B, n_mels, frames)
    t = diffusion_embedding(p, diffusion_step)                 # (B, 512)
    mel = spectrogram_upsample(spectrogram, p)                 # (B, n_mels, L)
    mel = jnp.transpose(mel, (0, 2, 1))                        # (B, L, n_mels)

    # all per-layer diffusion projections in one einsum: (B, N_LAYERS, 1, C)
    dstep_all = jnp.einsum('bf,lfc->blc', t, p['dp_w']) + p['dp_b'][None]
    dstep_all = dstep_all[:, :, None, :]

    out = diffwave_stack(audio[..., None], mel, dstep_all, p)  # (B, L, 1)
    return jnp.transpose(out, (0, 2, 1))                       # (B, 1, L) — torch layout


if __name__ == "__main__":
    key = jax.random.PRNGKey(0)
    pkey, akey, skey, tkey = jax.random.split(key, 4)

    params = init_params(pkey)
    audio = jax.random.normal(akey, (BATCH, AUDIO_LEN), jnp.float32)
    spectrogram = jax.random.normal(skey, (BATCH, N_MELS, CROP_FRAMES), jnp.float32)
    diffusion_step = jax.random.randint(tkey, (BATCH,), 0, MAX_STEPS, jnp.int32)

    fwd = jax.jit(diffwave_forward)
    out = fwd(params, audio, diffusion_step, spectrogram)
    out = jax.block_until_ready(out)

    assert out.shape == (BATCH, 1, AUDIO_LEN), out.shape
    assert bool(jnp.all(jnp.isfinite(out)))
    print("KERNEL_OK")
</pallas_src>

<mosaic_0001>
module attributes {stable_mosaic.version = 11 : i64} {
  func.func @_diffwave_stack_kernel(%arg0: i32, %arg1: i32, %arg2: memref<6xi32, #tpu.memory_space<smem>>, %arg3: memref<1x512x1xf32, #tpu.memory_space<vmem>>, %arg4: memref<1x64xf32, #tpu.memory_space<vmem>>, %arg5: memref<1x64xf32, #tpu.memory_space<vmem>>, %arg6: memref<1x512x8xbf16, #tpu.memory_space<vmem>>, %arg7: memref<1x1x1x64xf32, #tpu.memory_space<vmem>>, %arg8: memref<1x200x128xbf16, #tpu.memory_space<vmem>>, %arg9: memref<1x1x128xf32, #tpu.memory_space<vmem>>, %arg10: memref<1x64x128xbf16, #tpu.memory_space<vmem>>, %arg11: memref<1x1x128xf32, #tpu.memory_space<vmem>>, %arg12: memref<64x64xf32, #tpu.memory_space<vmem>>, %arg13: memref<1x64xf32, #tpu.memory_space<vmem>>, %arg14: memref<1x64xf32, #tpu.memory_space<vmem>>, %arg15: memref<1x1xf32, #tpu.memory_space<vmem>>, %arg16: memref<1x512x1xf32, #tpu.memory_space<vmem>>, %arg17: memref<512x64xf32, #tpu.memory_space<vmem>>, %arg18: memref<512x64xf32, #tpu.memory_space<vmem>>, %arg19: memref<528x64xf32, #tpu.memory_space<vmem>>) attributes {dimension_semantics = [#tpu.dimension_semantics<parallel>, #tpu.dimension_semantics<arbitrary>], iteration_bounds = array<i64: 2, 6>, scalar_prefetch = 1 : i64, scratch_operands = 3 : i64, tpu.core_type = #tpu.core_type<tc>, window_params = [{transform_indices = @transform_0, window_bounds = array<i64: 1, 512, 1>}, {pipeline_mode = #tpu.pipeline_mode<synchronous>, transform_indices = @transform_1, window_bounds = array<i64: 1, 64>}, {pipeline_mode = #tpu.pipeline_mode<synchronous>, transform_indices = @transform_2, window_bounds = array<i64: 1, 64>}, {transform_indices = @transform_3, window_bounds = array<i64: 1, 512, 8>}, {transform_indices = @transform_4, window_bounds = array<i64: 1, 1, 1, 64>}, {transform_indices = @transform_5, window_bounds = array<i64: 1, 200, 128>}, {transform_indices = @transform_6, window_bounds = array<i64: 1, 1, 128>}, {transform_indices = @transform_7, window_bounds = array<i64: 1, 64, 128>}, {transform_indices = @transform_8, window_bounds = array<i64: 1, 1, 128>}, {pipeline_mode = #tpu.pipeline_mode<synchronous>, transform_indices = @transform_9, window_bounds = array<i64: 64, 64>}, {pipeline_mode = #tpu.pipeline_mode<synchronous>, transform_indices = @transform_10, window_bounds = array<i64: 1, 64>}, {pipeline_mode = #tpu.pipeline_mode<synchronous>, transform_indices = @transform_11, window_bounds = array<i64: 1, 64>}, {pipeline_mode = #tpu.pipeline_mode<synchronous>, transform_indices = @transform_12, window_bounds = array<i64: 1, 1>}, {transform_indices = @transform_13, window_bounds = array<i64: 1, 512, 1>}]} {
    %c0_i32 = arith.constant 0 : i32
    %0 = arith.cmpi eq, %arg1, %c0_i32 : i32
    %1 = arith.extui %0 : i1 to i32
    %c0_i32_0 = arith.constant 0 : i32
    %2 = arith.cmpi ne, %1, %c0_i32_0 : i32
    scf.if %2 {
      %c0_35 = arith.constant 0 : index
      %c0_36 = arith.constant 0 : index
      %c0_37 = arith.constant 0 : index
      %59 = vector.load %arg3[%c0_35, %c0_36, %c0_37] : memref<1x512x1xf32, #tpu.memory_space<vmem>>, vector<1x512x1xf32>
      %60 = vector.shape_cast %59 : vector<1x512x1xf32> to vector<512x1xf32>
      %c0_38 = arith.constant 0 : index
      %c0_39 = arith.constant 0 : index
      %61 = vector.load %arg4[%c0_38, %c0_39] : memref<1x64xf32, #tpu.memory_space<vmem>>, vector<1x64xf32>
      %62 = vector.broadcast %60 : vector<512x1xf32> to vector<512x64xf32>
      %63 = vector.broadcast %61 : vector<1x64xf32> to vector<512x64xf32>
      %64 = arith.mulf %62, %63 : vector<512x64xf32>
      %c0_40 = arith.constant 0 : index
      %c0_41 = arith.constant 0 : index
      %65 = vector.load %arg5[%c0_40, %c0_41] : memref<1x64xf32, #tpu.memory_space<vmem>>, vector<1x64xf32>
      %66 = vector.broadcast %65 : vector<1x64xf32> to vector<512x64xf32>
      %67 = arith.addf %64, %66 : vector<512x64xf32>
      %cst_42 = arith.constant 0.000000e+00 : f32
      %68 = vector.broadcast %cst_42 : f32 to vector<512x64xf32>
      %69 = arith.maximumf %67, %68 : vector<512x64xf32>
      %c0_43 = arith.constant 0 : index
      %c0_44 = arith.constant 0 : index
      %70 = vector.load %arg17[%c0_43, %c0_44] : memref<512x64xf32, #tpu.memory_space<vmem>>, vector<512x64xf32>
      tpu.vector_store %arg17[%c0_43, %c0_44], %69 {strides = array<i32>} : memref<512x64xf32, #tpu.memory_space<vmem>>, vector<512x64xf32>,
      %cst_45 = arith.constant 0.000000e+00 : f32
      %71 = vector.broadcast %cst_45 : f32 to vector<512x64xf32>
      %c0_46 = arith.constant 0 : index
      %c0_47 = arith.constant 0 : index
      %72 = vector.load %arg18[%c0_46, %c0_47] : memref<512x64xf32, #tpu.memory_space<vmem>>, vector<512x64xf32>
      tpu.vector_store %arg18[%c0_46, %c0_47], %71 {strides = array<i32>} : memref<512x64xf32, #tpu.memory_space<vmem>>, vector<512x64xf32>,
      %cst_48 = arith.constant 0.000000e+00 : f32
      %73 = vector.broadcast %cst_48 : f32 to vector<528x64xf32>
      %c0_49 = arith.constant 0 : index
      %c0_50 = arith.constant 0 : index
      %74 = vector.load %arg19[%c0_49, %c0_50] : memref<528x64xf32, #tpu.memory_space<vmem>>, vector<528x64xf32>
      tpu.vector_store %arg19[%c0_49, %c0_50], %73 {strides = array<i32>} : memref<528x64xf32, #tpu.memory_space<vmem>>, vector<528x64xf32>,
    } else {
    }
    %3 = arith.index_cast %arg1 : i32 to index
    %4 = memref.load %arg2[%3] : memref<6xi32, #tpu.memory_space<smem>>
    %c0 = arith.constant 0 : index
    %c0_1 = arith.constant 0 : index
    %5 = vector.load %arg17[%c0, %c0_1] : memref<512x64xf32, #tpu.memory_space<vmem>>, vector<512x64xf32>
    %c0_2 = arith.constant 0 : index
    %c0_3 = arith.constant 0 : index
    %c0_4 = arith.constant 0 : index
    %c0_5 = arith.constant 0 : index
    %6 = vector.load %arg7[%c0_2, %c0_3, %c0_4, %c0_5] : memref<1x1x1x64xf32, #tpu.memory_space<vmem>>, vector<1x1x1x64xf32>
    %7 = vector.shape_cast %6 : vector<1x1x1x64xf32> to vector<1x64xf32>
    %8 = vector.broadcast %7 : vector<1x64xf32> to vector<512x64xf32>
    %9 = arith.addf %5, %8 : vector<512x64xf32>
    %c8 = arith.constant 8 : index
    %c0_6 = arith.constant 0 : index
    %10 = vector.load %arg19[%c8, %c0_6] : memref<528x64xf32, #tpu.memory_space<vmem>>, vector<512x64xf32>
    tpu.vector_store %arg19[%c8, %c0_6], %9 {strides = array<i32>} : memref<528x64xf32, #tpu.memory_space<vmem>>, vector<512x64xf32>,
    %c8_i32 = arith.constant 8 : i32
    %11 = arith.subi %c8_i32, %4 : i32
    %12 = arith.index_cast %11 : i32 to index
    %c0_7 = arith.constant 0 : index
    %13 = vector.load %arg19[%12, %c0_7] : memref<528x64xf32, #tpu.memory_space<vmem>>, vector<512x64xf32>
    %c8_i32_8 = arith.constant 8 : i32
    %14 = arith.addi %c8_i32_8, %4 : i32
    %15 = arith.index_cast %14 : i32 to index
    %c0_9 = arith.constant 0 : index
    %16 = vector.load %arg19[%15, %c0_9] : memref<528x64xf32, #tpu.memory_space<vmem>>, vector<512x64xf32>
    %17 = arith.truncf %13 : vector<512x64xf32> to vector<512x64xbf16>
    %18 = arith.truncf %9 : vector<512x64xf32> to vector<512x64xbf16>
    %19 = arith.truncf %16 : vector<512x64xf32> to vector<512x64xbf16>
    %c0_10 = arith.constant 0 : index
    %c0_11 = arith.constant 0 : index
    %c0_12 = arith.constant 0 : index
    %20 = vector.load %arg6[%c0_10, %c0_11, %c0_12] : memref<1x512x8xbf16, #tpu.memory_space<vmem>>, vector<1x512x8xbf16>
    %21 = vector.shape_cast %20 : vector<1x512x8xbf16> to vector<512x8xbf16>
    %22 = tpu.concatenate %17, %18, %19, %21 in 1 : vector<512x64xbf16>, vector<512x64xbf16>, vector<512x64xbf16>, vector<512x8xbf16> -> vector<512x200xbf16>
    %c0_13 = arith.constant 0 : index
    %c0_14 = arith.constant 0 : index
    %c0_15 = arith.constant 0 : index
    %23 = vector.load %arg8[%c0_13, %c0_14, %c0_15] : memref<1x200x128xbf16, #tpu.memory_space<vmem>>, vector<1x200x128xbf16>
    %24 = vector.shape_cast %23 : vector<1x200x128xbf16> to vector<200x128xbf16>
    %cst = arith.constant dense<0.000000e+00> : vector<512x128xf32>
    %25 = tpu.matmul %22, %24, %cst {dimension_numbers = #tpu.dot_dimension_numbers<[1], [0], [0], [1], [0, 0, 1, 1], [], []>} : vector<512x200xbf16>, vector<200x128xbf16>, vector<512x128xf32> -> vector<512x128xf32>
    %c0_16 = arith.constant 0 : index
    %c0_17 = arith.constant 0 : index
    %c0_18 = arith.constant 0 : index
    %26 = vector.load %arg9[%c0_16, %c0_17, %c0_18] : memref<1x1x128xf32, #tpu.memory_space<vmem>>, vector<1x1x128xf32>
    %27 = vector.shape_cast %26 : vector<1x1x128xf32> to vector<1x128xf32>
    %28 = vector.broadcast %27 : vector<1x128xf32> to vector<512x128xf32>
    %29 = arith.addf %25, %28 : vector<512x128xf32>
    %30 = vector.extract_strided_slice %29 {offsets = [0, 0], sizes = [512, 64], strides = [1, 1]} : vector<512x128xf32> to vector<512x64xf32>
    %31 = arith.negf %30 : vector<512x64xf32>
    %32 = math.exp %31 : vector<512x64xf32>
    %cst_19 = arith.constant 1.000000e+00 : f32
    %33 = vector.broadcast %cst_19 : f32 to vector<512x64xf32>
    %34 = arith.addf %33, %32 : vector<512x64xf32>
    %35 = arith.divf %33, %34 : vector<512x64xf32>
    %36 = vector.extract_strided_slice %29 {offsets = [0, 64], sizes = [512, 64], strides = [1, 1]} : vector<512x128xf32> to vector<512x64xf32>
    %37 = math.tanh %36 : vector<512x64xf32>
    %38 = arith.mulf %35, %37 : vector<512x64xf32>
    %39 = arith.truncf %38 : vector<512x64xf32> to vector<512x64xbf16>
    %c0_20 = arith.constant 0 : index
    %c0_21 = arith.constant 0 : index
    %c0_22 = arith.constant 0 : index
    %40 = vector.load %arg10[%c0_20, %c0_21, %c0_22] : memref<1x64x128xbf16, #tpu.memory_space<vmem>>, vector<1x64x128xbf16>
    %41 = vector.shape_cast %40 : vector<1x64x128xbf16> to vector<64x128xbf16>
    %cst_23 = arith.constant dense<0.000000e+00> : vector<512x128xf32>
    %42 = tpu.matmul %39, %41, %cst_23 {dimension_numbers = #tpu.dot_dimension_numbers<[1], [0], [0], [1], [0, 0, 1, 1], [], []>} : vector<512x64xbf16>, vector<64x128xbf16>, vector<512x128xf32> -> vector<512x128xf32>
    %c0_24 = arith.constant 0 : index
    %c0_25 = arith.constant 0 : index
    %c0_26 = arith.constant 0 : index
    %43 = vector.load %arg11[%c0_24, %c0_25, %c0_26] : memref<1x1x128xf32, #tpu.memory_space<vmem>>, vector<1x1x128xf32>
    %44 = vector.shape_cast %43 : vector<1x1x128xf32> to vector<1x128xf32>
    %45 = vector.broadcast %44 : vector<1x128xf32> to vector<512x128xf32>
    %46 = arith.addf %42, %45 : vector<512x128xf32>
    %47 = vector.extract_strided_slice %46 {offsets = [0, 0], sizes = [512, 64], strides = [1, 1]} : vector<512x128xf32> to vector<512x64xf32>
    %48 = arith.addf %5, %47 : vector<512x64xf32>
    %cst_27 = arith.constant 0.707106769 : f32
    %49 = vector.broadcast %cst_27 : f32 to vector<512x64xf32>
    %50 = arith.mulf %48, %49 : vector<512x64xf32>
    %c0_28 = arith.constant 0 : index
    %c0_29 = arith.constant 0 : index
    %51 = vector.load %arg17[%c0_28, %c0_29] : memref<512x64xf32, #tpu.memory_space<vmem>>, vector<512x64xf32>
    tpu.vector_store %arg17[%c0_28, %c0_29], %50 {strides = array<i32>} : memref<512x64xf32, #tpu.memory_space<vmem>>, vector<512x64xf32>,
    %c0_30 = arith.constant 0 : index
    %c0_31 = arith.constant 0 : index
    %52 = vector.load %arg18[%c0_30, %c0_31] : memref<512x64xf32, #tpu.memory_space<vmem>>, vector<512x64xf32>
    %53 = vector.extract_strided_slice %46 {offsets = [0, 64], sizes = [512, 64], strides = [1, 1]} : vector<512x128xf32> to vector<512x64xf32>
    %54 = arith.addf %52, %53 : vector<512x64xf32>
    %c0_32 = arith.constant 0 : index
    %c0_33 = arith.constant 0 : index
    %55 = vector.load %arg18[%c0_32, %c0_33] : memref<512x64xf32, #tpu.memory_space<vmem>>, vector<512x64xf32>
    tpu.vector_store %arg18[%c0_32, %c0_33], %54 {strides = array<i32>} : memref<512x64xf32, #tpu.memory_space<vmem>>, vector<512x64xf32>,
    %c5_i32 = arith.constant 5 : i32
    %56 = arith.cmpi eq, %arg1, %c5_i32 : i32
    %57 = arith.extui %56 : i1 to i32
    %c0_i32_34 = arith.constant 0 : i32
    %58 = arith.cmpi ne, %57, %c0_i32_34 : i32
    scf.if %58 {
      %c0_35 = arith.constant 0 : index
      %c0_36 = arith.constant 0 : index
      %59 = vector.load %arg18[%c0_35, %c0_36] : memref<512x64xf32, #tpu.memory_space<vmem>>, vector<512x64xf32>
      %c0_37 = arith.constant 0 : index
      %c0_38 = arith.constant 0 : index
      %60 = vector.load %arg12[%c0_37, %c0_38] : memref<64x64xf32, #tpu.memory_space<vmem>>, vector<64x64xf32>
      %cst_39 = arith.constant dense<0.000000e+00> : vector<512x64xf32>
      %61 = tpu.matmul %59, %60, %cst_39 {dimension_numbers = #tpu.dot_dimension_numbers<[1], [0], [0], [1], [0, 0, 1, 1], [], []>} : vector<512x64xf32>, vector<64x64xf32>, vector<512x64xf32> -> vector<512x64xf32>
      %c0_40 = arith.constant 0 : index
      %c0_41 = arith.constant 0 : index
      %62 = vector.load %arg13[%c0_40, %c0_41] : memref<1x64xf32, #tpu.memory_space<vmem>>, vector<1x64xf32>
      %63 = vector.broadcast %62 : vector<1x64xf32> to vector<512x64xf32>
      %64 = arith.addf %61, %63 : vector<512x64xf32>
      %cst_42 = arith.constant 0.000000e+00 : f32
      %65 = vector.broadcast %cst_42 : f32 to vector<512x64xf32>
      %66 = arith.maximumf %64, %65 : vector<512x64xf32>
      %c0_43 = arith.constant 0 : index
      %c0_44 = arith.constant 0 : index
      %67 = vector.load %arg14[%c0_43, %c0_44] : memref<1x64xf32, #tpu.memory_space<vmem>>, vector<1x64xf32>
      %68 = vector.broadcast %67 : vector<1x64xf32> to vector<512x64xf32>
      %69 = arith.mulf %66, %68 : vector<512x64xf32>
      %cst_45 = arith.constant dense<0.000000e+00> : vector<512xf32>
      %70 = vector.multi_reduction <add>, %69, %cst_45 [1] : vector<512x64xf32> to vector<512xf32>
      %71 = vector.shape_cast %70 : vector<512xf32> to vector<512x1xf32>
      %c0_46 = arith.constant 0 : index
      %c0_47 = arith.constant 0 : index
      %72 = vector.load %arg15[%c0_46, %c0_47] : memref<1x1xf32, #tpu.memory_space<vmem>>, vector<1x1xf32>
      %73 = vector.broadcast %72 : vector<1x1xf32> to vector<512x1xf32>
      %74 = arith.addf %71, %73 : vector<512x1xf32>
      %c0_48 = arith.constant 0 : index
      %c0_49 = arith.constant 0 : index
      %c0_50 = arith.constant 0 : index
      %75 = vector.load %arg16[%c0_48, %c0_49, %c0_50] : memref<1x512x1xf32, #tpu.memory_space<vmem>>, vector<1x512x1xf32>
      %76 = vector.shape_cast %75 : vector<1x512x1xf32> to vector<512x1xf32>
      %77 = vector.shape_cast %74 : vector<512x1xf32> to vector<1x512x1xf32>
      tpu.vector_store %arg16[%c0_48, %c0_49, %c0_50], %77 {strides = array<i32>} : memref<1x512x1xf32, #tpu.memory_space<vmem>>, vector<1x512x1xf32>,
    } else {
    }
    return
  }
  func.func @transform_0(%arg0: i32, %arg1: i32, %arg2: memref<6xi32, #tpu.memory_space<smem>>) -> (i32, i32, i32) {
    %c0_i32 = arith.constant 0 : i32
    %c0_i32_0 = arith.constant 0 : i32
    %c0_i32_1 = arith.constant 0 : i32
    return %arg0, %c0_i32, %c0_i32_0 : i32, i32, i32
  }
  func.func @transform_1(%arg0: i32, %arg1: i32, %arg2: memref<6xi32, #tpu.memory_space<smem>>) -> (i32, i32) {
    %c0_i32 = arith.constant 0 : i32
    %c0_i32_0 = arith.constant 0 : i32
    %c0_i32_1 = arith.constant 0 : i32
    return %c0_i32, %c0_i32_0 : i32, i32
  }
  func.func @transform_2(%arg0: i32, %arg1: i32, %arg2: memref<6xi32, #tpu.memory_space<smem>>) -> (i32, i32) {
    %c0_i32 = arith.constant 0 : i32
    %c0_i32_0 = arith.constant 0 : i32
    %c0_i32_1 = arith.constant 0 : i32
    return %c0_i32, %c0_i32_0 : i32, i32
  }
  func.func @transform_3(%arg0: i32, %arg1: i32, %arg2: memref<6xi32, #tpu.memory_space<smem>>) -> (i32, i32, i32) {
    %c0_i32 = arith.constant 0 : i32
    %c0_i32_0 = arith.constant 0 : i32
    %c0_i32_1 = arith.constant 0 : i32
    return %arg0, %c0_i32, %c0_i32_0 : i32, i32, i32
  }
  func.func @transform_4(%arg0: i32, %arg1: i32, %arg2: memref<6xi32, #tpu.memory_space<smem>>) -> (i32, i32, i32, i32) {
    %c0_i32 = arith.constant 0 : i32
    %c0_i32_0 = arith.constant 0 : i32
    %c0_i32_1 = arith.constant 0 : i32
    return %arg0, %arg1, %c0_i32, %c0_i32_0 : i32, i32, i32, i32
  }
  func.func @transform_5(%arg0: i32, %arg1: i32, %arg2: memref<6xi32, #tpu.memory_space<smem>>) -> (i32, i32, i32) {
    %c0_i32 = arith.constant 0 : i32
    %c0_i32_0 = arith.constant 0 : i32
    %c0_i32_1 = arith.constant 0 : i32
    return %arg1, %c0_i32, %c0_i32_0 : i32, i32, i32
  }
  func.func @transform_6(%arg0: i32, %arg1: i32, %arg2: memref<6xi32, #tpu.memory_space<smem>>) -> (i32, i32, i32) {
    %c0_i32 = arith.constant 0 : i32
    %c0_i32_0 = arith.constant 0 : i32
    %c0_i32_1 = arith.constant 0 : i32
    return %arg1, %c0_i32, %c0_i32_0 : i32, i32, i32
  }
  func.func @transform_7(%arg0: i32, %arg1: i32, %arg2: memref<6xi32, #tpu.memory_space<smem>>) -> (i32, i32, i32) {
    %c0_i32 = arith.constant 0 : i32
    %c0_i32_0 = arith.constant 0 : i32
    %c0_i32_1 = arith.constant 0 : i32
    return %arg1, %c0_i32, %c0_i32_0 : i32, i32, i32
  }
  func.func @transform_8(%arg0: i32, %arg1: i32, %arg2: memref<6xi32, #tpu.memory_space<smem>>) -> (i32, i32, i32) {
    %c0_i32 = arith.constant 0 : i32
    %c0_i32_0 = arith.constant 0 : i32
    %c0_i32_1 = arith.constant 0 : i32
    return %arg1, %c0_i32, %c0_i32_0 : i32, i32, i32
  }
  func.func @transform_9(%arg0: i32, %arg1: i32, %arg2: memref<6xi32, #tpu.memory_space<smem>>) -> (i32, i32) {
    %c0_i32 = arith.constant 0 : i32
    %c0_i32_0 = arith.constant 0 : i32
    %c0_i32_1 = arith.constant 0 : i32
    return %c0_i32, %c0_i32_0 : i32, i32
  }
  func.func @transform_10(%arg0: i32, %arg1: i32, %arg2: memref<6xi32, #tpu.memory_space<smem>>) -> (i32, i32) {
    %c0_i32 = arith.constant 0 : i32
    %c0_i32_0 = arith.constant 0 : i32
    %c0_i32_1 = arith.constant 0 : i32
    return %c0_i32, %c0_i32_0 : i32, i32
  }
  func.func @transform_11(%arg0: i32, %arg1: i32, %arg2: memref<6xi32, #tpu.memory_space<smem>>) -> (i32, i32) {
    %c0_i32 = arith.constant 0 : i32
    %c0_i32_0 = arith.constant 0 : i32
    %c0_i32_1 = arith.constant 0 : i32
    return %c0_i32, %c0_i32_0 : i32, i32
  }
  func.func @transform_12(%arg0: i32, %arg1: i32, %arg2: memref<6xi32, #tpu.memory_space<smem>>) -> (i32, i32) {
    %c0_i32 = arith.constant 0 : i32
    %c0_i32_0 = arith.constant 0 : i32
    %c0_i32_1 = arith.constant 0 : i32
    return %c0_i32, %c0_i32_0 : i32, i32
  }
  func.func @transform_13(%arg0: i32, %arg1: i32, %arg2: memref<6xi32, #tpu.memory_space<smem>>) -> (i32, i32, i32) {
    %c0_i32 = arith.constant 0 : i32
    %c0_i32_0 = arith.constant 0 : i32
    %c0_i32_1 = arith.constant 0 : i32
    return %arg0, %c0_i32, %c0_i32_0 : i32, i32, i32
  }
}

</mosaic_0001>

<llo_original>
// kernel: diffwave_forward.1
$region0: #{diffwave_forward.1}
  #allocation0 [shape = 'u32[]', space=smem, size = 0x4, offset = 0x4, fixed_abs, tag = 'smem constant byte address 0x4 - core index']
  #allocation1 [shape = 'u32[144,128]{1,0:T(1,128)}', space=vmem, size = 0x12000, scoped, tag = 'internal scratch']
  #allocation2 [shape = 'f32[512,64]{1,0:T(8,128)}', space=vmem, size = 0x40000, scoped, tag = 'scratch operand']
  #allocation3 [shape = 'f32[512,64]{1,0:T(8,128)}', space=vmem, size = 0x40000, scoped, tag = 'scratch operand']
  #allocation4 [shape = 'f32[528,64]{1,0:T(8,128)}', space=vmem, size = 0x42000, scoped, tag = 'scratch operand']
  #allocation5 [shape = 's32[1]{0}', space=sflag, size = 0x4, scoped, tag = 'scoped memory for diffwave_forward.1']
  #allocation6 [shape = 'u8[512]{0}', space=smem, size = 0x200, scoped, tag = 'prefetched SMEM operand 0']
  #allocation7 [shape = 'f32[1,1]{1,0:T(1,128)S(1)}', space=vmem, size = 0x200, scoped, tag = 'scoped memory for diffwave_forward.1']
  %s0 = inlined_call_operand.vmem [shape: s32[6], index: 0, kind: input, shape index: {}]
  %s1 = inlined_call_operand.vmem [shape: f32[2,512,1], index: 1, kind: input, shape index: {}]
  %s2 = inlined_call_operand.vmem [shape: f32[1,64], index: 2, kind: input, shape index: {}]
  %s3 = inlined_call_operand.vmem [shape: f32[1,64], index: 3, kind: input, shape index: {}]
  %s4 = inlined_call_operand.vmem [shape: bf16[2,512,8], index: 4, kind: input, shape index: {}]
  %s5 = inlined_call_operand.vmem [shape: f32[2,6,1,64], index: 5, kind: input, shape index: {}]
  %s6 = inlined_call_operand.vmem [shape: bf16[6,200,128], index: 6, kind: input, shape index: {}]
  %s7 = inlined_call_operand.vmem [shape: f32[6,1,128], index: 7, kind: input, shape index: {}]
  %s8 = inlined_call_operand.vmem [shape: bf16[6,64,128], index: 8, kind: input, shape index: {}]
  %s9 = inlined_call_operand.vmem [shape: f32[6,1,128], index: 9, kind: input, shape index: {}]
  %s10 = inlined_call_operand.vmem [shape: f32[64,64], index: 10, kind: input, shape index: {}]
  %s11 = inlined_call_operand.vmem [shape: f32[1,64], index: 11, kind: input, shape index: {}]
  %s12 = inlined_call_operand.vmem [shape: f32[1,64], index: 12, kind: input, shape index: {}]
  %s13 = inlined_call_operand.<no memory space> [shape: f32[1,1], index: 13, kind: input, shape index: {}]
  %s14 = inlined_call_operand.vmem [shape: f32[2,512,1], index: 14, kind: output, shape index: {}]
  %s15 = sld [smem:[#allocation0]]
  $region93: #{diffwave_forward.1} parent=0
    _
  %s17 = ssub.s32 1, %s15
  %s18 = scalar_select 0, %s17, %s15
  %s19 = sshll.u32 %s0, 4
  %s20 = int_to_ptr.vmem [resolvable:$true] %s19
  %22 = dma.vmem_to_smem %s20, 16, [#allocation6], [#allocation5]
  %v23 = vstv %s13
  %24 = vst [vmem:[#allocation7] sm:$0x1] %v23
  %25 = dma.done [#allocation5], 16
  %26 = sfence
  loop: start=0, step=1, limit=14
  $region2: #{diffwave_forward.1} parent=0 // loop_pre_header
    _
  $region3: #{diffwave_forward.1} parent=0 // loop_header
    %s28 = sphi 0, %s32
    %p29 = scmp.ge.s32.totalorder %s28, 14
    %s35 = sphi 0, %s47
    %s36 = sphi 0, %s43
    %s37 = sphi 0, %s35
    %s38 = sphi 0, %s36
    %s39 = sphi 0, %s37
    %s40 = sphi 0, %s38
    %s50 = sphi 0, %s52
    %s53 = sphi 0, %s50
    %s54 = sphi 0, %s53
    %s70 = sphi 0, %s54
    %s74 = sphi 0, %s74
    %s76 = sphi 0, %s74
    %s77 = sphi 0, %s76
    %s91 = sphi 0, %s77
    %s95 = sphi 0, %s95
    %s97 = sphi 0, %s95
    %s98 = sphi 0, %s97
    %s112 = sphi 0, %s98
    %s118 = sphi 0, %s120
    %s121 = sphi 0, %s118
    %s122 = sphi 0, %s121
    %s138 = sphi 0, %s122
    %s146 = sphi 0, %s148
    %s149 = sphi 0, %s146
    %s150 = sphi 0, %s149
    %s166 = sphi 0, %s150
    %s172 = sphi 0, %s174
    %s175 = sphi 0, %s172
    %s176 = sphi 0, %s175
    %s192 = sphi 0, %s176
    %s198 = sphi 0, %s200
    %s201 = sphi 0, %s198
    %s202 = sphi 0, %s201
    %s218 = sphi 0, %s202
    %s224 = sphi 0, %s226
    %s227 = sphi 0, %s224
    %s228 = sphi 0, %s227
    %s244 = sphi 0, %s228
    %s250 = sphi 0, %s252
    %s253 = sphi 0, %s250
    %s254 = sphi 0, %s253
    %s270 = sphi 0, %s254
    %s274 = sphi 0, %s274
    %s276 = sphi 0, %s274
    %s277 = sphi 0, %s276
    %s291 = sphi 0, %s277
    %s295 = sphi 0, %s295
    %s297 = sphi 0, %s295
    %s298 = sphi 0, %s297
    %s312 = sphi 0, %s298
    %s316 = sphi 0, %s316
    %s318 = sphi 0, %s316
    %s319 = sphi 0, %s318
    %s333 = sphi 0, %s319
    %s337 = sphi 0, %s337
    %s339 = sphi 0, %s337
    %s340 = sphi 0, %s339
    %s354 = sphi 0, %s340
    %s360 = sphi 0, %s362
    %s363 = sphi 0, %s360
    %s364 = sphi 0, %s363
    %s380 = sphi 0, %s364
  $region4: #{diffwave_forward.1} parent=0 // loop_header_branch
    %31 = sbr.rel (%p29) target = $region8
  $region5: #{diffwave_forward.1} parent=0 // loop_body
    %s33 = ssub.s32 %s28, 1
    %s34 = ssub.s32 %s28, 2
    %s41 = sadd.s32 1, %s36
    %p42 = scmp.ge.s32.totalorder %s41, 6
    %s43 = scalar_select %p42, 0, %s41
    %s44 = sadd.s32 1, %s35
    %s45 = scalar_select %p42, %s44, %s35
    %p46 = scmp.ge.s32.totalorder %s45, 2
    %s47 = scalar_select %p46, 0, %s45
    %s48 = ssub.s32 %s35, %s47
    %p49 = scmp.eq.s32.totalorder %s48, 0
    %s51 = sadd.s32 %s50, 1
    %s52 = scalar_select %p49, %s50, %s51
    %p55 = pneg %p49
    %p56 = scmp.eq.s32.totalorder %s28, 11
    %p57 = por %p55, %p56
    %p58 = scmp.ne.s32.totalorder %s50, %s53
    %p59 = scmp.eq.s32.totalorder %s28, 0
    %p60 = por %p58, %p59
    %p61 = scmp.ne.s32.totalorder %s50, %s53
    %p62 = scmp.eq.s32.totalorder %s33, 11
    %p63 = por %p61, %p62
    %p64 = scmp.ne.s32.totalorder %s53, %s54
    %p65 = scmp.eq.s32.totalorder %s33, 0
    %p66 = por %p64, %p65
    %p67 = scmp.ne.s32.totalorder %s53, %s54
    %p68 = scmp.eq.s32.totalorder %s34, 11
    %p69 = por %p67, %p68
    %p71 = scmp.ne.s32.totalorder %s54, %s70
    %p72 = scmp.eq.s32.totalorder %s34, 0
    %p73 = por %p71, %p72
    %s75 = sadd.s32 %s74, 1
    %p78 = scmp.eq.s32.totalorder %s28, 11
    %p79 = scmp.ne.s32.totalorder %s74, %s76
    %p80 = scmp.eq.s32.totalorder %s28, 0
    %p81 = por %p79, %p80
    %p82 = scmp.ne.s32.totalorder %s74, %s76
    %p83 = scmp.eq.s32.totalorder %s33, 11
    %p84 = por %p82, %p83
    %p85 = scmp.ne.s32.totalorder %s76, %s77
    %p86 = scmp.eq.s32.totalorder %s33, 0
    %p87 = por %p85, %p86
    %p88 = scmp.ne.s32.totalorder %s76, %s77
    %p89 = scmp.eq.s32.totalorder %s34, 11
    %p90 = por %p88, %p89
    %p92 = scmp.ne.s32.totalorder %s77, %s91
    %p93 = scmp.eq.s32.totalorder %s34, 0
    %p94 = por %p92, %p93
    %s96 = sadd.s32 %s95, 1
    %p99 = scmp.eq.s32.totalorder %s28, 11
    %p100 = scmp.ne.s32.totalorder %s95, %s97
    %p101 = scmp.eq.s32.totalorder %s28, 0
    %p102 = por %p100, %p101
    %p103 = scmp.ne.s32.totalorder %s95, %s97
    %p104 = scmp.eq.s32.totalorder %s33, 11
    %p105 = por %p103, %p104
    %p106 = scmp.ne.s32.totalorder %s97, %s98
    %p107 = scmp.eq.s32.totalorder %s33, 0
    %p108 = por %p106, %p107
    %p109 = scmp.ne.s32.totalorder %s97, %s98
    %p110 = scmp.eq.s32.totalorder %s34, 11
    %p111 = por %p109, %p110
    %p113 = scmp.ne.s32.totalorder %s98, %s112
    %p114 = scmp.eq.s32.totalorder %s34, 0
    %p115 = por %p113, %p114
    %s116 = ssub.s32 %s35, %s47
    %p117 = scmp.eq.s32.totalorder %s116, 0
    %s119 = sadd.s32 %s118, 1
    %s120 = scalar_select %p117, %s118, %s119
    %p123 = pneg %p117
    %p124 = scmp.eq.s32.totalorder %s28, 11
    %p125 = por %p123, %p124
    %p126 = scmp.ne.s32.totalorder %s118, %s121
    %p127 = scmp.eq.s32.totalorder %s28, 0
    %p128 = por %p126, %p127
    %p129 = scmp.ne.s32.totalorder %s118, %s121
    %p130 = scmp.eq.s32.totalorder %s33, 11
    %p131 = por %p129, %p130
    %p132 = scmp.ne.s32.totalorder %s121, %s122
    %p133 = scmp.eq.s32.totalorder %s33, 0
    %p134 = por %p132, %p133
    %p135 = scmp.ne.s32.totalorder %s121, %s122
    %p136 = scmp.eq.s32.totalorder %s34, 11
    %p137 = por %p135, %p136
    %p139 = scmp.ne.s32.totalorder %s122, %s138
    %p140 = scmp.eq.s32.totalorder %s34, 0
    %p141 = por %p139, %p140
    %s142 = ssub.s32 %s35, %s47
    %s143 = ssub.s32 %s36, %s43
    %s144 = sor.u32 %s142, %s143
    %p145 = scmp.eq.s32.totalorder %s144, 0
    %s147 = sadd.s32 %s146, 1
    %s148 = scalar_select %p145, %s146, %s147
    %p151 = pneg %p145
    %p152 = scmp.eq.s32.totalorder %s28, 11
    %p153 = por %p151, %p152
    %p154 = scmp.ne.s32.totalorder %s146, %s149
    %p155 = scmp.eq.s32.totalorder %s28, 0
    %p156 = por %p154, %p155
    %p157 = scmp.ne.s32.totalorder %s146, %s149
    %p158 = scmp.eq.s32.totalorder %s33, 11
    %p159 = por %p157, %p158
    %p160 = scmp.ne.s32.totalorder %s149, %s150
    %p161 = scmp.eq.s32.totalorder %s33, 0
    %p162 = por %p160, %p161
    %p163 = scmp.ne.s32.totalorder %s149, %s150
    %p164 = scmp.eq.s32.totalorder %s34, 11
    %p165 = por %p163, %p164
    %p167 = scmp.ne.s32.totalorder %s150, %s166
    %p168 = scmp.eq.s32.totalorder %s34, 0
    %p169 = por %p167, %p168
    %s170 = ssub.s32 %s36, %s43
    %p171 = scmp.eq.s32.totalorder %s170, 0
    %s173 = sadd.s32 %s172, 1
    %s174 = scalar_select %p171, %s172, %s173
    %p177 = pneg %p171
    %p178 = scmp.eq.s32.totalorder %s28, 11
    %p179 = por %p177, %p178
    %p180 = scmp.ne.s32.totalorder %s172, %s175
    %p181 = scmp.eq.s32.totalorder %s28, 0
    %p182 = por %p180, %p181
    %p183 = scmp.ne.s32.totalorder %s172, %s175
    %p184 = scmp.eq.s32.totalorder %s33, 11
    %p185 = por %p183, %p184
    %p186 = scmp.ne.s32.totalorder %s175, %s176
    %p187 = scmp.eq.s32.totalorder %s33, 0
    %p188 = por %p186, %p187
    %p189 = scmp.ne.s32.totalorder %s175, %s176
    %p190 = scmp.eq.s32.totalorder %s34, 11
    %p191 = por %p189, %p190
    %p193 = scmp.ne.s32.totalorder %s176, %s192
    %p194 = scmp.eq.s32.totalorder %s34, 0
    %p195 = por %p193, %p194
    %s196 = ssub.s32 %s36, %s43
    %p197 = scmp.eq.s32.totalorder %s196, 0
    %s199 = sadd.s32 %s198, 1
    %s200 = scalar_select %p197, %s198, %s199
    %p203 = pneg %p197
    %p204 = scmp.eq.s32.totalorder %s28, 11
    %p205 = por %p203, %p204
    %p206 = scmp.ne.s32.totalorder %s198, %s201
    %p207 = scmp.eq.s32.totalorder %s28, 0
    %p208 = por %p206, %p207
    %p209 = scmp.ne.s32.totalorder %s198, %s201
    %p210 = scmp.eq.s32.totalorder %s33, 11
    %p211 = por %p209, %p210
    %p212 = scmp.ne.s32.totalorder %s201, %s202
    %p213 = scmp.eq.s32.totalorder %s33, 0
    %p214 = por %p212, %p213
    %p215 = scmp.ne.s32.totalorder %s201, %s202
    %p216 = scmp.eq.s32.totalorder %s34, 11
    %p217 = por %p215, %p216
    %p219 = scmp.ne.s32.totalorder %s202, %s218
    %p220 = scmp.eq.s32.totalorder %s34, 0
    %p221 = por %p219, %p220
    %s222 = ssub.s32 %s36, %s43
    %p223 = scmp.eq.s32.totalorder %s222, 0
    %s225 = sadd.s32 %s224, 1
    %s226 = scalar_select %p223, %s224, %s225
    %p229 = pneg %p223
    %p230 = scmp.eq.s32.totalorder %s28, 11
    %p231 = por %p229, %p230
    %p232 = scmp.ne.s32.totalorder %s224, %s227
    %p233 = scmp.eq.s32.totalorder %s28, 0
    %p234 = por %p232, %p233
    %p235 = scmp.ne.s32.totalorder %s224, %s227
    %p236 = scmp.eq.s32.totalorder %s33, 11
    %p237 = por %p235, %p236
    %p238 = scmp.ne.s32.totalorder %s227, %s228
    %p239 = scmp.eq.s32.totalorder %s33, 0
    %p240 = por %p238, %p239
    %p241 = scmp.ne.s32.totalorder %s227, %s228
    %p242 = scmp.eq.s32.totalorder %s34, 11
    %p243 = por %p241, %p242
    %p245 = scmp.ne.s32.totalorder %s228, %s244
    %p246 = scmp.eq.s32.totalorder %s34, 0
    %p247 = por %p245, %p246
    %s248 = ssub.s32 %s36, %s43
    %p249 = scmp.eq.s32.totalorder %s248, 0
    %s251 = sadd.s32 %s250, 1
    %s252 = scalar_select %p249, %s250, %s251
    %p255 = pneg %p249
    %p256 = scmp.eq.s32.totalorder %s28, 11
    %p257 = por %p255, %p256
    %p258 = scmp.ne.s32.totalorder %s250, %s253
    %p259 = scmp.eq.s32.totalorder %s28, 0
    %p260 = por %p258, %p259
    %p261 = scmp.ne.s32.totalorder %s250, %s253
    %p262 = scmp.eq.s32.totalorder %s33, 11
    %p263 = por %p261, %p262
    %p264 = scmp.ne.s32.totalorder %s253, %s254
    %p265 = scmp.eq.s32.totalorder %s33, 0
    %p266 = por %p264, %p265
    %p267 = scmp.ne.s32.totalorder %s253, %s254
    %p268 = scmp.eq.s32.totalorder %s34, 11
    %p269 = por %p267, %p268
    %p271 = scmp.ne.s32.totalorder %s254, %s270
    %p272 = scmp.eq.s32.totalorder %s34, 0
    %p273 = por %p271, %p272
    %s275 = sadd.s32 %s274, 1
    %p278 = scmp.eq.s32.totalorder %s28, 11
    %p279 = scmp.ne.s32.totalorder %s274, %s276
    %p280 = scmp.eq.s32.totalorder %s28, 0
    %p281 = por %p279, %p280
    %p282 = scmp.ne.s32.totalorder %s274, %s276
    %p283 = scmp.eq.s32.totalorder %s33, 11
    %p284 = por %p282, %p283
    %p285 = scmp.ne.s32.totalorder %s276, %s277
    %p286 = scmp.eq.s32.totalorder %s33, 0
    %p287 = por %p285, %p286
    %p288 = scmp.ne.s32.totalorder %s276, %s277
    %p289 = scmp.eq.s32.totalorder %s34, 11
    %p290 = por %p288, %p289
    %p292 = scmp.ne.s32.totalorder %s277, %s291
    %p293 = scmp.eq.s32.totalorder %s34, 0
    %p294 = por %p292, %p293
    %s296 = sadd.s32 %s295, 1
    %p299 = scmp.eq.s32.totalorder %s28, 11
    %p300 = scmp.ne.s32.totalorder %s295, %s297
    %p301 = scmp.eq.s32.totalorder %s28, 0
    %p302 = por %p300, %p301
    %p303 = scmp.ne.s32.totalorder %s295, %s297
    %p304 = scmp.eq.s32.totalorder %s33, 11
    %p305 = por %p303, %p304
    %p306 = scmp.ne.s32.totalorder %s297, %s298
    %p307 = scmp.eq.s32.totalorder %s33, 0
    %p308 = por %p306, %p307
    %p309 = scmp.ne.s32.totalorder %s297, %s298
    %p310 = scmp.eq.s32.totalorder %s34, 11
    %p311 = por %p309, %p310
    %p313 = scmp.ne.s32.totalorder %s298, %s312
    %p314 = scmp.eq.s32.totalorder %s34, 0
    %p315 = por %p313, %p314
    %s317 = sadd.s32 %s316, 1
    %p320 = scmp.eq.s32.totalorder %s28, 11
    %p321 = scmp.ne.s32.totalorder %s316, %s318
    %p322 = scmp.eq.s32.totalorder %s28, 0
    %p323 = por %p321, %p322
    %p324 = scmp.ne.s32.totalorder %s316, %s318
    %p325 = scmp.eq.s32.totalorder %s33, 11
    %p326 = por %p324, %p325
    %p327 = scmp.ne.s32.totalorder %s318, %s319
    %p328 = scmp.eq.s32.totalorder %s33, 0
    %p329 = por %p327, %p328
    %p330 = scmp.ne.s32.totalorder %s318, %s319
    %p331 = scmp.eq.s32.totalorder %s34, 11
    %p332 = por %p330, %p331
    %p334 = scmp.ne.s32.totalorder %s319, %s333
    %p335 = scmp.eq.s32.totalorder %s34, 0
    %p336 = por %p334, %p335
    %s338 = sadd.s32 %s337, 1
    %p341 = scmp.eq.s32.totalorder %s28, 11
    %p342 = scmp.ne.s32.totalorder %s337, %s339
    %p343 = scmp.eq.s32.totalorder %s28, 0
    %p344 = por %p342, %p343
    %p345 = scmp.ne.s32.totalorder %s337, %s339
    %p346 = scmp.eq.s32.totalorder %s33, 11
    %p347 = por %p345, %p346
    %p348 = scmp.ne.s32.totalorder %s339, %s340
    %p349 = scmp.eq.s32.totalorder %s33, 0
    %p350 = por %p348, %p349
    %p351 = scmp.ne.s32.totalorder %s339, %s340
    %p352 = scmp.eq.s32.totalorder %s34, 11
    %p353 = por %p351, %p352
    %p355 = scmp.ne.s32.totalorder %s340, %s354
    %p356 = scmp.eq.s32.totalorder %s34, 0
    %p357 = por %p355, %p356
    %s358 = ssub.s32 %s35, %s47
    %p359 = scmp.eq.s32.totalorder %s358, 0
    %s361 = sadd.s32 %s360, 1
    %s362 = scalar_select %p359, %s360, %s361
    %p365 = pneg %p359
    %p366 = scmp.eq.s32.totalorder %s28, 11
    %p367 = por %p365, %p366
    %p368 = scmp.ne.s32.totalorder %s360, %s363
    %p369 = scmp.eq.s32.totalorder %s28, 0
    %p370 = por %p368, %p369
    %p371 = scmp.ne.s32.totalorder %s360, %s363
    %p372 = scmp.eq.s32.totalorder %s33, 11
    %p373 = por %p371, %p372
    %p374 = scmp.ne.s32.totalorder %s363, %s364
    %p375 = scmp.eq.s32.totalorder %s33, 0
    %p376 = por %p374, %p375
    %p377 = scmp.ne.s32.totalorder %s363, %s364
    %p378 = scmp.eq.s32.totalorder %s34, 11
    %p379 = por %p377, %p378
    %p381 = scmp.ne.s32.totalorder %s364, %s380
    %p382 = scmp.eq.s32.totalorder %s34, 0
    %p383 = por %p381, %p382
    %p384 = scmp.le.s32.totalorder 1, %s28
    %p385 = scmp.lt.s32.totalorder %s28, 13
    %p386 = pnand %p384, %p385
    %p387 = pneg %p386
    // Predicated region
    $region9: #{diffwave_forward.1} parent=5 // pred_check
      _
    $region10: #{diffwave_forward.1} parent=5 // pred_check_branch
      %389 = sbr.rel (%p386) target = $region12
    $region11: #{diffwave_forward.1} parent=5 // pred_region
      %s390 = ssub.s32 %s28, 1
      // Predicated region
      $region13: #{diffwave_forward.1} parent=11 // pred_check
        %p391 = pneg %p87
      $region14: #{diffwave_forward.1} parent=11 // pred_check_branch
        %393 = sbr.rel (%p391) target = $region16
      $region15: #{diffwave_forward.1} parent=11 // pred_region
        _
      $region16: #{diffwave_forward.1} parent=11 // pred_fallthru
        _
      // Predicated region
      $region17: #{diffwave_forward.1} parent=11 // pred_check
        %p394 = pneg %p108
      $region18: #{diffwave_forward.1} parent=11 // pred_check_branch
        %396 = sbr.rel (%p394) target = $region20
      $region19: #{diffwave_forward.1} parent=11 // pred_region
        _
      $region20: #{diffwave_forward.1} parent=11 // pred_fallthru
        _
      // Predicated region
      $region21: #{diffwave_forward.1} parent=11 // pred_check
        %p397 = pneg %p287
      $region22: #{diffwave_forward.1} parent=11 // pred_check_branch
        %399 = sbr.rel (%p397) target = $region24
      $region23: #{diffwave_forward.1} parent=11 // pred_region
        _
      $region24: #{diffwave_forward.1} parent=11 // pred_fallthru
        _
      // Predicated region
      $region25: #{diffwave_forward.1} parent=11 // pred_check
        %p400 = pneg %p308
      $region26: #{diffwave_forward.1} parent=11 // pred_check_branch
        %402 = sbr.rel (%p400) target = $region28
      $region27: #{diffwave_forward.1} parent=11 // pred_region
        _
      $region28: #{diffwave_forward.1} parent=11 // pred_fallthru
        _
      // Predicated region
      $region29: #{diffwave_forward.1} parent=11 // pred_check
        %p403 = pneg %p329
      $region30: #{diffwave_forward.1} parent=11 // pred_check_branch
        %405 = sbr.rel (%p403) target = $region32
      $region31: #{diffwave_forward.1} parent=11 // pred_region
        _
      $region32: #{diffwave_forward.1} parent=11 // pred_fallthru
        _
      // Predicated region
      $region33: #{diffwave_forward.1} parent=11 // pred_check
        %p406 = pneg %p350
      $region34: #{diffwave_forward.1} parent=11 // pred_check_branch
        %408 = sbr.rel (%p406) target = $region36
      $region35: #{diffwave_forward.1} parent=11 // pred_region
        _
      $region36: #{diffwave_forward.1} parent=11 // pred_fallthru
        _
    $region12: #{diffwave_forward.1} parent=5 // pred_fallthru
      _
    %p409 = scmp.lt.s32.totalorder %s28, 12
    // Predicated region
    $region37: #{diffwave_forward.1} parent=5 // pred_check
      %p410 = pneg %p409
    $region38: #{diffwave_forward.1} parent=5 // pred_check_branch
      %412 = sbr.rel (%p410) target = $region40
    $region39: #{diffwave_forward.1} parent=5 // pred_region
      // Predicated region
      $region41: #{diffwave_forward.1} parent=39 // pred_check
        %p413 = pneg %p60
      $region42: #{diffwave_forward.1} parent=39 // pred_check_branch
        %415 = sbr.rel (%p413) target = $region44
      $region43: #{diffwave_forward.1} parent=39 // pred_region
        %p416 = scmp.lt.s32.totalorder %s35, 1
        %s417 = scalar_select %p416, %s35, 1
        %s418 = smul.addr %s417, 64
        %s419 = smul.addr %s418, 8
        %s420 = scalar_lea.vmem %s1, %s419
      $region44: #{diffwave_forward.1} parent=39 // pred_fallthru
        _
      // Predicated region
      $region45: #{diffwave_forward.1} parent=39 // pred_check
        %p421 = pneg %p128
      $region46: #{diffwave_forward.1} parent=39 // pred_check_branch
        %423 = sbr.rel (%p421) target = $region48
      $region47: #{diffwave_forward.1} parent=39 // pred_region
        %p424 = scmp.lt.s32.totalorder %s35, 1
        %s425 = scalar_select %p424, %s35, 1
        %s426 = smul.addr %s425, 64
        %s427 = smul.addr %s426, 4
        %s428 = scalar_lea.vmem %s4, %s427
      $region48: #{diffwave_forward.1} parent=39 // pred_fallthru
        _
      // Predicated region
      $region49: #{diffwave_forward.1} parent=39 // pred_check
        %p429 = pneg %p156
      $region50: #{diffwave_forward.1} parent=39 // pred_check_branch
        %431 = sbr.rel (%p429) target = $region52
      $region51: #{diffwave_forward.1} parent=39 // pred_region
        %p432 = scmp.lt.s32.totalorder %s35, 1
        %s433 = scalar_select %p432, %s35, 1
        %p434 = scmp.lt.s32.totalorder %s36, 5
        %s435 = scalar_select %p434, %s36, 5
        %s436 = smul.addr %s433, 6
        %s437 = sadd.s32 %s435, %s436
        %s438 = scalar_lea.vmem %s5, %s437
      $region52: #{diffwave_forward.1} parent=39 // pred_fallthru
        _
      // Predicated region
      $region53: #{diffwave_forward.1} parent=39 // pred_check
        %p439 = pneg %p182
      $region54: #{diffwave_forward.1} parent=39 // pred_check_branch
        %441 = sbr.rel (%p439) target = $region56
      $region55: #{diffwave_forward.1} parent=39 // pred_region
        %p442 = scmp.lt.s32.totalorder %s36, 5
        %s443 = scalar_select %p442, %s36, 5
        %s444 = smul.addr %s443, 25
        %s445 = smul.addr %s444, 4
        %s446 = scalar_lea.vmem %s6, %s445
      $region56: #{diffwave_forward.1} parent=39 // pred_fallthru
        _
      // Predicated region
      $region57: #{diffwave_forward.1} parent=39 // pred_check
        %p447 = pneg %p208
      $region58: #{diffwave_forward.1} parent=39 // pred_check_branch
        %449 = sbr.rel (%p447) target = $region60
      $region59: #{diffwave_forward.1} parent=39 // pred_region
        %p450 = scmp.lt.s32.totalorder %s36, 5
        %s451 = scalar_select %p450, %s36, 5
        %s452 = scalar_lea.vmem %s7, %s451
      $region60: #{diffwave_forward.1} parent=39 // pred_fallthru
        _
      // Predicated region
      $region61: #{diffwave_forward.1} parent=39 // pred_check
        %p453 = pneg %p234
      $region62: #{diffwave_forward.1} parent=39 // pred_check_branch
        %455 = sbr.rel (%p453) target = $region64
      $region63: #{diffwave_forward.1} parent=39 // pred_region
        %p456 = scmp.lt.s32.totalorder %s36, 5
        %s457 = scalar_select %p456, %s36, 5
        %s458 = smul.addr %s457, 8
        %s459 = smul.addr %s458, 4
        %s460 = scalar_lea.vmem %s8, %s459
      $region64: #{diffwave_forward.1} parent=39 // pred_fallthru
        _
      // Predicated region
      $region65: #{diffwave_forward.1} parent=39 // pred_check
        %p461 = pneg %p260
      $region66: #{diffwave_forward.1} parent=39 // pred_check_branch
        %463 = sbr.rel (%p461) target = $region68
      $region67: #{diffwave_forward.1} parent=39 // pred_region
        %p464 = scmp.lt.s32.totalorder %s36, 5
        %s465 = scalar_select %p464, %s36, 5
        %s466 = scalar_lea.vmem %s9, %s465
      $region68: #{diffwave_forward.1} parent=39 // pred_fallthru
        _
    $region40: #{diffwave_forward.1} parent=5 // pred_fallthru
      _
    %p467 = scmp.le.s32.totalorder 1, %s28
    %p468 = scmp.lt.s32.totalorder %s28, 13
    %p469 = pnand %p467, %p468
    %p470 = pneg %p469
    // Predicated region
    $region69: #{diffwave_forward.1} parent=5 // pred_check
      _
    $region70: #{diffwave_forward.1} parent=5 // pred_check_branch
      %472 = sbr.rel (%p469) target = $region72
    $region71: #{diffwave_forward.1} parent=5 // pred_region
      %s473 = ssub.s32 %s28, 1
      %p474 = scmp.lt.s32.totalorder %s37, 1
      %s475 = scalar_select %p474, %s37, 1
      %s476 = smul.addr %s475, 64
      %s477 = smul.addr %s476, 8
      %s478 = scalar_lea.vmem %s1, %s477
      %p479 = pneg %p66
      %p480 = pneg %p63
      %p481 = pneg %p87
      %p482 = pneg %p84
      %p483 = pneg %p108
      %p484 = pneg %p105
      %p485 = scmp.lt.s32.totalorder %s37, 1
      %s486 = scalar_select %p485, %s37, 1
      %s487 = smul.addr %s486, 64
      %s488 = smul.addr %s487, 4
      %s489 = scalar_lea.vmem %s4, %s488
      %p490 = pneg %p134
      %p491 = pneg %p131
      %p492 = scmp.lt.s32.totalorder %s37, 1
      %s493 = scalar_select %p492, %s37, 1
      %p494 = scmp.lt.s32.totalorder %s38, 5
      %s495 = scalar_select %p494, %s38, 5
      %s496 = smul.addr %s493, 6
      %s497 = sadd.s32 %s495, %s496
      %s498 = scalar_lea.vmem %s5, %s497
      %p499 = pneg %p162
      %p500 = pneg %p159
      %p501 = scmp.lt.s32.totalorder %s38, 5
      %s502 = scalar_select %p501, %s38, 5
      %s503 = smul.addr %s502, 25
      %s504 = smul.addr %s503, 4
      %s505 = scalar_lea.vmem %s6, %s504
      %p506 = pneg %p188
      %p507 = pneg %p185
      %p508 = scmp.lt.s32.totalorder %s38, 5
      %s509 = scalar_select %p508, %s38, 5
      %s510 = scalar_lea.vmem %s7, %s509
      %p511 = pneg %p214
      %p512 = pneg %p211
      %p513 = scmp.lt.s32.totalorder %s38, 5
      %s514 = scalar_select %p513, %s38, 5
      %s515 = smul.addr %s514, 8
      %s516 = smul.addr %s515, 4
      %s517 = scalar_lea.vmem %s8, %s516
      %p518 = pneg %p240
      %p519 = pneg %p237
      %p520 = scmp.lt.s32.totalorder %s38, 5
      %s521 = scalar_select %p520, %s38, 5
      %s522 = scalar_lea.vmem %s9, %s521
      %p523 = pneg %p266
      %p524 = pneg %p263
      %p525 = pneg %p287
      %p526 = pneg %p284
      %p527 = pneg %p308
      %p528 = pneg %p305
      %p529 = pneg %p329
      %p530 = pneg %p326
      %p531 = pneg %p350
      %p532 = pneg %p347
      %p533 = pneg %p376
      %p534 = pneg %p373
      %p535 = scmp.lt.s32.totalorder %s37, 1
      %s536 = scalar_select %p535, %s37, 1
      %s537 = smul.addr %s536, 64
      %s538 = smul.addr %s537, 8
      %s539 = scalar_lea.vmem %s14, %s538
      %p540 = scmp.lt.s32.totalorder %s37, 1
      %s541 = scalar_select %p540, %s37, 1
      %s542 = smul.addr %s541, 64
      %s543 = smul.addr %s542, 8
      %s544 = scalar_lea.vmem %s1, %s543
      %p545 = scmp.lt.s32.totalorder %s37, 1
      %s546 = scalar_select %p545, %s37, 1
      %s547 = smul.addr %s546, 64
      %s548 = smul.addr %s547, 4
      %s549 = scalar_lea.vmem %s4, %s548
      %p550 = scmp.lt.s32.totalorder %s37, 1
      %s551 = scalar_select %p550, %s37, 1
      %p552 = scmp.lt.s32.totalorder %s38, 5
      %s553 = scalar_select %p552, %s38, 5
      %s554 = smul.addr %s551, 6
      %s555 = sadd.s32 %s553, %s554
      %s556 = scalar_lea.vmem %s5, %s555
      %p557 = scmp.lt.s32.totalorder %s38, 5
      %s558 = scalar_select %p557, %s38, 5
      %s559 = smul.addr %s558, 25
      %s560 = smul.addr %s559, 4
      %s561 = scalar_lea.vmem %s6, %s560
      %p562 = scmp.lt.s32.totalorder %s38, 5
      %s563 = scalar_select %p562, %s38, 5
      %s564 = scalar_lea.vmem %s7, %s563
      %p565 = scmp.lt.s32.totalorder %s38, 5
      %s566 = scalar_select %p565, %s38, 5
      %s567 = smul.addr %s566, 8
      %s568 = smul.addr %s567, 4
      %s569 = scalar_lea.vmem %s8, %s568
      %p570 = scmp.lt.s32.totalorder %s38, 5
      %s571 = scalar_select %p570, %s38, 5
      %s572 = scalar_lea.vmem %s9, %s571
      %p573 = scmp.lt.s32.totalorder %s37, 1
      %s574 = scalar_select %p573, %s37, 1
      %s575 = smul.addr %s574, 64
      %s576 = smul.addr %s575, 8
      %s577 = scalar_lea.vmem %s14, %s576
      %p579 = scmp.eq.s32.totalorder %s38, 0
      // Predicated region
      $region73: #{diffwave_forward.1} parent=71 // pred_check
        %p580 = pneg %p579
      $region74: #{diffwave_forward.1} parent=71 // pred_check_branch
        %582 = sbr.rel (%p580) target = $region76
      $region75: #{diffwave_forward.1} parent=71 // pred_region
        %v583 = vld [vmem:[%s544] sm:$0xff]
        %v584 = vld [vmem:[%s544 + $0x8] sm:$0xff]
        %v585 = vld [vmem:[%s544 + $0x10] sm:$0xff]
        %v586 = vld [vmem:[%s544 + $0x18] sm:$0xff]
        %v587 = vld [vmem:[%s544 + $0x20] sm:$0xff]
        %v588 = vld [vmem:[%s544 + $0x28] sm:$0xff]
        %v589 = vld [vmem:[%s544 + $0x30] sm:$0xff]
        %v590 = vld [vmem:[%s544 + $0x38] sm:$0xff]
        %v591 = vld [vmem:[%s544 + $0x40] sm:$0xff]
        %v592 = vld [vmem:[%s544 + $0x48] sm:$0xff]
        %v593 = vld [vmem:[%s544 + $0x50] sm:$0xff]
        %v594 = vld [vmem:[%s544 + $0x58] sm:$0xff]
        %v595 = vld [vmem:[%s544 + $0x60] sm:$0xff]
        %v596 = vld [vmem:[%s544 + $0x68] sm:$0xff]
        %v597 = vld [vmem:[%s544 + $0x70] sm:$0xff]
        %v598 = vld [vmem:[%s544 + $0x78] sm:$0xff]
        %v599 = vld [vmem:[%s544 + $0x80] sm:$0xff]
        %v600 = vld [vmem:[%s544 + $0x88] sm:$0xff]
        %v601 = vld [vmem:[%s544 + $0x90] sm:$0xff]
        %v602 = vld [vmem:[%s544 + $0x98] sm:$0xff]
        %v603 = vld [vmem:[%s544 + $0xa0] sm:$0xff]
        %v604 = vld [vmem:[%s544 + $0xa8] sm:$0xff]
        %v605 = vld [vmem:[%s544 + $0xb0] sm:$0xff]
        %v606 = vld [vmem:[%s544 + $0xb8] sm:$0xff]
        %v607 = vld [vmem:[%s544 + $0xc0] sm:$0xff]
        %v608 = vld [vmem:[%s544 + $0xc8] sm:$0xff]
        %v609 = vld [vmem:[%s544 + $0xd0] sm:$0xff]
        %v610 = vld [vmem:[%s544 + $0xd8] sm:$0xff]
        %v611 = vld [vmem:[%s544 + $0xe0] sm:$0xff]
        %v612 = vld [vmem:[%s544 + $0xe8] sm:$0xff]
        %v613 = vld [vmem:[%s544 + $0xf0] sm:$0xff]
        %v614 = vld [vmem:[%s544 + $0xf8] sm:$0xff]
        %v615 = vld [vmem:[%s544 + $0x100] sm:$0xff]
        %v616 = vld [vmem:[%s544 + $0x108] sm:$0xff]
        %v617 = vld [vmem:[%s544 + $0x110] sm:$0xff]
        %v618 = vld [vmem:[%s544 + $0x118] sm:$0xff]
        %v619 = vld [vmem:[%s544 + $0x120] sm:$0xff]
        %v620 = vld [vmem:[%s544 + $0x128] sm:$0xff]
        %v621 = vld [vmem:[%s544 + $0x130] sm:$0xff]
        %v622 = vld [vmem:[%s544 + $0x138] sm:$0xff]
        %v623 = vld [vmem:[%s544 + $0x140] sm:$0xff]
        %v624 = vld [vmem:[%s544 + $0x148] sm:$0xff]
        %v625 = vld [vmem:[%s544 + $0x150] sm:$0xff]
        %v626 = vld [vmem:[%s544 + $0x158] sm:$0xff]
        %v627 = vld [vmem:[%s544 + $0x160] sm:$0xff]
        %v628 = vld [vmem:[%s544 + $0x168] sm:$0xff]
        %v629 = vld [vmem:[%s544 + $0x170] sm:$0xff]
        %v630 = vld [vmem:[%s544 + $0x178] sm:$0xff]
        %v631 = vld [vmem:[%s544 + $0x180] sm:$0xff]
        %v632 = vld [vmem:[%s544 + $0x188] sm:$0xff]
        %v633 = vld [vmem:[%s544 + $0x190] sm:$0xff]
        %v634 = vld [vmem:[%s544 + $0x198] sm:$0xff]
        %v635 = vld [vmem:[%s544 + $0x1a0] sm:$0xff]
        %v636 = vld [vmem:[%s544 + $0x1a8] sm:$0xff]
        %v637 = vld [vmem:[%s544 + $0x1b0] sm:$0xff]
        %v638 = vld [vmem:[%s544 + $0x1b8] sm:$0xff]
        %v639 = vld [vmem:[%s544 + $0x1c0] sm:$0xff]
        %v640 = vld [vmem:[%s544 + $0x1c8] sm:$0xff]
        %v641 = vld [vmem:[%s544 + $0x1d0] sm:$0xff]
        %v642 = vld [vmem:[%s544 + $0x1d8] sm:$0xff]
        %v643 = vld [vmem:[%s544 + $0x1e0] sm:$0xff]
        %v644 = vld [vmem:[%s544 + $0x1e8] sm:$0xff]
        %v645 = vld [vmem:[%s544 + $0x1f0] sm:$0xff]
        %v646 = vld [vmem:[%s544 + $0x1f8] sm:$0xff]
        %v647 = vld [vmem:[%s2] sm:$0x1]
        %649 = vset.pattern.permute.xlu0 0
        %650 = vperm.xlu0 %649, %v583
        %v651 = vpop.permute.xlu0 %650
        %654 = vset.pattern.permute.xlu0 0
        %655 = vperm.xlu0 %654, %v584
        %v656 = vpop.permute.xlu0 %655
        %659 = vset.pattern.permute.xlu0 0
        %660 = vperm.xlu0 %659, %v585
        %v661 = vpop.permute.xlu0 %660
        %664 = vset.pattern.permute.xlu0 0
        %665 = vperm.xlu0 %664, %v586
        %v666 = vpop.permute.xlu0 %665
        %669 = vset.pattern.permute.xlu0 0
        %670 = vperm.xlu0 %669, %v587
        %v671 = vpop.permute.xlu0 %670
        %674 = vset.pattern.permute.xlu0 0
        %675 = vperm.xlu0 %674, %v588
        %v676 = vpop.permute.xlu0 %675
        %679 = vset.pattern.permute.xlu0 0
        %680 = vperm.xlu0 %679, %v589
        %v681 = vpop.permute.xlu0 %680
        %684 = vset.pattern.permute.xlu0 0
        %685 = vperm.xlu0 %684, %v590
        %v686 = vpop.permute.xlu0 %685
        %689 = vset.pattern.permute.xlu0 0
        %690 = vperm.xlu0 %689, %v591
        %v691 = vpop.permute.xlu0 %690
        %694 = vset.pattern.permute.xlu0 0
        %695 = vperm.xlu0 %694, %v592
        %v696 = vpop.permute.xlu0 %695
        %699 = vset.pattern.permute.xlu0 0
        %700 = vperm.xlu0 %699, %v593
        %v701 = vpop.permute.xlu0 %700
        %704 = vset.pattern.permute.xlu0 0
        %705 = vperm.xlu0 %704, %v594
        %v706 = vpop.permute.xlu0 %705
        %709 = vset.pattern.permute.xlu0 0
        %710 = vperm.xlu0 %709, %v595
        %v711 = vpop.permute.xlu0 %710
        %714 = vset.pattern.permute.xlu0 0
        %715 = vperm.xlu0 %714, %v596
        %v716 = vpop.permute.xlu0 %715
        %719 = vset.pattern.permute.xlu0 0
        %720 = vperm.xlu0 %719, %v597
        %v721 = vpop.permute.xlu0 %720
        %724 = vset.pattern.permute.xlu0 0
        %725 = vperm.xlu0 %724, %v598
        %v726 = vpop.permute.xlu0 %725
        %729 = vset.pattern.permute.xlu0 0
        %730 = vperm.xlu0 %729, %v599
        %v731 = vpop.permute.xlu0 %730
        %734 = vset.pattern.permute.xlu0 0
        %735 = vperm.xlu0 %734, %v600
        %v736 = vpop.permute.xlu0 %735
        %739 = vset.pattern.permute.xlu0 0
        %740 = vperm.xlu0 %739, %v601
        %v741 = vpop.permute.xlu0 %740
        %744 = vset.pattern.permute.xlu0 0
        %745 = vperm.xlu0 %744, %v602
        %v746 = vpop.permute.xlu0 %745
        %749 = vset.pattern.permute.xlu0 0
        %750 = vperm.xlu0 %749, %v603
        %v751 = vpop.permute.xlu0 %750
        %754 = vset.pattern.permute.xlu0 0
        %755 = vperm.xlu0 %754, %v604
        %v756 = vpop.permute.xlu0 %755
        %759 = vset.pattern.permute.xlu0 0
        %760 = vperm.xlu0 %759, %v605
        %v761 = vpop.permute.xlu0 %760
        %764 = vset.pattern.permute.xlu0 0
        %765 = vperm.xlu0 %764, %v606
        %v766 = vpop.permute.xlu0 %765
        %769 = vset.pattern.permute.xlu0 0
        %770 = vperm.xlu0 %769, %v607
        %v771 = vpop.permute.xlu0 %770
        %774 = vset.pattern.permute.xlu0 0
        %775 = vperm.xlu0 %774, %v608
        %v776 = vpop.permute.xlu0 %775
        %779 = vset.pattern.permute.xlu0 0
        %780 = vperm.xlu0 %779, %v609
        %v781 = vpop.permute.xlu0 %780
        %784 = vset.pattern.permute.xlu0 0
        %785 = vperm.xlu0 %784, %v610
        %v786 = vpop.permute.xlu0 %785
        %789 = vset.pattern.permute.xlu0 0
        %790 = vperm.xlu0 %789, %v611
        %v791 = vpop.permute.xlu0 %790
        %794 = vset.pattern.permute.xlu0 0
        %795 = vperm.xlu0 %794, %v612
        %v796 = vpop.permute.xlu0 %795
        %799 = vset.pattern.permute.xlu0 0
        %800 = vperm.xlu0 %799, %v613
        %v801 = vpop.permute.xlu0 %800
        %804 = vset.pattern.permute.xlu0 0
        %805 = vperm.xlu0 %804, %v614
        %v806 = vpop.permute.xlu0 %805
        %809 = vset.pattern.permute.xlu0 0
        %810 = vperm.xlu0 %809, %v615
        %v811 = vpop.permute.xlu0 %810
        %814 = vset.pattern.permute.xlu0 0
        %815 = vperm.xlu0 %814, %v616
        %v816 = vpop.permute.xlu0 %815
        %819 = vset.pattern.permute.xlu0 0
        %820 = vperm.xlu0 %819, %v617
        %v821 = vpop.permute.xlu0 %820
        %824 = vset.pattern.permute.xlu0 0
        %825 = vperm.xlu0 %824, %v618
        %v826 = vpop.permute.xlu0 %825
        %829 = vset.pattern.permute.xlu0 0
        %830 = vperm.xlu0 %829, %v619
        %v831 = vpop.permute.xlu0 %830
        %834 = vset.pattern.permute.xlu0 0
        %835 = vperm.xlu0 %834, %v620
        %v836 = vpop.permute.xlu0 %835
        %839 = vset.pattern.permute.xlu0 0
        %840 = vperm.xlu0 %839, %v621
        %v841 = vpop.permute.xlu0 %840
        %844 = vset.pattern.permute.xlu0 0
        %845 = vperm.xlu0 %844, %v622
        %v846 = vpop.permute.xlu0 %845
        %849 = vset.pattern.permute.xlu0 0
        %850 = vperm.xlu0 %849, %v623
        %v851 = vpop.permute.xlu0 %850
        %854 = vset.pattern.permute.xlu0 0
        %855 = vperm.xlu0 %854, %v624
        %v856 = vpop.permute.xlu0 %855
        %859 = vset.pattern.permute.xlu0 0
        %860 = vperm.xlu0 %859, %v625
        %v861 = vpop.permute.xlu0 %860
        %864 = vset.pattern.permute.xlu0 0
        %865 = vperm.xlu0 %864, %v626
        %v866 = vpop.permute.xlu0 %865
        %869 = vset.pattern.permute.xlu0 0
        %870 = vperm.xlu0 %869, %v627
        %v871 = vpop.permute.xlu0 %870
        %874 = vset.pattern.permute.xlu0 0
        %875 = vperm.xlu0 %874, %v628
        %v876 = vpop.permute.xlu0 %875
        %879 = vset.pattern.permute.xlu0 0
        %880 = vperm.xlu0 %879, %v629
        %v881 = vpop.permute.xlu0 %880
        %884 = vset.pattern.permute.xlu0 0
        %885 = vperm.xlu0 %884, %v630
        %v886 = vpop.permute.xlu0 %885
        %889 = vset.pattern.permute.xlu0 0
        %890 = vperm.xlu0 %889, %v631
        %v891 = vpop.permute.xlu0 %890
        %894 = vset.pattern.permute.xlu0 0
        %895 = vperm.xlu0 %894, %v632
        %v896 = vpop.permute.xlu0 %895
        %899 = vset.pattern.permute.xlu0 0
        %900 = vperm.xlu0 %899, %v633
        %v901 = vpop.permute.xlu0 %900
        %904 = vset.pattern.permute.xlu0 0
        %905 = vperm.xlu0 %904, %v634
        %v906 = vpop.permute.xlu0 %905
        %909 = vset.pattern.permute.xlu0 0
        %910 = vperm.xlu0 %909, %v635
        %v911 = vpop.permute.xlu0 %910
        %914 = vset.pattern.permute.xlu0 0
        %915 = vperm.xlu0 %914, %v636
        %v916 = vpop.permute.xlu0 %915
        %919 = vset.pattern.permute.xlu0 0
        %920 = vperm.xlu0 %919, %v637
        %v921 = vpop.permute.xlu0 %920
        %924 = vset.pattern.permute.xlu0 0
        %925 = vperm.xlu0 %924, %v638
        %v926 = vpop.permute.xlu0 %925
        %929 = vset.pattern.permute.xlu0 0
        %930 = vperm.xlu0 %929, %v639
        %v931 = vpop.permute.xlu0 %930
        %934 = vset.pattern.permute.xlu0 0
        %935 = vperm.xlu0 %934, %v640
        %v936 = vpop.permute.xlu0 %935
        %939 = vset.pattern.permute.xlu0 0
        %940 = vperm.xlu0 %939, %v641
        %v941 = vpop.permute.xlu0 %940
        %944 = vset.pattern.permute.xlu0 0
        %945 = vperm.xlu0 %944, %v642
        %v946 = vpop.permute.xlu0 %945
        %949 = vset.pattern.permute.xlu0 0
        %950 = vperm.xlu0 %949, %v643
        %v951 = vpop.permute.xlu0 %950
        %954 = vset.pattern.permute.xlu0 0
        %955 = vperm.xlu0 %954, %v644
        %v956 = vpop.permute.xlu0 %955
        %959 = vset.pattern.permute.xlu0 0
        %960 = vperm.xlu0 %959, %v645
        %v961 = vpop.permute.xlu0 %960
        %964 = vset.pattern.permute.xlu0 0
        %965 = vperm.xlu0 %964, %v646
        %v966 = vpop.permute.xlu0 %965
        %v969 = vlaneseq
        %v970 = vshrl.u32 %v969, 7
        %v971 = vsub.s32 0, %v970
        %v972 = vrot.slane %v647, %v971
        %v974 = vmul.f32 %v651, %v972
        %v975 = vmul.f32 %v656, %v972
        %v976 = vmul.f32 %v661, %v972
        %v977 = vmul.f32 %v666, %v972
        %v978 = vmul.f32 %v671, %v972
        %v979 = vmul.f32 %v676, %v972
        %v980 = vmul.f32 %v681, %v972
        %v981 = vmul.f32 %v686, %v972
        %v982 = vmul.f32 %v691, %v972
        %v983 = vmul.f32 %v696, %v972
        %v984 = vmul.f32 %v701, %v972
        %v985 = vmul.f32 %v706, %v972
        %v986 = vmul.f32 %v711, %v972
        %v987 = vmul.f32 %v716, %v972
        %v988 = vmul.f32 %v721, %v972
        %v989 = vmul.f32 %v726, %v972
        %v990 = vmul.f32 %v731, %v972
        %v991 = vmul.f32 %v736, %v972
        %v992 = vmul.f32 %v741, %v972
        %v993 = vmul.f32 %v746, %v972
        %v994 = vmul.f32 %v751, %v972
        %v995 = vmul.f32 %v756, %v972
        %v996 = vmul.f32 %v761, %v972
        %v997 = vmul.f32 %v766, %v972
        %v998 = vmul.f32 %v771, %v972
        %v999 = vmul.f32 %v776, %v972
        %v1000 = vmul.f32 %v781, %v972
        %v1001 = vmul.f32 %v786, %v972
        %v1002 = vmul.f32 %v791, %v972
        %v1003 = vmul.f32 %v796, %v972
        %v1004 = vmul.f32 %v801, %v972
        %v1005 = vmul.f32 %v806, %v972
        %v1006 = vmul.f32 %v811, %v972
        %v1007 = vmul.f32 %v816, %v972
        %v1008 = vmul.f32 %v821, %v972
        %v1009 = vmul.f32 %v826, %v972
        %v1010 = vmul.f32 %v831, %v972
        %v1011 = vmul.f32 %v836, %v972
        %v1012 = vmul.f32 %v841, %v972
        %v1013 = vmul.f32 %v846, %v972
        %v1014 = vmul.f32 %v851, %v972
        %v1015 = vmul.f32 %v856, %v972
        %v1016 = vmul.f32 %v861, %v972
        %v1017 = vmul.f32 %v866, %v972
        %v1018 = vmul.f32 %v871, %v972
        %v1019 = vmul.f32 %v876, %v972
        %v1020 = vmul.f32 %v881, %v972
        %v1021 = vmul.f32 %v886, %v972
        %v1022 = vmul.f32 %v891, %v972
        %v1023 = vmul.f32 %v896, %v972
        %v1024 = vmul.f32 %v901, %v972
        %v1025 = vmul.f32 %v906, %v972
        %v1026 = vmul.f32 %v911, %v972
        %v1027 = vmul.f32 %v916, %v972
        %v1028 = vmul.f32 %v921, %v972
        %v1029 = vmul.f32 %v926, %v972
        %v1030 = vmul.f32 %v931, %v972
        %v1031 = vmul.f32 %v936, %v972
        %v1032 = vmul.f32 %v941, %v972
        %v1033 = vmul.f32 %v946, %v972
        %v1034 = vmul.f32 %v951, %v972
        %v1035 = vmul.f32 %v956, %v972
        %v1036 = vmul.f32 %v961, %v972
        %v1037 = vmul.f32 %v966, %v972
        %v1038 = vld [vmem:[%s3] sm:$0x1]
        %v1040 = vlaneseq
        %v1041 = vshrl.u32 %v1040, 7
        %v1042 = vsub.s32 0, %v1041
        %v1043 = vrot.slane %v1038, %v1042
        %v1045 = vadd.f32 %v974, %v1043
        %v1046 = vadd.f32 %v975, %v1043
        %v1047 = vadd.f32 %v976, %v1043
        %v1048 = vadd.f32 %v977, %v1043
        %v1049 = vadd.f32 %v978, %v1043
        %v1050 = vadd.f32 %v979, %v1043
        %v1051 = vadd.f32 %v980, %v1043
        %v1052 = vadd.f32 %v981, %v1043
        %v1053 = vadd.f32 %v982, %v1043
        %v1054 = vadd.f32 %v983, %v1043
        %v1055 = vadd.f32 %v984, %v1043
        %v1056 = vadd.f32 %v985, %v1043
        %v1057 = vadd.f32 %v986, %v1043
        %v1058 = vadd.f32 %v987, %v1043
        %v1059 = vadd.f32 %v988, %v1043
        %v1060 = vadd.f32 %v989, %v1043
        %v1061 = vadd.f32 %v990, %v1043
        %v1062 = vadd.f32 %v991, %v1043
        %v1063 = vadd.f32 %v992, %v1043
        %v1064 = vadd.f32 %v993, %v1043
        %v1065 = vadd.f32 %v994, %v1043
        %v1066 = vadd.f32 %v995, %v1043
        %v1067 = vadd.f32 %v996, %v1043
        %v1068 = vadd.f32 %v997, %v1043
        %v1069 = vadd.f32 %v998, %v1043
        %v1070 = vadd.f32 %v999, %v1043
        %v1071 = vadd.f32 %v1000, %v1043
        %v1072 = vadd.f32 %v1001, %v1043
        %v1073 = vadd.f32 %v1002, %v1043
        %v1074 = vadd.f32 %v1003, %v1043
        %v1075 = vadd.f32 %v1004, %v1043
        %v1076 = vadd.f32 %v1005, %v1043
        %v1077 = vadd.f32 %v1006, %v1043
        %v1078 = vadd.f32 %v1007, %v1043
        %v1079 = vadd.f32 %v1008, %v1043
        %v1080 = vadd.f32 %v1009, %v1043
        %v1081 = vadd.f32 %v1010, %v1043
        %v1082 = vadd.f32 %v1011, %v1043
        %v1083 = vadd.f32 %v1012, %v1043
        %v1084 = vadd.f32 %v1013, %v1043
        %v1085 = vadd.f32 %v1014, %v1043
        %v1086 = vadd.f32 %v1015, %v1043
        %v1087 = vadd.f32 %v1016, %v1043
        %v1088 = vadd.f32 %v1017, %v1043
        %v1089 = vadd.f32 %v1018, %v1043
        %v1090 = vadd.f32 %v1019, %v1043
        %v1091 = vadd.f32 %v1020, %v1043
        %v1092 = vadd.f32 %v1021, %v1043
        %v1093 = vadd.f32 %v1022, %v1043
        %v1094 = vadd.f32 %v1023, %v1043
        %v1095 = vadd.f32 %v1024, %v1043
        %v1096 = vadd.f32 %v1025, %v1043
        %v1097 = vadd.f32 %v1026, %v1043
        %v1098 = vadd.f32 %v1027, %v1043
        %v1099 = vadd.f32 %v1028, %v1043
        %v1100 = vadd.f32 %v1029, %v1043
        %v1101 = vadd.f32 %v1030, %v1043
        %v1102 = vadd.f32 %v1031, %v1043
        %v1103 = vadd.f32 %v1032, %v1043
        %v1104 = vadd.f32 %v1033, %v1043
        %v1105 = vadd.f32 %v1034, %v1043
        %v1106 = vadd.f32 %v1035, %v1043
        %v1107 = vadd.f32 %v1036, %v1043
        %v1108 = vadd.f32 %v1037, %v1043
        %v1109 = vmax.f32 %v1045, 0.0
        %v1110 = vmax.f32 %v1046, 0.0
        %v1111 = vmax.f32 %v1047, 0.0
        %v1112 = vmax.f32 %v1048, 0.0
        %v1113 = vmax.f32 %v1049, 0.0
        %v1114 = vmax.f32 %v1050, 0.0
        %v1115 = vmax.f32 %v1051, 0.0
        %v1116 = vmax.f32 %v1052, 0.0
        %v1117 = vmax.f32 %v1053, 0.0
        %v1118 = vmax.f32 %v1054, 0.0
        %v1119 = vmax.f32 %v1055, 0.0
        %v1120 = vmax.f32 %v1056, 0.0
        %v1121 = vmax.f32 %v1057, 0.0
        %v1122 = vmax.f32 %v1058, 0.0
        %v1123 = vmax.f32 %v1059, 0.0
        %v1124 = vmax.f32 %v1060, 0.0
        %v1125 = vmax.f32 %v1061, 0.0
        %v1126 = vmax.f32 %v1062, 0.0
        %v1127 = vmax.f32 %v1063, 0.0
        %v1128 = vmax.f32 %v1064, 0.0
        %v1129 = vmax.f32 %v1065, 0.0
        %v1130 = vmax.f32 %v1066, 0.0
        %v1131 = vmax.f32 %v1067, 0.0
        %v1132 = vmax.f32 %v1068, 0.0
        %v1133 = vmax.f32 %v1069, 0.0
        %v1134 = vmax.f32 %v1070, 0.0
        %v1135 = vmax.f32 %v1071, 0.0
        %v1136 = vmax.f32 %v1072, 0.0
        %v1137 = vmax.f32 %v1073, 0.0
        %v1138 = vmax.f32 %v1074, 0.0
        %v1139 = vmax.f32 %v1075, 0.0
        %v1140 = vmax.f32 %v1076, 0.0
        %v1141 = vmax.f32 %v1077, 0.0
        %v1142 = vmax.f32 %v1078, 0.0
        %v1143 = vmax.f32 %v1079, 0.0
        %v1144 = vmax.f32 %v1080, 0.0
        %v1145 = vmax.f32 %v1081, 0.0
        %v1146 = vmax.f32 %v1082, 0.0
        %v1147 = vmax.f32 %v1083, 0.0
        %v1148 = vmax.f32 %v1084, 0.0
        %v1149 = vmax.f32 %v1085, 0.0
        %v1150 = vmax.f32 %v1086, 0.0
        %v1151 = vmax.f32 %v1087, 0.0
        %v1152 = vmax.f32 %v1088, 0.0
        %v1153 = vmax.f32 %v1089, 0.0
        %v1154 = vmax.f32 %v1090, 0.0
        %v1155 = vmax.f32 %v1091, 0.0
        %v1156 = vmax.f32 %v1092, 0.0
        %v1157 = vmax.f32 %v1093, 0.0
        %v1158 = vmax.f32 %v1094, 0.0
        %v1159 = vmax.f32 %v1095, 0.0
        %v1160 = vmax.f32 %v1096, 0.0
        %v1161 = vmax.f32 %v1097, 0.0
        %v1162 = vmax.f32 %v1098, 0.0
        %v1163 = vmax.f32 %v1099, 0.0
        %v1164 = vmax.f32 %v1100, 0.0
        %v1165 = vmax.f32 %v1101, 0.0
        %v1166 = vmax.f32 %v1102, 0.0
        %v1167 = vmax.f32 %v1103, 0.0
        %v1168 = vmax.f32 %v1104, 0.0
        %v1169 = vmax.f32 %v1105, 0.0
        %v1170 = vmax.f32 %v1106, 0.0
        %v1171 = vmax.f32 %v1107, 0.0
        %v1172 = vmax.f32 %v1108, 0.0
        %vm1173 = vcmask 523264
        %1174 = vst.msk [vmem:[#allocation2] sm:$0xff] %vm1173, %v1109
        %1175 = vst.msk [vmem:[#allocation2 + $0x8] sm:$0xff] %vm1173, %v1110
        %1176 = vst.msk [vmem:[#allocation2 + $0x10] sm:$0xff] %vm1173, %v1111
        %1177 = vst.msk [vmem:[#allocation2 + $0x18] sm:$0xff] %vm1173, %v1112
        %1178 = vst.msk [vmem:[#allocation2 + $0x20] sm:$0xff] %vm1173, %v1113
        %1179 = vst.msk [vmem:[#allocation2 + $0x28] sm:$0xff] %vm1173, %v1114
        %1180 = vst.msk [vmem:[#allocation2 + $0x30] sm:$0xff] %vm1173, %v1115
        %1181 = vst.msk [vmem:[#allocation2 + $0x38] sm:$0xff] %vm1173, %v1116
        %1182 = vst.msk [vmem:[#allocation2 + $0x40] sm:$0xff] %vm1173, %v1117
        %1183 = vst.msk [vmem:[#allocation2 + $0x48] sm:$0xff] %vm1173, %v1118
        %1184 = vst.msk [vmem:[#allocation2 + $0x50] sm:$0xff] %vm1173, %v1119
        %1185 = vst.msk [vmem:[#allocation2 + $0x58] sm:$0xff] %vm1173, %v1120
        %1186 = vst.msk [vmem:[#allocation2 + $0x60] sm:$0xff] %vm1173, %v1121
        %1187 = vst.msk [vmem:[#allocation2 + $0x68] sm:$0xff] %vm1173, %v1122
        %1188 = vst.msk [vmem:[#allocation2 + $0x70] sm:$0xff] %vm1173, %v1123
        %1189 = vst.msk [vmem:[#allocation2 + $0x78] sm:$0xff] %vm1173, %v1124
        %1190 = vst.msk [vmem:[#allocation2 + $0x80] sm:$0xff] %vm1173, %v1125
        %1191 = vst.msk [vmem:[#allocation2 + $0x88] sm:$0xff] %vm1173, %v1126
        %1192 = vst.msk [vmem:[#allocation2 + $0x90] sm:$0xff] %vm1173, %v1127
        %1193 = vst.msk [vmem:[#allocation2 + $0x98] sm:$0xff] %vm1173, %v1128
        %1194 = vst.msk [vmem:[#allocation2 + $0xa0] sm:$0xff] %vm1173, %v1129
        %1195 = vst.msk [vmem:[#allocation2 + $0xa8] sm:$0xff] %vm1173, %v1130
        %1196 = vst.msk [vmem:[#allocation2 + $0xb0] sm:$0xff] %vm1173, %v1131
        %1197 = vst.msk [vmem:[#allocation2 + $0xb8] sm:$0xff] %vm1173, %v1132
        %1198 = vst.msk [vmem:[#allocation2 + $0xc0] sm:$0xff] %vm1173, %v1133
        %1199 = vst.msk [vmem:[#allocation2 + $0xc8] sm:$0xff] %vm1173, %v1134
        %1200 = vst.msk [vmem:[#allocation2 + $0xd0] sm:$0xff] %vm1173, %v1135
        %1201 = vst.msk [vmem:[#allocation2 + $0xd8] sm:$0xff] %vm1173, %v1136
        %1202 = vst.msk [vmem:[#allocation2 + $0xe0] sm:$0xff] %vm1173, %v1137
        %1203 = vst.msk [vmem:[#allocation2 + $0xe8] sm:$0xff] %vm1173, %v1138
        %1204 = vst.msk [vmem:[#allocation2 + $0xf0] sm:$0xff] %vm1173, %v1139
        %1205 = vst.msk [vmem:[#allocation2 + $0xf8] sm:$0xff] %vm1173, %v1140
        %1206 = vst.msk [vmem:[#allocation2 + $0x100] sm:$0xff] %vm1173, %v1141
        %1207 = vst.msk [vmem:[#allocation2 + $0x108] sm:$0xff] %vm1173, %v1142
        %1208 = vst.msk [vmem:[#allocation2 + $0x110] sm:$0xff] %vm1173, %v1143
        %1209 = vst.msk [vmem:[#allocation2 + $0x118] sm:$0xff] %vm1173, %v1144
        %1210 = vst.msk [vmem:[#allocation2 + $0x120] sm:$0xff] %vm1173, %v1145
        %1211 = vst.msk [vmem:[#allocation2 + $0x128] sm:$0xff] %vm1173, %v1146
        %1212 = vst.msk [vmem:[#allocation2 + $0x130] sm:$0xff] %vm1173, %v1147
        %1213 = vst.msk [vmem:[#allocation2 + $0x138] sm:$0xff] %vm1173, %v1148
        %1214 = vst.msk [vmem:[#allocation2 + $0x140] sm:$0xff] %vm1173, %v1149
        %1215 = vst.msk [vmem:[#allocation2 + $0x148] sm:$0xff] %vm1173, %v1150
        %1216 = vst.msk [vmem:[#allocation2 + $0x150] sm:$0xff] %vm1173, %v1151
        %1217 = vst.msk [vmem:[#allocation2 + $0x158] sm:$0xff] %vm1173, %v1152
        %1218 = vst.msk [vmem:[#allocation2 + $0x160] sm:$0xff] %vm1173, %v1153
        %1219 = vst.msk [vmem:[#allocation2 + $0x168] sm:$0xff] %vm1173, %v1154
        %1220 = vst.msk [vmem:[#allocation2 + $0x170] sm:$0xff] %vm1173, %v1155
        %1221 = vst.msk [vmem:[#allocation2 + $0x178] sm:$0xff] %vm1173, %v1156
        %1222 = vst.msk [vmem:[#allocation2 + $0x180] sm:$0xff] %vm1173, %v1157
        %1223 = vst.msk [vmem:[#allocation2 + $0x188] sm:$0xff] %vm1173, %v1158
        %1224 = vst.msk [vmem:[#allocation2 + $0x190] sm:$0xff] %vm1173, %v1159
        %1225 = vst.msk [vmem:[#allocation2 + $0x198] sm:$0xff] %vm1173, %v1160
        %1226 = vst.msk [vmem:[#allocation2 + $0x1a0] sm:$0xff] %vm1173, %v1161
        %1227 = vst.msk [vmem:[#allocation2 + $0x1a8] sm:$0xff] %vm1173, %v1162
        %1228 = vst.msk [vmem:[#allocation2 + $0x1b0] sm:$0xff] %vm1173, %v1163
        %1229 = vst.msk [vmem:[#allocation2 + $0x1b8] sm:$0xff] %vm1173, %v1164
        %1230 = vst.msk [vmem:[#allocation2 + $0x1c0] sm:$0xff] %vm1173, %v1165
        %1231 = vst.msk [vmem:[#allocation2 + $0x1c8] sm:$0xff] %vm1173, %v1166
        %1232 = vst.msk [vmem:[#allocation2 + $0x1d0] sm:$0xff] %vm1173, %v1167
        %1233 = vst.msk [vmem:[#allocation2 + $0x1d8] sm:$0xff] %vm1173, %v1168
        %1234 = vst.msk [vmem:[#allocation2 + $0x1e0] sm:$0xff] %vm1173, %v1169
        %1235 = vst.msk [vmem:[#allocation2 + $0x1e8] sm:$0xff] %vm1173, %v1170
        %1236 = vst.msk [vmem:[#allocation2 + $0x1f0] sm:$0xff] %vm1173, %v1171
        %1237 = vst.msk [vmem:[#allocation2 + $0x1f8] sm:$0xff] %vm1173, %v1172
        %1238 = vst.msk [vmem:[#allocation3] sm:$0xff] %vm1173, 0.0
        %1239 = vst.msk [vmem:[#allocation3 + $0x8] sm:$0xff] %vm1173, 0.0
        %1240 = vst.msk [vmem:[#allocation3 + $0x10] sm:$0xff] %vm1173, 0.0
        %1241 = vst.msk [vmem:[#allocation3 + $0x18] sm:$0xff] %vm1173, 0.0
        %1242 = vst.msk [vmem:[#allocation3 + $0x20] sm:$0xff] %vm1173, 0.0
        %1243 = vst.msk [vmem:[#allocation3 + $0x28] sm:$0xff] %vm1173, 0.0
        %1244 = vst.msk [vmem:[#allocation3 + $0x30] sm:$0xff] %vm1173, 0.0
        %1245 = vst.msk [vmem:[#allocation3 + $0x38] sm:$0xff] %vm1173, 0.0
        %1246 = vst.msk [vmem:[#allocation3 + $0x40] sm:$0xff] %vm1173, 0.0
        %1247 = vst.msk [vmem:[#allocation3 + $0x48] sm:$0xff] %vm1173, 0.0
        %1248 = vst.msk [vmem:[#allocation3 + $0x50] sm:$0xff] %vm1173, 0.0
        %1249 = vst.msk [vmem:[#allocation3 + $0x58] sm:$0xff] %vm1173, 0.0
        %1250 = vst.msk [vmem:[#allocation3 + $0x60] sm:$0xff] %vm1173, 0.0
        %1251 = vst.msk [vmem:[#allocation3 + $0x68] sm:$0xff] %vm1173, 0.0
        %1252 = vst.msk [vmem:[#allocation3 + $0x70] sm:$0xff] %vm1173, 0.0
        %1253 = vst.msk [vmem:[#allocation3 + $0x78] sm:$0xff] %vm1173, 0.0
        %1254 = vst.msk [vmem:[#allocation3 + $0x80] sm:$0xff] %vm1173, 0.0
        %1255 = vst.msk [vmem:[#allocation3 + $0x88] sm:$0xff] %vm1173, 0.0
        %1256 = vst.msk [vmem:[#allocation3 + $0x90] sm:$0xff] %vm1173, 0.0
        %1257 = vst.msk [vmem:[#allocation3 + $0x98] sm:$0xff] %vm1173, 0.0
        %1258 = vst.msk [vmem:[#allocation3 + $0xa0] sm:$0xff] %vm1173, 0.0
        %1259 = vst.msk [vmem:[#allocation3 + $0xa8] sm:$0xff] %vm1173, 0.0
        %1260 = vst.msk [vmem:[#allocation3 + $0xb0] sm:$0xff] %vm1173, 0.0
        %1261 = vst.msk [vmem:[#allocation3 + $0xb8] sm:$0xff] %vm1173, 0.0
        %1262 = vst.msk [vmem:[#allocation3 + $0xc0] sm:$0xff] %vm1173, 0.0
        %1263 = vst.msk [vmem:[#allocation3 + $0xc8] sm:$0xff] %vm1173, 0.0
        %1264 = vst.msk [vmem:[#allocation3 + $0xd0] sm:$0xff] %vm1173, 0.0
        %1265 = vst.msk [vmem:[#allocation3 + $0xd8] sm:$0xff] %vm1173, 0.0
        %1266 = vst.msk [vmem:[#allocation3 + $0xe0] sm:$0xff] %vm1173, 0.0
        %1267 = vst.msk [vmem:[#allocation3 + $0xe8] sm:$0xff] %vm1173, 0.0
        %1268 = vst.msk [vmem:[#allocation3 + $0xf0] sm:$0xff] %vm1173, 0.0
        %1269 = vst.msk [vmem:[#allocation3 + $0xf8] sm:$0xff] %vm1173, 0.0
        %1270 = vst.msk [vmem:[#allocation3 + $0x100] sm:$0xff] %vm1173, 0.0
        %1271 = vst.msk [vmem:[#allocation3 + $0x108] sm:$0xff] %vm1173, 0.0
        %1272 = vst.msk [vmem:[#allocation3 + $0x110] sm:$0xff] %vm1173, 0.0
        %1273 = vst.msk [vmem:[#allocation3 + $0x118] sm:$0xff] %vm1173, 0.0
        %1274 = vst.msk [vmem:[#allocation3 + $0x120] sm:$0xff] %vm1173, 0.0
        %1275 = vst.msk [vmem:[#allocation3 + $0x128] sm:$0xff] %vm1173, 0.0
        %1276 = vst.msk [vmem:[#allocation3 + $0x130] sm:$0xff] %vm1173, 0.0
        %1277 = vst.msk [vmem:[#allocation3 + $0x138] sm:$0xff] %vm1173, 0.0
        %1278 = vst.msk [vmem:[#allocation3 + $0x140] sm:$0xff] %vm1173, 0.0
        %1279 = vst.msk [vmem:[#allocation3 + $0x148] sm:$0xff] %vm1173, 0.0
        %1280 = vst.msk [vmem:[#allocation3 + $0x150] sm:$0xff] %vm1173, 0.0
        %1281 = vst.msk [vmem:[#allocation3 + $0x158] sm:$0xff] %vm1173, 0.0
        %1282 = vst.msk [vmem:[#allocation3 + $0x160] sm:$0xff] %vm1173, 0.0
        %1283 = vst.msk [vmem:[#allocation3 + $0x168] sm:$0xff] %vm1173, 0.0
        %1284 = vst.msk [vmem:[#allocation3 + $0x170] sm:$0xff] %vm1173, 0.0
        %1285 = vst.msk [vmem:[#allocation3 + $0x178] sm:$0xff] %vm1173, 0.0
        %1286 = vst.msk [vmem:[#allocation3 + $0x180] sm:$0xff] %vm1173, 0.0
        %1287 = vst.msk [vmem:[#allocation3 + $0x188] sm:$0xff] %vm1173, 0.0
        %1288 = vst.msk [vmem:[#allocation3 + $0x190] sm:$0xff] %vm1173, 0.0
        %1289 = vst.msk [vmem:[#allocation3 + $0x198] sm:$0xff] %vm1173, 0.0
        %1290 = vst.msk [vmem:[#allocation3 + $0x1a0] sm:$0xff] %vm1173, 0.0
        %1291 = vst.msk [vmem:[#allocation3 + $0x1a8] sm:$0xff] %vm1173, 0.0
        %1292 = vst.msk [vmem:[#allocation3 + $0x1b0] sm:$0xff] %vm1173, 0.0
        %1293 = vst.msk [vmem:[#allocation3 + $0x1b8] sm:$0xff] %vm1173, 0.0
        %1294 = vst.msk [vmem:[#allocation3 + $0x1c0] sm:$0xff] %vm1173, 0.0
        %1295 = vst.msk [vmem:[#allocation3 + $0x1c8] sm:$0xff] %vm1173, 0.0
        %1296 = vst.msk [vmem:[#allocation3 + $0x1d0] sm:$0xff] %vm1173, 0.0
        %1297 = vst.msk [vmem:[#allocation3 + $0x1d8] sm:$0xff] %vm1173, 0.0
        %1298 = vst.msk [vmem:[#allocation3 + $0x1e0] sm:$0xff] %vm1173, 0.0
        %1299 = vst.msk [vmem:[#allocation3 + $0x1e8] sm:$0xff] %vm1173, 0.0
        %1300 = vst.msk [vmem:[#allocation3 + $0x1f0] sm:$0xff] %vm1173, 0.0
        %1301 = vst.msk [vmem:[#allocation3 + $0x1f8] sm:$0xff] %vm1173, 0.0
        %1302 = vst.msk [vmem:[#allocation4] sm:$0xff] %vm1173, 0.0
        %1303 = vst.msk [vmem:[#allocation4 + $0x8] sm:$0xff] %vm1173, 0.0
        %1304 = vst.msk [vmem:[#allocation4 + $0x10] sm:$0xff] %vm1173, 0.0
        %1305 = vst.msk [vmem:[#allocation4 + $0x18] sm:$0xff] %vm1173, 0.0
        %1306 = vst.msk [vmem:[#allocation4 + $0x20] sm:$0xff] %vm1173, 0.0
        %1307 = vst.msk [vmem:[#allocation4 + $0x28] sm:$0xff] %vm1173, 0.0
        %1308 = vst.msk [vmem:[#allocation4 + $0x30] sm:$0xff] %vm1173, 0.0
        %1309 = vst.msk [vmem:[#allocation4 + $0x38] sm:$0xff] %vm1173, 0.0
        %1310 = vst.msk [vmem:[#allocation4 + $0x40] sm:$0xff] %vm1173, 0.0
        %1311 = vst.msk [vmem:[#allocation4 + $0x48] sm:$0xff] %vm1173, 0.0
        %1312 = vst.msk [vmem:[#allocation4 + $0x50] sm:$0xff] %vm1173, 0.0
        %1313 = vst.msk [vmem:[#allocation4 + $0x58] sm:$0xff] %vm1173, 0.0
        %1314 = vst.msk [vmem:[#allocation4 + $0x60] sm:$0xff] %vm1173, 0.0
        %1315 = vst.msk [vmem:[#allocation4 + $0x68] sm:$0xff] %vm1173, 0.0
        %1316 = vst.msk [vmem:[#allocation4 + $0x70] sm:$0xff] %vm1173, 0.0
        %1317 = vst.msk [vmem:[#allocation4 + $0x78] sm:$0xff] %vm1173, 0.0
        %1318 = vst.msk [vmem:[#allocation4 + $0x80] sm:$0xff] %vm1173, 0.0
        %1319 = vst.msk [vmem:[#allocation4 + $0x88] sm:$0xff] %vm1173, 0.0
        %1320 = vst.msk [vmem:[#allocation4 + $0x90] sm:$0xff] %vm1173, 0.0
        %1321 = vst.msk [vmem:[#allocation4 + $0x98] sm:$0xff] %vm1173, 0.0
        %1322 = vst.msk [vmem:[#allocation4 + $0xa0] sm:$0xff] %vm1173, 0.0
        %1323 = vst.msk [vmem:[#allocation4 + $0xa8] sm:$0xff] %vm1173, 0.0
        %1324 = vst.msk [vmem:[#allocation4 + $0xb0] sm:$0xff] %vm1173, 0.0
        %1325 = vst.msk [vmem:[#allocation4 + $0xb8] sm:$0xff] %vm1173, 0.0
        %1326 = vst.msk [vmem:[#allocation4 + $0xc0] sm:$0xff] %vm1173, 0.0
        %1327 = vst.msk [vmem:[#allocation4 + $0xc8] sm:$0xff] %vm1173, 0.0
        %1328 = vst.msk [vmem:[#allocation4 + $0xd0] sm:$0xff] %vm1173, 0.0
        %1329 = vst.msk [vmem:[#allocation4 + $0xd8] sm:$0xff] %vm1173, 0.0
        %1330 = vst.msk [vmem:[#allocation4 + $0xe0] sm:$0xff] %vm1173, 0.0
        %1331 = vst.msk [vmem:[#allocation4 + $0xe8] sm:$0xff] %vm1173, 0.0
        %1332 = vst.msk [vmem:[#allocation4 + $0xf0] sm:$0xff] %vm1173, 0.0
        %1333 = vst.msk [vmem:[#allocation4 + $0xf8] sm:$0xff] %vm1173, 0.0
        %1334 = vst.msk [vmem:[#allocation4 + $0x100] sm:$0xff] %vm1173, 0.0
        %1335 = vst.msk [vmem:[#allocation4 + $0x108] sm:$0xff] %vm1173, 0.0
        %1336 = vst.msk [vmem:[#allocation4 + $0x110] sm:$0xff] %vm1173, 0.0
        %1337 = vst.msk [vmem:[#allocation4 + $0x118] sm:$0xff] %vm1173, 0.0
        %1338 = vst.msk [vmem:[#allocation4 + $0x120] sm:$0xff] %vm1173, 0.0
        %1339 = vst.msk [vmem:[#allocation4 + $0x128] sm:$0xff] %vm1173, 0.0
        %1340 = vst.msk [vmem:[#allocation4 + $0x130] sm:$0xff] %vm1173, 0.0
        %1341 = vst.msk [vmem:[#allocation4 + $0x138] sm:$0xff] %vm1173, 0.0
        %1342 = vst.msk [vmem:[#allocation4 + $0x140] sm:$0xff] %vm1173, 0.0
        %1343 = vst.msk [vmem:[#allocation4 + $0x148] sm:$0xff] %vm1173, 0.0
        %1344 = vst.msk [vmem:[#allocation4 + $0x150] sm:$0xff] %vm1173, 0.0
        %1345 = vst.msk [vmem:[#allocation4 + $0x158] sm:$0xff] %vm1173, 0.0
        %1346 = vst.msk [vmem:[#allocation4 + $0x160] sm:$0xff] %vm1173, 0.0
        %1347 = vst.msk [vmem:[#allocation4 + $0x168] sm:$0xff] %vm1173, 0.0
        %1348 = vst.msk [vmem:[#allocation4 + $0x170] sm:$0xff] %vm1173, 0.0
        %1349 = vst.msk [vmem:[#allocation4 + $0x178] sm:$0xff] %vm1173, 0.0
        %1350 = vst.msk [vmem:[#allocation4 + $0x180] sm:$0xff] %vm1173, 0.0
        %1351 = vst.msk [vmem:[#allocation4 + $0x188] sm:$0xff] %vm1173, 0.0
        %1352 = vst.msk [vmem:[#allocation4 + $0x190] sm:$0xff] %vm1173, 0.0
        %1353 = vst.msk [vmem:[#allocation4 + $0x198] sm:$0xff] %vm1173, 0.0
        %1354 = vst.msk [vmem:[#allocation4 + $0x1a0] sm:$0xff] %vm1173, 0.0
        %1355 = vst.msk [vmem:[#allocation4 + $0x1a8] sm:$0xff] %vm1173, 0.0
        %1356 = vst.msk [vmem:[#allocation4 + $0x1b0] sm:$0xff] %vm1173, 0.0
        %1357 = vst.msk [vmem:[#allocation4 + $0x1b8] sm:$0xff] %vm1173, 0.0
        %1358 = vst.msk [vmem:[#allocation4 + $0x1c0] sm:$0xff] %vm1173, 0.0
        %1359 = vst.msk [vmem:[#allocation4 + $0x1c8] sm:$0xff] %vm1173, 0.0
        %1360 = vst.msk [vmem:[#allocation4 + $0x1d0] sm:$0xff] %vm1173, 0.0
        %1361 = vst.msk [vmem:[#allocation4 + $0x1d8] sm:$0xff] %vm1173, 0.0
        %1362 = vst.msk [vmem:[#allocation4 + $0x1e0] sm:$0xff] %vm1173, 0.0
        %1363 = vst.msk [vmem:[#allocation4 + $0x1e8] sm:$0xff] %vm1173, 0.0
        %1364 = vst.msk [vmem:[#allocation4 + $0x1f0] sm:$0xff] %vm1173, 0.0
        %1365 = vst.msk [vmem:[#allocation4 + $0x1f8] sm:$0xff] %vm1173, 0.0
        %1366 = vst.msk [vmem:[#allocation4 + $0x200] sm:$0xff] %vm1173, 0.0
        %1367 = vst.msk [vmem:[#allocation4 + $0x208] sm:$0xff] %vm1173, 0.0
      $region76: #{diffwave_forward.1} parent=71 // pred_fallthru
        _
      %s1368 = sld [smem:[#allocation6 + %s38]]
      %v1369 = vld [vmem:[#allocation2] sm:$0xff]
      %v1370 = vld [vmem:[#allocation2 + $0x8] sm:$0xff]
      %v1371 = vld [vmem:[#allocation2 + $0x10] sm:$0xff]
      %v1372 = vld [vmem:[#allocation2 + $0x18] sm:$0xff]
      %v1373 = vld [vmem:[#allocation2 + $0x20] sm:$0xff]
      %v1374 = vld [vmem:[#allocation2 + $0x28] sm:$0xff]
      %v1375 = vld [vmem:[#allocation2 + $0x30] sm:$0xff]
      %v1376 = vld [vmem:[#allocation2 + $0x38] sm:$0xff]
      %v1377 = vld [vmem:[#allocation2 + $0x40] sm:$0xff]
      %v1378 = vld [vmem:[#allocation2 + $0x48] sm:$0xff]
      %v1379 = vld [vmem:[#allocation2 + $0x50] sm:$0xff]
      %v1380 = vld [vmem:[#allocation2 + $0x58] sm:$0xff]
      %v1381 = vld [vmem:[#allocation2 + $0x60] sm:$0xff]
      %v1382 = vld [vmem:[#allocation2 + $0x68] sm:$0xff]
      %v1383 = vld [vmem:[#allocation2 + $0x70] sm:$0xff]
      %v1384 = vld [vmem:[#allocation2 + $0x78] sm:$0xff]
      %v1385 = vld [vmem:[#allocation2 + $0x80] sm:$0xff]
      %v1386 = vld [vmem:[#allocation2 + $0x88] sm:$0xff]
      %v1387 = vld [vmem:[#allocation2 + $0x90] sm:$0xff]
      %v1388 = vld [vmem:[#allocation2 + $0x98] sm:$0xff]
      %v1389 = vld [vmem:[#allocation2 + $0xa0] sm:$0xff]
      %v1390 = vld [vmem:[#allocation2 + $0xa8] sm:$0xff]
      %v1391 = vld [vmem:[#allocation2 + $0xb0] sm:$0xff]
      %v1392 = vld [vmem:[#allocation2 + $0xb8] sm:$0xff]
      %v1393 = vld [vmem:[#allocation2 + $0xc0] sm:$0xff]
      %v1394 = vld [vmem:[#allocation2 + $0xc8] sm:$0xff]
      %v1395 = vld [vmem:[#allocation2 + $0xd0] sm:$0xff]
      %v1396 = vld [vmem:[#allocation2 + $0xd8] sm:$0xff]
      %v1397 = vld [vmem:[#allocation2 + $0xe0] sm:$0xff]
      %v1398 = vld [vmem:[#allocation2 + $0xe8] sm:$0xff]
      %v1399 = vld [vmem:[#allocation2 + $0xf0] sm:$0xff]
      %v1400 = vld [vmem:[#allocation2 + $0xf8] sm:$0xff]
      %v1401 = vld [vmem:[#allocation2 + $0x100] sm:$0xff]
      %v1402 = vld [vmem:[#allocation2 + $0x108] sm:$0xff]
      %v1403 = vld [vmem:[#allocation2 + $0x110] sm:$0xff]
      %v1404 = vld [vmem:[#allocation2 + $0x118] sm:$0xff]
      %v1405 = vld [vmem:[#allocation2 + $0x120] sm:$0xff]
      %v1406 = vld [vmem:[#allocation2 + $0x128] sm:$0xff]
      %v1407 = vld [vmem:[#allocation2 + $0x130] sm:$0xff]
      %v1408 = vld [vmem:[#allocation2 + $0x138] sm:$0xff]
      %v1409 = vld [vmem:[#allocation2 + $0x140] sm:$0xff]
      %v1410 = vld [vmem:[#allocation2 + $0x148] sm:$0xff]
      %v1411 = vld [vmem:[#allocation2 + $0x150] sm:$0xff]
      %v1412 = vld [vmem:[#allocation2 + $0x158] sm:$0xff]
      %v1413 = vld [vmem:[#allocation2 + $0x160] sm:$0xff]
      %v1414 = vld [vmem:[#allocation2 + $0x168] sm:$0xff]
      %v1415 = vld [vmem:[#allocation2 + $0x170] sm:$0xff]
      %v1416 = vld [vmem:[#allocation2 + $0x178] sm:$0xff]
      %v1417 = vld [vmem:[#allocation2 + $0x180] sm:$0xff]
      %v1418 = vld [vmem:[#allocation2 + $0x188] sm:$0xff]
      %v1419 = vld [vmem:[#allocation2 + $0x190] sm:$0xff]
      %v1420 = vld [vmem:[#allocation2 + $0x198] sm:$0xff]
      %v1421 = vld [vmem:[#allocation2 + $0x1a0] sm:$0xff]
      %v1422 = vld [vmem:[#allocation2 + $0x1a8] sm:$0xff]
      %v1423 = vld [vmem:[#allocation2 + $0x1b0] sm:$0xff]
      %v1424 = vld [vmem:[#allocation2 + $0x1b8] sm:$0xff]
      %v1425 = vld [vmem:[#allocation2 + $0x1c0] sm:$0xff]
      %v1426 = vld [vmem:[#allocation2 + $0x1c8] sm:$0xff]
      %v1427 = vld [vmem:[#allocation2 + $0x1d0] sm:$0xff]
      %v1428 = vld [vmem:[#allocation2 + $0x1d8] sm:$0xff]
      %v1429 = vld [vmem:[#allocation2 + $0x1e0] sm:$0xff]
      %v1430 = vld [vmem:[#allocation2 + $0x1e8] sm:$0xff]
      %v1431 = vld [vmem:[#allocation2 + $0x1f0] sm:$0xff]
      %v1432 = vld [vmem:[#allocation2 + $0x1f8] sm:$0xff]
      %v1433 = vld [vmem:[%s556] sm:$0x1]
      %v1435 = vlaneseq
      %v1436 = vshrl.u32 %v1435, 7
      %v1437 = vsub.s32 0, %v1436
      %v1438 = vrot.slane %v1433, %v1437
      %v1440 = vadd.f32 %v1369, %v1438
      %v1441 = vadd.f32 %v1370, %v1438
      %v1442 = vadd.f32 %v1371, %v1438
      %v1443 = vadd.f32 %v1372, %v1438
      %v1444 = vadd.f32 %v1373, %v1438
      %v1445 = vadd.f32 %v1374, %v1438
      %v1446 = vadd.f32 %v1375, %v1438
      %v1447 = vadd.f32 %v1376, %v1438
      %v1448 = vadd.f32 %v1377, %v1438
      %v1449 = vadd.f32 %v1378, %v1438
      %v1450 = vadd.f32 %v1379, %v1438
      %v1451 = vadd.f32 %v1380, %v1438
      %v1452 = vadd.f32 %v1381, %v1438
      %v1453 = vadd.f32 %v1382, %v1438
      %v1454 = vadd.f32 %v1383, %v1438
      %v1455 = vadd.f32 %v1384, %v1438
      %v1456 = vadd.f32 %v1385, %v1438
      %v1457 = vadd.f32 %v1386, %v1438
      %v1458 = vadd.f32 %v1387, %v1438
      %v1459 = vadd.f32 %v1388, %v1438
      %v1460 = vadd.f32 %v1389, %v1438
      %v1461 = vadd.f32 %v1390, %v1438
      %v1462 = vadd.f32 %v1391, %v1438
      %v1463 = vadd.f32 %v1392, %v1438
      %v1464 = vadd.f32 %v1393, %v1438
      %v1465 = vadd.f32 %v1394, %v1438
      %v1466 = vadd.f32 %v1395, %v1438
      %v1467 = vadd.f32 %v1396, %v1438
      %v1468 = vadd.f32 %v1397, %v1438
      %v1469 = vadd.f32 %v1398, %v1438
      %v1470 = vadd.f32 %v1399, %v1438
      %v1471 = vadd.f32 %v1400, %v1438
      %v1472 = vadd.f32 %v1401, %v1438
      %v1473 = vadd.f32 %v1402, %v1438
      %v1474 = vadd.f32 %v1403, %v1438
      %v1475 = vadd.f32 %v1404, %v1438
      %v1476 = vadd.f32 %v1405, %v1438
      %v1477 = vadd.f32 %v1406, %v1438
      %v1478 = vadd.f32 %v1407, %v1438
      %v1479 = vadd.f32 %v1408, %v1438
      %v1480 = vadd.f32 %v1409, %v1438
      %v1481 = vadd.f32 %v1410, %v1438
      %v1482 = vadd.f32 %v1411, %v1438
      %v1483 = vadd.f32 %v1412, %v1438
      %v1484 = vadd.f32 %v1413, %v1438
      %v1485 = vadd.f32 %v1414, %v1438
      %v1486 = vadd.f32 %v1415, %v1438
      %v1487 = vadd.f32 %v1416, %v1438
      %v1488 = vadd.f32 %v1417, %v1438
      %v1489 = vadd.f32 %v1418, %v1438
      %v1490 = vadd.f32 %v1419, %v1438
      %v1491 = vadd.f32 %v1420, %v1438
      %v1492 = vadd.f32 %v1421, %v1438
      %v1493 = vadd.f32 %v1422, %v1438
      %v1494 = vadd.f32 %v1423, %v1438
      %v1495 = vadd.f32 %v1424, %v1438
      %v1496 = vadd.f32 %v1425, %v1438
      %v1497 = vadd.f32 %v1426, %v1438
      %v1498 = vadd.f32 %v1427, %v1438
      %v1499 = vadd.f32 %v1428, %v1438
      %v1500 = vadd.f32 %v1429, %v1438
      %v1501 = vadd.f32 %v1430, %v1438
      %v1502 = vadd.f32 %v1431, %v1438
      %v1503 = vadd.f32 %v1432, %v1438
      %vm1504 = vcmask 523264
      %1505 = vst.msk [vmem:[#allocation4 + $0x8] sm:$0xff] %vm1504, %v1440
      %1506 = vst.msk [vmem:[#allocation4 + $0x10] sm:$0xff] %vm1504, %v1441
      %1507 = vst.msk [vmem:[#allocation4 + $0x18] sm:$0xff] %vm1504, %v1442
      %1508 = vst.msk [vmem:[#allocation4 + $0x20] sm:$0xff] %vm1504, %v1443
      %1509 = vst.msk [vmem:[#allocation4 + $0x28] sm:$0xff] %vm1504, %v1444
      %1510 = vst.msk [vmem:[#allocation4 + $0x30] sm:$0xff] %vm1504, %v1445
      %1511 = vst.msk [vmem:[#allocation4 + $0x38] sm:$0xff] %vm1504, %v1446
      %1512 = vst.msk [vmem:[#allocation4 + $0x40] sm:$0xff] %vm1504, %v1447
      %1513 = vst.msk [vmem:[#allocation4 + $0x48] sm:$0xff] %vm1504, %v1448
      %1514 = vst.msk [vmem:[#allocation4 + $0x50] sm:$0xff] %vm1504, %v1449
      %1515 = vst.msk [vmem:[#allocation4 + $0x58] sm:$0xff] %vm1504, %v1450
      %1516 = vst.msk [vmem:[#allocation4 + $0x60] sm:$0xff] %vm1504, %v1451
      %1517 = vst.msk [vmem:[#allocation4 + $0x68] sm:$0xff] %vm1504, %v1452
      %1518 = vst.msk [vmem:[#allocation4 + $0x70] sm:$0xff] %vm1504, %v1453
      %1519 = vst.msk [vmem:[#allocation4 + $0x78] sm:$0xff] %vm1504, %v1454
      %1520 = vst.msk [vmem:[#allocation4 + $0x80] sm:$0xff] %vm1504, %v1455
      %1521 = vst.msk [vmem:[#allocation4 + $0x88] sm:$0xff] %vm1504, %v1456
      %1522 = vst.msk [vmem:[#allocation4 + $0x90] sm:$0xff] %vm1504, %v1457
      %1523 = vst.msk [vmem:[#allocation4 + $0x98] sm:$0xff] %vm1504, %v1458
      %1524 = vst.msk [vmem:[#allocation4 + $0xa0] sm:$0xff] %vm1504, %v1459
      %1525 = vst.msk [vmem:[#allocation4 + $0xa8] sm:$0xff] %vm1504, %v1460
      %1526 = vst.msk [vmem:[#allocation4 + $0xb0] sm:$0xff] %vm1504, %v1461
      %1527 = vst.msk [vmem:[#allocation4 + $0xb8] sm:$0xff] %vm1504, %v1462
      %1528 = vst.msk [vmem:[#allocation4 + $0xc0] sm:$0xff] %vm1504, %v1463
      %1529 = vst.msk [vmem:[#allocation4 + $0xc8] sm:$0xff] %vm1504, %v1464
      %1530 = vst.msk [vmem:[#allocation4 + $0xd0] sm:$0xff] %vm1504, %v1465
      %1531 = vst.msk [vmem:[#allocation4 + $0xd8] sm:$0xff] %vm1504, %v1466
      %1532 = vst.msk [vmem:[#allocation4 + $0xe0] sm:$0xff] %vm1504, %v1467
      %1533 = vst.msk [vmem:[#allocation4 + $0xe8] sm:$0xff] %vm1504, %v1468
      %1534 = vst.msk [vmem:[#allocation4 + $0xf0] sm:$0xff] %vm1504, %v1469
      %1535 = vst.msk [vmem:[#allocation4 + $0xf8] sm:$0xff] %vm1504, %v1470
      %1536 = vst.msk [vmem:[#allocation4 + $0x100] sm:$0xff] %vm1504, %v1471
      %1537 = vst.msk [vmem:[#allocation4 + $0x108] sm:$0xff] %vm1504, %v1472
      %1538 = vst.msk [vmem:[#allocation4 + $0x110] sm:$0xff] %vm1504, %v1473
      %1539 = vst.msk [vmem:[#allocation4 + $0x118] sm:$0xff] %vm1504, %v1474
      %1540 = vst.msk [vmem:[#allocation4 + $0x120] sm:$0xff] %vm1504, %v1475
      %1541 = vst.msk [vmem:[#allocation4 + $0x128] sm:$0xff] %vm1504, %v1476
      %1542 = vst.msk [vmem:[#allocation4 + $0x130] sm:$0xff] %vm1504, %v1477
      %1543 = vst.msk [vmem:[#allocation4 + $0x138] sm:$0xff] %vm1504, %v1478
      %1544 = vst.msk [vmem:[#allocation4 + $0x140] sm:$0xff] %vm1504, %v1479
      %1545 = vst.msk [vmem:[#allocation4 + $0x148] sm:$0xff] %vm1504, %v1480
      %1546 = vst.msk [vmem:[#allocation4 + $0x150] sm:$0xff] %vm1504, %v1481
      %1547 = vst.msk [vmem:[#allocation4 + $0x158] sm:$0xff] %vm1504, %v1482
      %1548 = vst.msk [vmem:[#allocation4 + $0x160] sm:$0xff] %vm1504, %v1483
      %1549 = vst.msk [vmem:[#allocation4 + $0x168] sm:$0xff] %vm1504, %v1484
      %1550 = vst.msk [vmem:[#allocation4 + $0x170] sm:$0xff] %vm1504, %v1485
      %1551 = vst.msk [vmem:[#allocation4 + $0x178] sm:$0xff] %vm1504, %v1486
      %1552 = vst.msk [vmem:[#allocation4 + $0x180] sm:$0xff] %vm1504, %v1487
      %1553 = vst.msk [vmem:[#allocation4 + $0x188] sm:$0xff] %vm1504, %v1488
      %1554 = vst.msk [vmem:[#allocation4 + $0x190] sm:$0xff] %vm1504, %v1489
      %1555 = vst.msk [vmem:[#allocation4 + $0x198] sm:$0xff] %vm1504, %v1490
      %1556 = vst.msk [vmem:[#allocation4 + $0x1a0] sm:$0xff] %vm1504, %v1491
      %1557 = vst.msk [vmem:[#allocation4 + $0x1a8] sm:$0xff] %vm1504, %v1492
      %1558 = vst.msk [vmem:[#allocation4 + $0x1b0] sm:$0xff] %vm1504, %v1493
      %1559 = vst.msk [vmem:[#allocation4 + $0x1b8] sm:$0xff] %vm1504, %v1494
      %1560 = vst.msk [vmem:[#allocation4 + $0x1c0] sm:$0xff] %vm1504, %v1495
      %1561 = vst.msk [vmem:[#allocation4 + $0x1c8] sm:$0xff] %vm1504, %v1496
      %1562 = vst.msk [vmem:[#allocation4 + $0x1d0] sm:$0xff] %vm1504, %v1497
      %1563 = vst.msk [vmem:[#allocation4 + $0x1d8] sm:$0xff] %vm1504, %v1498
      %1564 = vst.msk [vmem:[#allocation4 + $0x1e0] sm:$0xff] %vm1504, %v1499
      %1565 = vst.msk [vmem:[#allocation4 + $0x1e8] sm:$0xff] %vm1504, %v1500
      %1566 = vst.msk [vmem:[#allocation4 + $0x1f0] sm:$0xff] %vm1504, %v1501
      %1567 = vst.msk [vmem:[#allocation4 + $0x1f8] sm:$0xff] %vm1504, %v1502
      %1568 = vst.msk [vmem:[#allocation4 + $0x200] sm:$0xff] %vm1504, %v1503
      %s1569 = ssub.s32 8, %s1368
      %s1570 = scalar_lea.vmem [#allocation4], %s1569
      %v1571 = vld [vmem:[%s1570] sm:$0xff]
      %v1572 = vld [vmem:[%s1570 + $0x8] sm:$0xff]
      %v1573 = vld [vmem:[%s1570 + $0x10] sm:$0xff]
      %v1574 = vld [vmem:[%s1570 + $0x18] sm:$0xff]
      %v1575 = vld [vmem:[%s1570 + $0x20] sm:$0xff]
      %v1576 = vld [vmem:[%s1570 + $0x28] sm:$0xff]
      %v1577 = vld [vmem:[%s1570 + $0x30] sm:$0xff]
      %v1578 = vld [vmem:[%s1570 + $0x38] sm:$0xff]
      %v1579 = vld [vmem:[%s1570 + $0x40] sm:$0xff]
      %v1580 = vld [vmem:[%s1570 + $0x48] sm:$0xff]
      %v1581 = vld [vmem:[%s1570 + $0x50] sm:$0xff]
      %v1582 = vld [vmem:[%s1570 + $0x58] sm:$0xff]
      %v1583 = vld [vmem:[%s1570 + $0x60] sm:$0xff]
      %v1584 = vld [vmem:[%s1570 + $0x68] sm:$0xff]
      %v1585 = vld [vmem:[%s1570 + $0x70] sm:$0xff]
      %v1586 = vld [vmem:[%s1570 + $0x78] sm:$0xff]
      %v1587 = vld [vmem:[%s1570 + $0x80] sm:$0xff]
      %v1588 = vld [vmem:[%s1570 + $0x88] sm:$0xff]
      %v1589 = vld [vmem:[%s1570 + $0x90] sm:$0xff]
      %v1590 = vld [vmem:[%s1570 + $0x98] sm:$0xff]
      %v1591 = vld [vmem:[%s1570 + $0xa0] sm:$0xff]
      %v1592 = vld [vmem:[%s1570 + $0xa8] sm:$0xff]
      %v1593 = vld [vmem:[%s1570 + $0xb0] sm:$0xff]
      %v1594 = vld [vmem:[%s1570 + $0xb8] sm:$0xff]
      %v1595 = vld [vmem:[%s1570 + $0xc0] sm:$0xff]
      %v1596 = vld [vmem:[%s1570 + $0xc8] sm:$0xff]
      %v1597 = vld [vmem:[%s1570 + $0xd0] sm:$0xff]
      %v1598 = vld [vmem:[%s1570 + $0xd8] sm:$0xff]
      %v1599 = vld [vmem:[%s1570 + $0xe0] sm:$0xff]
      %v1600 = vld [vmem:[%s1570 + $0xe8] sm:$0xff]
      %v1601 = vld [vmem:[%s1570 + $0xf0] sm:$0xff]
      %v1602 = vld [vmem:[%s1570 + $0xf8] sm:$0xff]
      %v1603 = vld [vmem:[%s1570 + $0x100] sm:$0xff]
      %v1604 = vld [vmem:[%s1570 + $0x108] sm:$0xff]
      %v1605 = vld [vmem:[%s1570 + $0x110] sm:$0xff]
      %v1606 = vld [vmem:[%s1570 + $0x118] sm:$0xff]
      %v1607 = vld [vmem:[%s1570 + $0x120] sm:$0xff]
      %v1608 = vld [vmem:[%s1570 + $0x128] sm:$0xff]
      %v1609 = vld [vmem:[%s1570 + $0x130] sm:$0xff]
      %v1610 = vld [vmem:[%s1570 + $0x138] sm:$0xff]
      %v1611 = vld [vmem:[%s1570 + $0x140] sm:$0xff]
      %v1612 = vld [vmem:[%s1570 + $0x148] sm:$0xff]
      %v1613 = vld [vmem:[%s1570 + $0x150] sm:$0xff]
      %v1614 = vld [vmem:[%s1570 + $0x158] sm:$0xff]
      %v1615 = vld [vmem:[%s1570 + $0x160] sm:$0xff]
      %v1616 = vld [vmem:[%s1570 + $0x168] sm:$0xff]
      %v1617 = vld [vmem:[%s1570 + $0x170] sm:$0xff]
      %v1618 = vld [vmem:[%s1570 + $0x178] sm:$0xff]
      %v1619 = vld [vmem:[%s1570 + $0x180] sm:$0xff]
      %v1620 = vld [vmem:[%s1570 + $0x188] sm:$0xff]
      %v1621 = vld [vmem:[%s1570 + $0x190] sm:$0xff]
      %v1622 = vld [vmem:[%s1570 + $0x198] sm:$0xff]
      %v1623 = vld [vmem:[%s1570 + $0x1a0] sm:$0xff]
      %v1624 = vld [vmem:[%s1570 + $0x1a8] sm:$0xff]
      %v1625 = vld [vmem:[%s1570 + $0x1b0] sm:$0xff]
      %v1626 = vld [vmem:[%s1570 + $0x1b8] sm:$0xff]
      %v1627 = vld [vmem:[%s1570 + $0x1c0] sm:$0xff]
      %v1628 = vld [vmem:[%s1570 + $0x1c8] sm:$0xff]
      %v1629 = vld [vmem:[%s1570 + $0x1d0] sm:$0xff]
      %v1630 = vld [vmem:[%s1570 + $0x1d8] sm:$0xff]
      %v1631 = vld [vmem:[%s1570 + $0x1e0] sm:$0xff]
      %v1632 = vld [vmem:[%s1570 + $0x1e8] sm:$0xff]
      %v1633 = vld [vmem:[%s1570 + $0x1f0] sm:$0xff]
      %v1634 = vld [vmem:[%s1570 + $0x1f8] sm:$0xff]
      %s1635 = sadd.s32 %s1368, 8
      %s1636 = scalar_lea.vmem [#allocation4], %s1635
      %v1637 = vld [vmem:[%s1636] sm:$0xff]
      %v1638 = vld [vmem:[%s1636 + $0x8] sm:$0xff]
      %v1639 = vld [vmem:[%s1636 + $0x10] sm:$0xff]
      %v1640 = vld [vmem:[%s1636 + $0x18] sm:$0xff]
      %v1641 = vld [vmem:[%s1636 + $0x20] sm:$0xff]
      %v1642 = vld [vmem:[%s1636 + $0x28] sm:$0xff]
      %v1643 = vld [vmem:[%s1636 + $0x30] sm:$0xff]
      %v1644 = vld [vmem:[%s1636 + $0x38] sm:$0xff]
      %v1645 = vld [vmem:[%s1636 + $0x40] sm:$0xff]
      %v1646 = vld [vmem:[%s1636 + $0x48] sm:$0xff]
      %v1647 = vld [vmem:[%s1636 + $0x50] sm:$0xff]
      %v1648 = vld [vmem:[%s1636 + $0x58] sm:$0xff]
      %v1649 = vld [vmem:[%s1636 + $0x60] sm:$0xff]
      %v1650 = vld [vmem:[%s1636 + $0x68] sm:$0xff]
      %v1651 = vld [vmem:[%s1636 + $0x70] sm:$0xff]
      %v1652 = vld [vmem:[%s1636 + $0x78] sm:$0xff]
      %v1653 = vld [vmem:[%s1636 + $0x80] sm:$0xff]
      %v1654 = vld [vmem:[%s1636 + $0x88] sm:$0xff]
      %v1655 = vld [vmem:[%s1636 + $0x90] sm:$0xff]
      %v1656 = vld [vmem:[%s1636 + $0x98] sm:$0xff]
      %v1657 = vld [vmem:[%s1636 + $0xa0] sm:$0xff]
      %v1658 = vld [vmem:[%s1636 + $0xa8] sm:$0xff]
      %v1659 = vld [vmem:[%s1636 + $0xb0] sm:$0xff]
      %v1660 = vld [vmem:[%s1636 + $0xb8] sm:$0xff]
      %v1661 = vld [vmem:[%s1636 + $0xc0] sm:$0xff]
      %v1662 = vld [vmem:[%s1636 + $0xc8] sm:$0xff]
      %v1663 = vld [vmem:[%s1636 + $0xd0] sm:$0xff]
      %v1664 = vld [vmem:[%s1636 + $0xd8] sm:$0xff]
      %v1665 = vld [vmem:[%s1636 + $0xe0] sm:$0xff]
      %v1666 = vld [vmem:[%s1636 + $0xe8] sm:$0xff]
      %v1667 = vld [vmem:[%s1636 + $0xf0] sm:$0xff]
      %v1668 = vld [vmem:[%s1636 + $0xf8] sm:$0xff]
      %v1669 = vld [vmem:[%s1636 + $0x100] sm:$0xff]
      %v1670 = vld [vmem:[%s1636 + $0x108] sm:$0xff]
      %v1671 = vld [vmem:[%s1636 + $0x110] sm:$0xff]
      %v1672 = vld [vmem:[%s1636 + $0x118] sm:$0xff]
      %v1673 = vld [vmem:[%s1636 + $0x120] sm:$0xff]
      %v1674 = vld [vmem:[%s1636 + $0x128] sm:$0xff]
      %v1675 = vld [vmem:[%s1636 + $0x130] sm:$0xff]
      %v1676 = vld [vmem:[%s1636 + $0x138] sm:$0xff]
      %v1677 = vld [vmem:[%s1636 + $0x140] sm:$0xff]
      %v1678 = vld [vmem:[%s1636 + $0x148] sm:$0xff]
      %v1679 = vld [vmem:[%s1636 + $0x150] sm:$0xff]
      %v1680 = vld [vmem:[%s1636 + $0x158] sm:$0xff]
      %v1681 = vld [vmem:[%s1636 + $0x160] sm:$0xff]
      %v1682 = vld [vmem:[%s1636 + $0x168] sm:$0xff]
      %v1683 = vld [vmem:[%s1636 + $0x170] sm:$0xff]
      %v1684 = vld [vmem:[%s1636 + $0x178] sm:$0xff]
      %v1685 = vld [vmem:[%s1636 + $0x180] sm:$0xff]
      %v1686 = vld [vmem:[%s1636 + $0x188] sm:$0xff]
      %v1687 = vld [vmem:[%s1636 + $0x190] sm:$0xff]
      %v1688 = vld [vmem:[%s1636 + $0x198] sm:$0xff]
      %v1689 = vld [vmem:[%s1636 + $0x1a0] sm:$0xff]
      %v1690 = vld [vmem:[%s1636 + $0x1a8] sm:$0xff]
      %v1691 = vld [vmem:[%s1636 + $0x1b0] sm:$0xff]
      %v1692 = vld [vmem:[%s1636 + $0x1b8] sm:$0xff]
      %v1693 = vld [vmem:[%s1636 + $0x1c0] sm:$0xff]
      %v1694 = vld [vmem:[%s1636 + $0x1c8] sm:$0xff]
      %v1695 = vld [vmem:[%s1636 + $0x1d0] sm:$0xff]
      %v1696 = vld [vmem:[%s1636 + $0x1d8] sm:$0xff]
      %v1697 = vld [vmem:[%s1636 + $0x1e0] sm:$0xff]
      %v1698 = vld [vmem:[%s1636 + $0x1e8] sm:$0xff]
      %v1699 = vld [vmem:[%s1636 + $0x1f0] sm:$0xff]
      %v1700 = vld [vmem:[%s1636 + $0x1f8] sm:$0xff]
      %v1701 = vpack.c.bf16 %v1572, %v1571
      %v1702 = vpack.c.bf16 %v1574, %v1573
      %v1703 = vpack.c.bf16 %v1576, %v1575
      %v1704 = vpack.c.bf16 %v1578, %v1577
      %v1705 = vpack.c.bf16 %v1580, %v1579
      %v1706 = vpack.c.bf16 %v1582, %v1581
      %v1707 = vpack.c.bf16 %v1584, %v1583
      %v1708 = vpack.c.bf16 %v1586, %v1585
      %v1709 = vpack.c.bf16 %v1588, %v1587
      %v1710 = vpack.c.bf16 %v1590, %v1589
      %v1711 = vpack.c.bf16 %v1592, %v1591
      %v1712 = vpack.c.bf16 %v1594, %v1593
      %v1713 = vpack.c.bf16 %v1596, %v1595
      %v1714 = vpack.c.bf16 %v1598, %v1597
      %v1715 = vpack.c.bf16 %v1600, %v1599
      %v1716 = vpack.c.bf16 %v1602, %v1601
      %v1717 = vpack.c.bf16 %v1604, %v1603
      %v1718 = vpack.c.bf16 %v1606, %v1605
      %v1719 = vpack.c.bf16 %v1608, %v1607
      %v1720 = vpack.c.bf16 %v1610, %v1609
      %v1721 = vpack.c.bf16 %v1612, %v1611
      %v1722 = vpack.c.bf16 %v1614, %v1613
      %v1723 = vpack.c.bf16 %v1616, %v1615
      %v1724 = vpack.c.bf16 %v1618, %v1617
      %v1725 = vpack.c.bf16 %v1620, %v1619
      %v1726 = vpack.c.bf16 %v1622, %v1621
      %v1727 = vpack.c.bf16 %v1624, %v1623
      %v1728 = vpack.c.bf16 %v1626, %v1625
      %v1729 = vpack.c.bf16 %v1628, %v1627
      %v1730 = vpack.c.bf16 %v1630, %v1629
      %v1731 = vpack.c.bf16 %v1632, %v1631
      %v1732 = vpack.c.bf16 %v1634, %v1633
      %v1733 = vpack.c.bf16 %v1441, %v1440
      %v1734 = vpack.c.bf16 %v1443, %v1442
      %v1735 = vpack.c.bf16 %v1445, %v1444
      %v1736 = vpack.c.bf16 %v1447, %v1446
      %v1737 = vpack.c.bf16 %v1449, %v1448
      %v1738 = vpack.c.bf16 %v1451, %v1450
      %v1739 = vpack.c.bf16 %v1453, %v1452
      %v1740 = vpack.c.bf16 %v1455, %v1454
      %v1741 = vpack.c.bf16 %v1457, %v1456
      %v1742 = vpack.c.bf16 %v1459, %v1458
      %v1743 = vpack.c.bf16 %v1461, %v1460
      %v1744 = vpack.c.bf16 %v1463, %v1462
      %v1745 = vpack.c.bf16 %v1465, %v1464
      %v1746 = vpack.c.bf16 %v1467, %v1466
      %v1747 = vpack.c.bf16 %v1469, %v1468
      %v1748 = vpack.c.bf16 %v1471, %v1470
      %v1749 = vpack.c.bf16 %v1473, %v1472
      %v1750 = vpack.c.bf16 %v1475, %v1474
      %v1751 = vpack.c.bf16 %v1477, %v1476
      %v1752 = vpack.c.bf16 %v1479, %v1478
      %v1753 = vpack.c.bf16 %v1481, %v1480
      %v1754 = vpack.c.bf16 %v1483, %v1482
      %v1755 = vpack.c.bf16 %v1485, %v1484
      %v1756 = vpack.c.bf16 %v1487, %v1486
      %v1757 = vpack.c.bf16 %v1489, %v1488
      %v1758 = vpack.c.bf16 %v1491, %v1490
      %v1759 = vpack.c.bf16 %v1493, %v1492
      %v1760 = vpack.c.bf16 %v1495, %v1494
      %v1761 = vpack.c.bf16 %v1497, %v1496
      %v1762 = vpack.c.bf16 %v1499, %v1498
      %v1763 = vpack.c.bf16 %v1501, %v1500
      %v1764 = vpack.c.bf16 %v1503, %v1502
      %v1765 = vpack.c.bf16 %v1638, %v1637
      %v1766 = vpack.c.bf16 %v1640, %v1639
      %v1767 = vpack.c.bf16 %v1642, %v1641
      %v1768 = vpack.c.bf16 %v1644, %v1643
      %v1769 = vpack.c.bf16 %v1646, %v1645
      %v1770 = vpack.c.bf16 %v1648, %v1647
      %v1771 = vpack.c.bf16 %v1650, %v1649
      %v1772 = vpack.c.bf16 %v1652, %v1651
      %v1773 = vpack.c.bf16 %v1654, %v1653
      %v1774 = vpack.c.bf16 %v1656, %v1655
      %v1775 = vpack.c.bf16 %v1658, %v1657
      %v1776 = vpack.c.bf16 %v1660, %v1659
      %v1777 = vpack.c.bf16 %v1662, %v1661
      %v1778 = vpack.c.bf16 %v1664, %v1663
      %v1779 = vpack.c.bf16 %v1666, %v1665
      %v1780 = vpack.c.bf16 %v1668, %v1667
      %v1781 = vpack.c.bf16 %v1670, %v1669
      %v1782 = vpack.c.bf16 %v1672, %v1671
      %v1783 = vpack.c.bf16 %v1674, %v1673
      %v1784 = vpack.c.bf16 %v1676, %v1675
      %v1785 = vpack.c.bf16 %v1678, %v1677
      %v1786 = vpack.c.bf16 %v1680, %v1679
      %v1787 = vpack.c.bf16 %v1682, %v1681
      %v1788 = vpack.c.bf16 %v1684, %v1683
      %v1789 = vpack.c.bf16 %v1686, %v1685
      %v1790 = vpack.c.bf16 %v1688, %v1687
      %v1791 = vpack.c.bf16 %v1690, %v1689
      %v1792 = vpack.c.bf16 %v1692, %v1691
      %v1793 = vpack.c.bf16 %v1694, %v1693
      %v1794 = vpack.c.bf16 %v1696, %v1695
      %v1795 = vpack.c.bf16 %v1698, %v1697
      %v1796 = vpack.c.bf16 %v1700, %v1699
      %v1797 = vld [vmem:[%s549] sm:$0xf]
      %v1798 = vld [vmem:[%s549 + $0x4] sm:$0xf]
      %v1799 = vld [vmem:[%s549 + $0x8] sm:$0xf]
      %v1800 = vld [vmem:[%s549 + $0xc] sm:$0xf]
      %v1801 = vld [vmem:[%s549 + $0x10] sm:$0xf]
      %v1802 = vld [vmem:[%s549 + $0x14] sm:$0xf]
      %v1803 = vld [vmem:[%s549 + $0x18] sm:$0xf]
      %v1804 = vld [vmem:[%s549 + $0x1c] sm:$0xf]
      %v1805 = vld [vmem:[%s549 + $0x20] sm:$0xf]
      %v1806 = vld [vmem:[%s549 + $0x24] sm:$0xf]
      %v1807 = vld [vmem:[%s549 + $0x28] sm:$0xf]
      %v1808 = vld [vmem:[%s549 + $0x2c] sm:$0xf]
      %v1809 = vld [vmem:[%s549 + $0x30] sm:$0xf]
      %v1810 = vld [vmem:[%s549 + $0x34] sm:$0xf]
      %v1811 = vld [vmem:[%s549 + $0x38] sm:$0xf]
      %v1812 = vld [vmem:[%s549 + $0x3c] sm:$0xf]
      %v1813 = vld [vmem:[%s549 + $0x40] sm:$0xf]
      %v1814 = vld [vmem:[%s549 + $0x44] sm:$0xf]
      %v1815 = vld [vmem:[%s549 + $0x48] sm:$0xf]
      %v1816 = vld [vmem:[%s549 + $0x4c] sm:$0xf]
      %v1817 = vld [vmem:[%s549 + $0x50] sm:$0xf]
      %v1818 = vld [vmem:[%s549 + $0x54] sm:$0xf]
      %v1819 = vld [vmem:[%s549 + $0x58] sm:$0xf]
      %v1820 = vld [vmem:[%s549 + $0x5c] sm:$0xf]
      %v1821 = vld [vmem:[%s549 + $0x60] sm:$0xf]
      %v1822 = vld [vmem:[%s549 + $0x64] sm:$0xf]
      %v1823 = vld [vmem:[%s549 + $0x68] sm:$0xf]
      %v1824 = vld [vmem:[%s549 + $0x6c] sm:$0xf]
      %v1825 = vld [vmem:[%s549 + $0x70] sm:$0xf]
      %v1826 = vld [vmem:[%s549 + $0x74] sm:$0xf]
      %v1827 = vld [vmem:[%s549 + $0x78] sm:$0xf]
      %v1828 = vld [vmem:[%s549 + $0x7c] sm:$0xf]
      %v1829 = vld [vmem:[%s549 + $0x80] sm:$0xf]
      %v1830 = vld [vmem:[%s549 + $0x84] sm:$0xf]
      %v1831 = vld [vmem:[%s549 + $0x88] sm:$0xf]
      %v1832 = vld [vmem:[%s549 + $0x8c] sm:$0xf]
      %v1833 = vld [vmem:[%s549 + $0x90] sm:$0xf]
      %v1834 = vld [vmem:[%s549 + $0x94] sm:$0xf]
      %v1835 = vld [vmem:[%s549 + $0x98] sm:$0xf]
      %v1836 = vld [vmem:[%s549 + $0x9c] sm:$0xf]
      %v1837 = vld [vmem:[%s549 + $0xa0] sm:$0xf]
      %v1838 = vld [vmem:[%s549 + $0xa4] sm:$0xf]
      %v1839 = vld [vmem:[%s549 + $0xa8] sm:$0xf]
      %v1840 = vld [vmem:[%s549 + $0xac] sm:$0xf]
      %v1841 = vld [vmem:[%s549 + $0xb0] sm:$0xf]
      %v1842 = vld [vmem:[%s549 + $0xb4] sm:$0xf]
      %v1843 = vld [vmem:[%s549 + $0xb8] sm:$0xf]
      %v1844 = vld [vmem:[%s549 + $0xbc] sm:$0xf]
      %v1845 = vld [vmem:[%s549 + $0xc0] sm:$0xf]
      %v1846 = vld [vmem:[%s549 + $0xc4] sm:$0xf]
      %v1847 = vld [vmem:[%s549 + $0xc8] sm:$0xf]
      %v1848 = vld [vmem:[%s549 + $0xcc] sm:$0xf]
      %v1849 = vld [vmem:[%s549 + $0xd0] sm:$0xf]
      %v1850 = vld [vmem:[%s549 + $0xd4] sm:$0xf]
      %v1851 = vld [vmem:[%s549 + $0xd8] sm:$0xf]
      %v1852 = vld [vmem:[%s549 + $0xdc] sm:$0xf]
      %v1853 = vld [vmem:[%s549 + $0xe0] sm:$0xf]
      %v1854 = vld [vmem:[%s549 + $0xe4] sm:$0xf]
      %v1855 = vld [vmem:[%s549 + $0xe8] sm:$0xf]
      %v1856 = vld [vmem:[%s549 + $0xec] sm:$0xf]
      %v1857 = vld [vmem:[%s549 + $0xf0] sm:$0xf]
      %v1858 = vld [vmem:[%s549 + $0xf4] sm:$0xf]
      %v1859 = vld [vmem:[%s549 + $0xf8] sm:$0xf]
      %v1860 = vld [vmem:[%s549 + $0xfc] sm:$0xf]
      %1893 = vrot.lane.b32.xlu0 %v1733, 64
      %v1894 = vpop.permute.xlu0 %1893
      %1895 = vrot.lane.b32.xlu0 %v1734, 64
      %v1896 = vpop.permute.xlu0 %1895
      %1897 = vrot.lane.b32.xlu0 %v1735, 64
      %v1898 = vpop.permute.xlu0 %1897
      %1899 = vrot.lane.b32.xlu0 %v1736, 64
      %v1900 = vpop.permute.xlu0 %1899
      %1901 = vrot.lane.b32.xlu0 %v1737, 64
      %v1902 = vpop.permute.xlu0 %1901
      %1903 = vrot.lane.b32.xlu0 %v1738, 64
      %v1904 = vpop.permute.xlu0 %1903
      %1905 = vrot.lane.b32.xlu0 %v1739, 64
      %v1906 = vpop.permute.xlu0 %1905
      %1907 = vrot.lane.b32.xlu0 %v1740, 64
      %v1908 = vpop.permute.xlu0 %1907
      %1909 = vrot.lane.b32.xlu0 %v1741, 64
      %v1910 = vpop.permute.xlu0 %1909
      %1911 = vrot.lane.b32.xlu0 %v1742, 64
      %v1912 = vpop.permute.xlu0 %1911
      %1913 = vrot.lane.b32.xlu0 %v1743, 64
      %v1914 = vpop.permute.xlu0 %1913
      %1915 = vrot.lane.b32.xlu0 %v1744, 64
      %v1916 = vpop.permute.xlu0 %1915
      %1917 = vrot.lane.b32.xlu0 %v1745, 64
      %v1918 = vpop.permute.xlu0 %1917
      %1919 = vrot.lane.b32.xlu0 %v1746, 64
      %v1920 = vpop.permute.xlu0 %1919
      %1921 = vrot.lane.b32.xlu0 %v1747, 64
      %v1922 = vpop.permute.xlu0 %1921
      %1923 = vrot.lane.b32.xlu0 %v1748, 64
      %v1924 = vpop.permute.xlu0 %1923
      %1925 = vrot.lane.b32.xlu0 %v1749, 64
      %v1926 = vpop.permute.xlu0 %1925
      %1927 = vrot.lane.b32.xlu0 %v1750, 64
      %v1928 = vpop.permute.xlu0 %1927
      %1929 = vrot.lane.b32.xlu0 %v1751, 64
      %v1930 = vpop.permute.xlu0 %1929
      %1931 = vrot.lane.b32.xlu0 %v1752, 64
      %v1932 = vpop.permute.xlu0 %1931
      %1933 = vrot.lane.b32.xlu0 %v1753, 64
      %v1934 = vpop.permute.xlu0 %1933
      %1935 = vrot.lane.b32.xlu0 %v1754, 64
      %v1936 = vpop.permute.xlu0 %1935
      %1937 = vrot.lane.b32.xlu0 %v1755, 64
      %v1938 = vpop.permute.xlu0 %1937
      %1939 = vrot.lane.b32.xlu0 %v1756, 64
      %v1940 = vpop.permute.xlu0 %1939
      %1941 = vrot.lane.b32.xlu0 %v1757, 64
      %v1942 = vpop.permute.xlu0 %1941
      %1943 = vrot.lane.b32.xlu0 %v1758, 64
      %v1944 = vpop.permute.xlu0 %1943
      %1945 = vrot.lane.b32.xlu0 %v1759, 64
      %v1946 = vpop.permute.xlu0 %1945
      %1947 = vrot.lane.b32.xlu0 %v1760, 64
      %v1948 = vpop.permute.xlu0 %1947
      %1949 = vrot.lane.b32.xlu0 %v1761, 64
      %v1950 = vpop.permute.xlu0 %1949
      %1951 = vrot.lane.b32.xlu0 %v1762, 64
      %v1952 = vpop.permute.xlu0 %1951
      %1953 = vrot.lane.b32.xlu0 %v1763, 64
      %v1954 = vpop.permute.xlu0 %1953
      %1955 = vrot.lane.b32.xlu0 %v1764, 64
      %v1956 = vpop.permute.xlu0 %1955
      %v2021 = vunpack.c.l.b16 %v1797
      %v2022 = vunpack.c.l.b16 %v1798
      %v2023 = vunpack.c.l.b16 %v1799
      %v2024 = vunpack.c.l.b16 %v1800
      %v2025 = vunpack.c.l.b16 %v1801
      %v2026 = vunpack.c.l.b16 %v1802
      %v2027 = vunpack.c.l.b16 %v1803
      %v2028 = vunpack.c.l.b16 %v1804
      %v2029 = vunpack.c.l.b16 %v1805
      %v2030 = vunpack.c.l.b16 %v1806
      %v2031 = vunpack.c.l.b16 %v1807
      %v2032 = vunpack.c.l.b16 %v1808
      %v2033 = vunpack.c.l.b16 %v1809
      %v2034 = vunpack.c.l.b16 %v1810
      %v2035 = vunpack.c.l.b16 %v1811
      %v2036 = vunpack.c.l.b16 %v1812
      %v2037 = vunpack.c.l.b16 %v1813
      %v2038 = vunpack.c.l.b16 %v1814
      %v2039 = vunpack.c.l.b16 %v1815
      %v2040 = vunpack.c.l.b16 %v1816
      %v2041 = vunpack.c.l.b16 %v1817
      %v2042 = vunpack.c.l.b16 %v1818
      %v2043 = vunpack.c.l.b16 %v1819
      %v2044 = vunpack.c.l.b16 %v1820
      %v2045 = vunpack.c.l.b16 %v1821
      %v2046 = vunpack.c.l.b16 %v1822
      %v2047 = vunpack.c.l.b16 %v1823
      %v2048 = vunpack.c.l.b16 %v1824
      %v2049 = vunpack.c.l.b16 %v1825
      %v2050 = vunpack.c.l.b16 %v1826
      %v2051 = vunpack.c.l.b16 %v1827
      %v2052 = vunpack.c.l.b16 %v1828
      %v2053 = vunpack.c.l.b16 %v1829
      %v2054 = vunpack.c.l.b16 %v1830
      %v2055 = vunpack.c.l.b16 %v1831
      %v2056 = vunpack.c.l.b16 %v1832
      %v2057 = vunpack.c.l.b16 %v1833
      %v2058 = vunpack.c.l.b16 %v1834
      %v2059 = vunpack.c.l.b16 %v1835
      %v2060 = vunpack.c.l.b16 %v1836
      %v2061 = vunpack.c.l.b16 %v1837
      %v2062 = vunpack.c.l.b16 %v1838
      %v2063 = vunpack.c.l.b16 %v1839
      %v2064 = vunpack.c.l.b16 %v1840
      %v2065 = vunpack.c.l.b16 %v1841
      %v2066 = vunpack.c.l.b16 %v1842
      %v2067 = vunpack.c.l.b16 %v1843
      %v2068 = vunpack.c.l.b16 %v1844
      %v2069 = vunpack.c.l.b16 %v1845
      %v2070 = vunpack.c.l.b16 %v1846
      %v2071 = vunpack.c.l.b16 %v1847
      %v2072 = vunpack.c.l.b16 %v1848
      %v2073 = vunpack.c.l.b16 %v1849
      %v2074 = vunpack.c.l.b16 %v1850
      %v2075 = vunpack.c.l.b16 %v1851
      %v2076 = vunpack.c.l.b16 %v1852
      %v2077 = vunpack.c.l.b16 %v1853
      %v2078 = vunpack.c.l.b16 %v1854
      %v2079 = vunpack.c.l.b16 %v1855
      %v2080 = vunpack.c.l.b16 %v1856
      %v2081 = vunpack.c.l.b16 %v1857
      %v2082 = vunpack.c.l.b16 %v1858
      %v2083 = vunpack.c.l.b16 %v1859
      %v2084 = vunpack.c.l.b16 %v1860
      %v2085 = vpack.c.b16 %v2022, %v2021
      %v2086 = vpack.c.b16 %v2024, %v2023
      %v2087 = vpack.c.b16 %v2026, %v2025
      %v2088 = vpack.c.b16 %v2028, %v2027
      %v2089 = vpack.c.b16 %v2030, %v2029
      %v2090 = vpack.c.b16 %v2032, %v2031
      %v2091 = vpack.c.b16 %v2034, %v2033
      %v2092 = vpack.c.b16 %v2036, %v2035
      %v2093 = vpack.c.b16 %v2038, %v2037
      %v2094 = vpack.c.b16 %v2040, %v2039
      %v2095 = vpack.c.b16 %v2042, %v2041
      %v2096 = vpack.c.b16 %v2044, %v2043
      %v2097 = vpack.c.b16 %v2046, %v2045
      %v2098 = vpack.c.b16 %v2048, %v2047
      %v2099 = vpack.c.b16 %v2050, %v2049
      %v2100 = vpack.c.b16 %v2052, %v2051
      %v2101 = vpack.c.b16 %v2054, %v2053
      %v2102 = vpack.c.b16 %v2056, %v2055
      %v2103 = vpack.c.b16 %v2058, %v2057
      %v2104 = vpack.c.b16 %v2060, %v2059
      %v2105 = vpack.c.b16 %v2062, %v2061
      %v2106 = vpack.c.b16 %v2064, %v2063
      %v2107 = vpack.c.b16 %v2066, %v2065
      %v2108 = vpack.c.b16 %v2068, %v2067
      %v2109 = vpack.c.b16 %v2070, %v2069
      %v2110 = vpack.c.b16 %v2072, %v2071
      %v2111 = vpack.c.b16 %v2074, %v2073
      %v2112 = vpack.c.b16 %v2076, %v2075
      %v2113 = vpack.c.b16 %v2078, %v2077
      %v2114 = vpack.c.b16 %v2080, %v2079
      %v2115 = vpack.c.b16 %v2082, %v2081
      %v2116 = vpack.c.b16 %v2084, %v2083
      %2117 = vrot.lane.b32.xlu0 %v2085, 64
      %v2118 = vpop.permute.xlu0 %2117
      %2119 = vrot.lane.b32.xlu0 %v2086, 64
      %v2120 = vpop.permute.xlu0 %2119
      %2121 = vrot.lane.b32.xlu0 %v2087, 64
      %v2122 = vpop.permute.xlu0 %2121
      %2123 = vrot.lane.b32.xlu0 %v2088, 64
      %v2124 = vpop.permute.xlu0 %2123
      %2125 = vrot.lane.b32.xlu0 %v2089, 64
      %v2126 = vpop.permute.xlu0 %2125
      %2127 = vrot.lane.b32.xlu0 %v2090, 64
      %v2128 = vpop.permute.xlu0 %2127
      %2129 = vrot.lane.b32.xlu0 %v2091, 64
      %v2130 = vpop.permute.xlu0 %2129
      %2131 = vrot.lane.b32.xlu0 %v2092, 64
      %v2132 = vpop.permute.xlu0 %2131
      %2133 = vrot.lane.b32.xlu0 %v2093, 64
      %v2134 = vpop.permute.xlu0 %2133
      %2135 = vrot.lane.b32.xlu0 %v2094, 64
      %v2136 = vpop.permute.xlu0 %2135
      %2137 = vrot.lane.b32.xlu0 %v2095, 64
      %v2138 = vpop.permute.xlu0 %2137
      %2139 = vrot.lane.b32.xlu0 %v2096, 64
      %v2140 = vpop.permute.xlu0 %2139
      %2141 = vrot.lane.b32.xlu0 %v2097, 64
      %v2142 = vpop.permute.xlu0 %2141
      %2143 = vrot.lane.b32.xlu0 %v2098, 64
      %v2144 = vpop.permute.xlu0 %2143
      %2145 = vrot.lane.b32.xlu0 %v2099, 64
      %v2146 = vpop.permute.xlu0 %2145
      %2147 = vrot.lane.b32.xlu0 %v2100, 64
      %v2148 = vpop.permute.xlu0 %2147
      %2149 = vrot.lane.b32.xlu0 %v2101, 64
      %v2150 = vpop.permute.xlu0 %2149
      %2151 = vrot.lane.b32.xlu0 %v2102, 64
      %v2152 = vpop.permute.xlu0 %2151
      %2153 = vrot.lane.b32.xlu0 %v2103, 64
      %v2154 = vpop.permute.xlu0 %2153
      %2155 = vrot.lane.b32.xlu0 %v2104, 64
      %v2156 = vpop.permute.xlu0 %2155
      %2157 = vrot.lane.b32.xlu0 %v2105, 64
      %v2158 = vpop.permute.xlu0 %2157
      %2159 = vrot.lane.b32.xlu0 %v2106, 64
      %v2160 = vpop.permute.xlu0 %2159
      %2161 = vrot.lane.b32.xlu0 %v2107, 64
      %v2162 = vpop.permute.xlu0 %2161
      %2163 = vrot.lane.b32.xlu0 %v2108, 64
      %v2164 = vpop.permute.xlu0 %2163
      %2165 = vrot.lane.b32.xlu0 %v2109, 64
      %v2166 = vpop.permute.xlu0 %2165
      %2167 = vrot.lane.b32.xlu0 %v2110, 64
      %v2168 = vpop.permute.xlu0 %2167
      %2169 = vrot.lane.b32.xlu0 %v2111, 64
      %v2170 = vpop.permute.xlu0 %2169
      %2171 = vrot.lane.b32.xlu0 %v2112, 64
      %v2172 = vpop.permute.xlu0 %2171
      %2173 = vrot.lane.b32.xlu0 %v2113, 64
      %v2174 = vpop.permute.xlu0 %2173
      %2175 = vrot.lane.b32.xlu0 %v2114, 64
      %v2176 = vpop.permute.xlu0 %2175
      %2177 = vrot.lane.b32.xlu0 %v2115, 64
      %v2178 = vpop.permute.xlu0 %2177
      %2179 = vrot.lane.b32.xlu0 %v2116, 64
      %v2180 = vpop.permute.xlu0 %2179
      %v2183 = vsel %vm1504, %v1701, %v1894
      %v2187 = vsel %vm1504, %v1702, %v1896
      %v2191 = vsel %vm1504, %v1703, %v1898
      %v2195 = vsel %vm1504, %v1704, %v1900
      %v2199 = vsel %vm1504, %v1705, %v1902
      %v2203 = vsel %vm1504, %v1706, %v1904
      %v2207 = vsel %vm1504, %v1707, %v1906
      %v2211 = vsel %vm1504, %v1708, %v1908
      %v2215 = vsel %vm1504, %v1709, %v1910
      %v2219 = vsel %vm1504, %v1710, %v1912
      %v2223 = vsel %vm1504, %v1711, %v1914
      %v2227 = vsel %vm1504, %v1712, %v1916
      %v2231 = vsel %vm1504, %v1713, %v1918
      %v2235 = vsel %vm1504, %v1714, %v1920
      %v2239 = vsel %vm1504, %v1715, %v1922
      %v2243 = vsel %vm1504, %v1716, %v1924
      %v2247 = vsel %vm1504, %v1717, %v1926
      %v2251 = vsel %vm1504, %v1718, %v1928
      %v2255 = vsel %vm1504, %v1719, %v1930
      %v2259 = vsel %vm1504, %v1720, %v1932
      %v2263 = vsel %vm1504, %v1721, %v1934
      %v2267 = vsel %vm1504, %v1722, %v1936
      %v2271 = vsel %vm1504, %v1723, %v1938
      %v2275 = vsel %vm1504, %v1724, %v1940
      %v2279 = vsel %vm1504, %v1725, %v1942
      %v2283 = vsel %vm1504, %v1726, %v1944
      %v2287 = vsel %vm1504, %v1727, %v1946
      %v2291 = vsel %vm1504, %v1728, %v1948
      %v2295 = vsel %vm1504, %v1729, %v1950
      %v2299 = vsel %vm1504, %v1730, %v1952
      %v2303 = vsel %vm1504, %v1731, %v1954
      %v2307 = vsel %vm1504, %v1732, %v1956
      %v2311 = vsel %vm1504, %v1765, %v2118
      %v2314 = vsel %vm1504, %v1766, %v2120
      %v2317 = vsel %vm1504, %v1767, %v2122
      %v2320 = vsel %vm1504, %v1768, %v2124
      %v2323 = vsel %vm1504, %v1769, %v2126
      %v2326 = vsel %vm1504, %v1770, %v2128
      %v2329 = vsel %vm1504, %v1771, %v2130
      %v2332 = vsel %vm1504, %v1772, %v2132
      %v2335 = vsel %vm1504, %v1773, %v2134
      %v2338 = vsel %vm1504, %v1774, %v2136
      %v2341 = vsel %vm1504, %v1775, %v2138
      %v2344 = vsel %vm1504, %v1776, %v2140
      %v2347 = vsel %vm1504, %v1777, %v2142
      %v2350 = vsel %vm1504, %v1778, %v2144
      %v2353 = vsel %vm1504, %v1779, %v2146
      %v2356 = vsel %vm1504, %v1780, %v2148
      %v2359 = vsel %vm1504, %v1781, %v2150
      %v2362 = vsel %vm1504, %v1782, %v2152
      %v2365 = vsel %vm1504, %v1783, %v2154
      %v2368 = vsel %vm1504, %v1784, %v2156
      %v2371 = vsel %vm1504, %v1785, %v2158
      %v2374 = vsel %vm1504, %v1786, %v2160
      %v2377 = vsel %vm1504, %v1787, %v2162
      %v2380 = vsel %vm1504, %v1788, %v2164
      %v2383 = vsel %vm1504, %v1789, %v2166
      %v2386 = vsel %vm1504, %v1790, %v2168
      %v2389 = vsel %vm1504, %v1791, %v2170
      %v2392 = vsel %vm1504, %v1792, %v2172
      %v2395 = vsel %vm1504, %v1793, %v2174
      %v2398 = vsel %vm1504, %v1794, %v2176
      %v2401 = vsel %vm1504, %v1795, %v2178
      %v2404 = vsel %vm1504, %v1796, %v2180
      %v2405 = vld [vmem:[%s561] sm:$0xf]
      %v2406 = vld [vmem:[%s561 + $0x4] sm:$0xf]
      %v2407 = vld [vmem:[%s561 + $0x8] sm:$0xf]
      %v2408 = vld [vmem:[%s561 + $0xc] sm:$0xf]
      %v2409 = vld [vmem:[%s561 + $0x10] sm:$0xf]
      %v2410 = vld [vmem:[%s561 + $0x14] sm:$0xf]
      %v2411 = vld [vmem:[%s561 + $0x18] sm:$0xf]
      %v2412 = vld [vmem:[%s561 + $0x1c] sm:$0xf]
      %v2413 = vld [vmem:[%s561 + $0x20] sm:$0xf]
      %v2414 = vld [vmem:[%s561 + $0x24] sm:$0xf]
      %v2415 = vld [vmem:[%s561 + $0x28] sm:$0xf]
      %v2416 = vld [vmem:[%s561 + $0x2c] sm:$0xf]
      %v2417 = vld [vmem:[%s561 + $0x30] sm:$0xf]
      %v2418 = vld [vmem:[%s561 + $0x34] sm:$0xf]
      %v2419 = vld [vmem:[%s561 + $0x38] sm:$0xf]
      %v2420 = vld [vmem:[%s561 + $0x3c] sm:$0xf]
      %v2421 = vld [vmem:[%s561 + $0x40] sm:$0xf]
      %v2422 = vld [vmem:[%s561 + $0x44] sm:$0xf]
      %v2423 = vld [vmem:[%s561 + $0x48] sm:$0xf]
      %v2424 = vld [vmem:[%s561 + $0x4c] sm:$0xf]
      %v2425 = vld [vmem:[%s561 + $0x50] sm:$0xf]
      %v2426 = vld [vmem:[%s561 + $0x54] sm:$0xf]
      %v2427 = vld [vmem:[%s561 + $0x58] sm:$0xf]
      %v2428 = vld [vmem:[%s561 + $0x5c] sm:$0xf]
      %v2429 = vld [vmem:[%s561 + $0x60] sm:$0xf]
      %v2430 = vld [vmem:[%s564] sm:$0x1]
      %v2432 = vlaneseq
      %v2433 = vshrl.u32 %v2432, 7
      %v2434 = vsub.s32 0, %v2433
      %v2435 = vrot.slane %v2430, %v2434
      %v2462 = vunpack.c.l.b16 %v2405
      %v2463 = vunpack.c.l.b16 %v2406
      %v2464 = vunpack.c.l.b16 %v2407
      %v2465 = vunpack.c.l.b16 %v2408
      %v2466 = vunpack.c.l.b16 %v2409
      %v2467 = vunpack.c.l.b16 %v2410
      %v2468 = vunpack.c.l.b16 %v2411
      %v2469 = vunpack.c.l.b16 %v2412
      %v2470 = vunpack.c.l.b16 %v2413
      %v2471 = vunpack.c.l.b16 %v2414
      %v2472 = vunpack.c.l.b16 %v2415
      %v2473 = vunpack.c.l.b16 %v2416
      %v2474 = vunpack.c.l.b16 %v2417
      %v2475 = vunpack.c.l.b16 %v2418
      %v2476 = vunpack.c.l.b16 %v2419
      %v2477 = vunpack.c.l.b16 %v2420
      %v2478 = vunpack.c.l.b16 %v2421
      %v2479 = vunpack.c.l.b16 %v2422
      %v2480 = vunpack.c.l.b16 %v2423
      %v2481 = vunpack.c.l.b16 %v2424
      %v2482 = vunpack.c.l.b16 %v2425
      %v2483 = vunpack.c.l.b16 %v2426
      %v2484 = vunpack.c.l.b16 %v2427
      %v2485 = vunpack.c.l.b16 %v2428
      %v2486 = vunpack.c.l.b16 %v2429
      %v2487 = vpack.c.b16 %v2463, %v2462
      %v2488 = vpack.c.b16 %v2465, %v2464
      %v2489 = vpack.c.b16 %v2467, %v2466
      %v2490 = vpack.c.b16 %v2469, %v2468
      %v2491 = vpack.c.b16 %v2471, %v2470
      %v2492 = vpack.c.b16 %v2473, %v2472
      %v2493 = vpack.c.b16 %v2475, %v2474
      %v2494 = vpack.c.b16 %v2477, %v2476
      %v2495 = vpack.c.b16 %v2479, %v2478
      %v2496 = vpack.c.b16 %v2481, %v2480
      %v2497 = vpack.c.b16 %v2483, %v2482
      %v2498 = vpack.c.b16 %v2485, %v2484
      %v2499 = vpack.c.b16 %v2486, %v2486
      %vm2512 = vcmask 588800
      %v2513 = vsel %vm2512, %v2311, 0
      %v2515 = vsel %vm2512, %v2314, 0
      %v2517 = vsel %vm2512, %v2317, 0
      %v2519 = vsel %vm2512, %v2320, 0
      %v2521 = vsel %vm2512, %v2323, 0
      %v2523 = vsel %vm2512, %v2326, 0
      %v2525 = vsel %vm2512, %v2329, 0
      %v2527 = vsel %vm2512, %v2332, 0
      %v2529 = vsel %vm2512, %v2335, 0
      %v2531 = vsel %vm2512, %v2338, 0
      %v2533 = vsel %vm2512, %v2341, 0
      %v2535 = vsel %vm2512, %v2344, 0
      %v2537 = vsel %vm2512, %v2347, 0
      %v2539 = vsel %vm2512, %v2350, 0
      %v2541 = vsel %vm2512, %v2353, 0
      %v2543 = vsel %vm2512, %v2356, 0
      %v2545 = vsel %vm2512, %v2359, 0
      %v2547 = vsel %vm2512, %v2362, 0
      %v2549 = vsel %vm2512, %v2365, 0
      %v2551 = vsel %vm2512, %v2368, 0
      %v2553 = vsel %vm2512, %v2371, 0
      %v2555 = vsel %vm2512, %v2374, 0
      %v2557 = vsel %vm2512, %v2377, 0
      %v2559 = vsel %vm2512, %v2380, 0
      %v2561 = vsel %vm2512, %v2383, 0
      %v2563 = vsel %vm2512, %v2386, 0
      %v2565 = vsel %vm2512, %v2389, 0
      %v2567 = vsel %vm2512, %v2392, 0
      %v2569 = vsel %vm2512, %v2395, 0
      %v2571 = vsel %vm2512, %v2398, 0
      %v2573 = vsel %vm2512, %v2401, 0
      %v2575 = vsel %vm2512, %v2404, 0
      %vm2577 = vcmask 1043456
      %v2579 = vsel %vm2577, %v2499, 0
      %2581 = vmatprep.subr.bf16.mxu0 0
      %2582 = vmatpush1.bf16.msra.mxu0 %v2487
      %2583 = vmatprep.subr.bf16.mxu0 0
      %2584 = vmatpush1.bf16.msra.mxu0 %v2488
      %2585 = vmatprep.subr.bf16.mxu0 0
      %2586 = vmatpush1.bf16.msra.mxu0 %v2489
      %2587 = vmatprep.subr.bf16.mxu0 0
      %2588 = vmatpush1.bf16.msra.mxu0 %v2490
      %2589 = vmatprep.subr.bf16.mxu0 0
      %2590 = vmatpush1.bf16.msra.mxu0 %v2491
      %2591 = vmatprep.subr.bf16.mxu0 0
      %2592 = vmatpush1.bf16.msra.mxu0 %v2492
      %2593 = vmatprep.subr.bf16.mxu0 0
      %2594 = vmatpush1.bf16.msra.mxu0 %v2493
      %2595 = vmatprep.subr.bf16.mxu0 0
      %2596 = vmatpush1.bf16.msra.mxu0 %v2494
      %2597 = vmatprep.subr.bf16.mxu0 0
      %2598 = vmatpush1.bf16.msra.mxu0 %v2495
      %2599 = vmatprep.subr.bf16.mxu0 0
      %2600 = vmatpush1.bf16.msra.mxu0 %v2496
      %2601 = vmatprep.subr.bf16.mxu0 0
      %2602 = vmatpush1.bf16.msra.mxu0 %v2497
      %2603 = vmatprep.subr.bf16.mxu0 0
      %2604 = vmatpush1.bf16.msra.mxu0 %v2498
      %2605 = vmatprep.subr.bf16.mxu0 0
      %2606 = vmatpush1.bf16.msra.mxu0 %v2579
      %2607 = vmatprep.subr.bf16.mxu0 0
      %2608 = vmatpush1.bf16.msra.mxu0 0
      %2609 = vmatprep.subr.bf16.mxu0 0
      %2610 = vmatpush1.bf16.msra.mxu0 0
      %2611 = vmatprep.subr.bf16.mxu0 0
      %2612 = vmatpush1.bf16.msra.mxu0 0
      %2613 = vmatprep.mubr.bf16.mxu0 %v2513
      %2614 = vmatmul.mubr.bf16.gmra.mrb[0].mxu0 %v2183
      %v2615 = vpop.f32.mrb[0].mxu0
      %v2616 = vadd.f32 %v2435, %v2615
      %v2617 = vpop.f32.mrb[0].mxu0
      %v2618 = vpop.f32.mrb[0].mxu0
      %v2619 = vadd.f32 %v2435, %v2618
      %v2620 = vpop.f32.mrb[0].mxu0
      %2621 = vmatprep.mubr.bf16.mxu0 %v2515
      %2622 = vmatmul.mubr.bf16.gmra.mrb[0].mxu0 %v2187
      %v2623 = vpop.f32.mrb[0].mxu0
      %v2624 = vadd.f32 %v2435, %v2623
      %v2625 = vpop.f32.mrb[0].mxu0
      %v2626 = vpop.f32.mrb[0].mxu0
      %v2627 = vadd.f32 %v2435, %v2626
      %v2628 = vpop.f32.mrb[0].mxu0
      %2629 = vmatprep.mubr.bf16.mxu0 %v2517
      %2630 = vmatmul.mubr.bf16.gmra.mrb[0].mxu0 %v2191
      %v2631 = vpop.f32.mrb[0].mxu0
      %v2632 = vadd.f32 %v2435, %v2631
      %v2633 = vpop.f32.mrb[0].mxu0
      %v2634 = vpop.f32.mrb[0].mxu0
      %v2635 = vadd.f32 %v2435, %v2634
      %v2636 = vpop.f32.mrb[0].mxu0
      %2637 = vmatprep.mubr.bf16.mxu0 %v2519
      %2638 = vmatmul.mubr.bf16.gmra.mrb[0].mxu0 %v2195
      %v2639 = vpop.f32.mrb[0].mxu0
      %v2640 = vadd.f32 %v2435, %v2639
      %v2641 = vpop.f32.mrb[0].mxu0
      %v2642 = vpop.f32.mrb[0].mxu0
      %v2643 = vadd.f32 %v2435, %v2642
      %v2644 = vpop.f32.mrb[0].mxu0
      %2645 = vmatprep.mubr.bf16.mxu0 %v2521
      %2646 = vmatmul.mubr.bf16.gmra.mrb[0].mxu0 %v2199
      %v2647 = vpop.f32.mrb[0].mxu0
      %v2648 = vadd.f32 %v2435, %v2647
      %v2649 = vpop.f32.mrb[0].mxu0
      %v2650 = vpop.f32.mrb[0].mxu0
      %v2651 = vadd.f32 %v2435, %v2650
      %v2652 = vpop.f32.mrb[0].mxu0
      %2653 = vmatprep.mubr.bf16.mxu0 %v2523
      %2654 = vmatmul.mubr.bf16.gmra.mrb[0].mxu0 %v2203
      %v2655 = vpop.f32.mrb[0].mxu0
      %v2656 = vadd.f32 %v2435, %v2655
      %v2657 = vpop.f32.mrb[0].mxu0
      %v2658 = vpop.f32.mrb[0].mxu0
      %v2659 = vadd.f32 %v2435, %v2658
      %v2660 = vpop.f32.mrb[0].mxu0
      %2661 = vmatprep.mubr.bf16.mxu0 %v2525
      %2662 = vmatmul.mubr.bf16.gmra.mrb[0].mxu0 %v2207
      %v2663 = vpop.f32.mrb[0].mxu0
      %v2664 = vadd.f32 %v2435, %v2663
      %v2665 = vpop.f32.mrb[0].mxu0
      %v2666 = vpop.f32.mrb[0].mxu0
      %v2667 = vadd.f32 %v2435, %v2666
      %v2668 = vpop.f32.mrb[0].mxu0
      %2669 = vmatprep.mubr.bf16.mxu0 %v2527
      %2670 = vmatmul.mubr.bf16.gmra.mrb[0].mxu0 %v2211
      %v2671 = vpop.f32.mrb[0].mxu0
      %v2672 = vadd.f32 %v2435, %v2671
      %v2673 = vpop.f32.mrb[0].mxu0
      %v2674 = vpop.f32.mrb[0].mxu0
      %v2675 = vadd.f32 %v2435, %v2674
      %v2676 = vpop.f32.mrb[0].mxu0
      %2677 = vmatprep.mubr.bf16.mxu0 %v2529
      %2678 = vmatmul.mubr.bf16.gmra.mrb[0].mxu0 %v2215
      %v2679 = vpop.f32.mrb[0].mxu0
      %v2680 = vadd.f32 %v2435, %v2679
      %v2681 = vpop.f32.mrb[0].mxu0
      %v2682 = vpop.f32.mrb[0].mxu0
      %v2683 = vadd.f32 %v2435, %v2682
      %v2684 = vpop.f32.mrb[0].mxu0
      %2685 = vmatprep.mubr.bf16.mxu0 %v2531
      %2686 = vmatmul.mubr.bf16.gmra.mrb[0].mxu0 %v2219
      %v2687 = vpop.f32.mrb[0].mxu0
      %v2688 = vadd.f32 %v2435, %v2687
      %v2689 = vpop.f32.mrb[0].mxu0
      %v2690 = vpop.f32.mrb[0].mxu0
      %v2691 = vadd.f32 %v2435, %v2690
      %v2692 = vpop.f32.mrb[0].mxu0
      %2693 = vmatprep.mubr.bf16.mxu0 %v2533
      %2694 = vmatmul.mubr.bf16.gmra.mrb[0].mxu0 %v2223
      %v2695 = vpop.f32.mrb[0].mxu0
      %v2696 = vadd.f32 %v2435, %v2695
      %v2697 = vpop.f32.mrb[0].mxu0
      %v2698 = vpop.f32.mrb[0].mxu0
      %v2699 = vadd.f32 %v2435, %v2698
      %v2700 = vpop.f32.mrb[0].mxu0
      %2701 = vmatprep.mubr.bf16.mxu0 %v2535
      %2702 = vmatmul.mubr.bf16.gmra.mrb[0].mxu0 %v2227
      %v2703 = vpop.f32.mrb[0].mxu0
      %v2704 = vadd.f32 %v2435, %v2703
      %v2705 = vpop.f32.mrb[0].mxu0
      %v2706 = vpop.f32.mrb[0].mxu0
      %v2707 = vadd.f32 %v2435, %v2706
      %v2708 = vpop.f32.mrb[0].mxu0
      %2709 = vmatprep.mubr.bf16.mxu0 %v2537
      %2710 = vmatmul.mubr.bf16.gmra.mrb[0].mxu0 %v2231
      %v2711 = vpop.f32.mrb[0].mxu0
      %v2712 = vadd.f32 %v2435, %v2711
      %v2713 = vpop.f32.mrb[0].mxu0
      %v2714 = vpop.f32.mrb[0].mxu0
      %v2715 = vadd.f32 %v2435, %v2714
      %v2716 = vpop.f32.mrb[0].mxu0
      %2717 = vmatprep.mubr.bf16.mxu0 %v2539
      %2718 = vmatmul.mubr.bf16.gmra.mrb[0].mxu0 %v2235
      %v2719 = vpop.f32.mrb[0].mxu0
      %v2720 = vadd.f32 %v2435, %v2719
      %v2721 = vpop.f32.mrb[0].mxu0
      %v2722 = vpop.f32.mrb[0].mxu0
      %v2723 = vadd.f32 %v2435, %v2722
      %v2724 = vpop.f32.mrb[0].mxu0
      %2725 = vmatprep.mubr.bf16.mxu0 %v2541
      %2726 = vmatmul.mubr.bf16.gmra.mrb[0].mxu0 %v2239
      %v2727 = vpop.f32.mrb[0].mxu0
      %v2728 = vadd.f32 %v2435, %v2727
      %v2729 = vpop.f32.mrb[0].mxu0
      %v2730 = vpop.f32.mrb[0].mxu0
      %v2731 = vadd.f32 %v2435, %v2730
      %v2732 = vpop.f32.mrb[0].mxu0
      %2733 = vmatprep.mubr.bf16.mxu0 %v2543
      %2734 = vmatmul.mubr.bf16.gmra.mrb[0].mxu0 %v2243
      %v2735 = vpop.f32.mrb[0].mxu0
      %v2736 = vadd.f32 %v2435, %v2735
      %v2737 = vpop.f32.mrb[0].mxu0
      %v2738 = vpop.f32.mrb[0].mxu0
      %v2739 = vadd.f32 %v2435, %v2738
      %v2740 = vpop.f32.mrb[0].mxu0
      %2741 = vmatprep.mubr.bf16.mxu0 %v2545
      %2742 = vmatmul.mubr.bf16.gmra.mrb[0].mxu0 %v2247
      %v2743 = vpop.f32.mrb[0].mxu0
      %v2744 = vadd.f32 %v2435, %v2743
      %v2745 = vpop.f32.mrb[0].mxu0
      %v2746 = vpop.f32.mrb[0].mxu0
      %v2747 = vadd.f32 %v2435, %v2746
      %v2748 = vpop.f32.mrb[0].mxu0
      %2749 = vmatprep.mubr.bf16.mxu0 %v2547
      %2750 = vmatmul.mubr.bf16.gmra.mrb[0].mxu0 %v2251
      %v2751 = vpop.f32.mrb[0].mxu0
      %v2752 = vadd.f32 %v2435, %v2751
      %v2753 = vpop.f32.mrb[0].mxu0
      %v2754 = vpop.f32.mrb[0].mxu0
      %v2755 = vadd.f32 %v2435, %v2754
      %v2756 = vpop.f32.mrb[0].mxu0
      %2757 = vmatprep.mubr.bf16.mxu0 %v2549
      %2758 = vmatmul.mubr.bf16.gmra.mrb[0].mxu0 %v2255
      %v2759 = vpop.f32.mrb[0].mxu0
      %v2760 = vadd.f32 %v2435, %v2759
      %v2761 = vpop.f32.mrb[0].mxu0
      %v2762 = vpop.f32.mrb[0].mxu0
      %v2763 = vadd.f32 %v2435, %v2762
      %v2764 = vpop.f32.mrb[0].mxu0
      %2765 = vmatprep.mubr.bf16.mxu0 %v2551
      %2766 = vmatmul.mubr.bf16.gmra.mrb[0].mxu0 %v2259
      %v2767 = vpop.f32.mrb[0].mxu0
      %v2768 = vadd.f32 %v2435, %v2767
      %v2769 = vpop.f32.mrb[0].mxu0
      %v2770 = vpop.f32.mrb[0].mxu0
      %v2771 = vadd.f32 %v2435, %v2770
      %v2772 = vpop.f32.mrb[0].mxu0
      %2773 = vmatprep.mubr.bf16.mxu0 %v2553
      %2774 = vmatmul.mubr.bf16.gmra.mrb[0].mxu0 %v2263
      %v2775 = vpop.f32.mrb[0].mxu0
      %v2776 = vadd.f32 %v2435, %v2775
      %v2777 = vpop.f32.mrb[0].mxu0
      %v2778 = vpop.f32.mrb[0].mxu0
      %v2779 = vadd.f32 %v2435, %v2778
      %v2780 = vpop.f32.mrb[0].mxu0
      %2781 = vmatprep.mubr.bf16.mxu0 %v2555
      %2782 = vmatmul.mubr.bf16.gmra.mrb[0].mxu0 %v2267
      %v2783 = vpop.f32.mrb[0].mxu0
      %v2784 = vadd.f32 %v2435, %v2783
      %v2785 = vpop.f32.mrb[0].mxu0
      %v2786 = vpop.f32.mrb[0].mxu0
      %v2787 = vadd.f32 %v2435, %v2786
      %v2788 = vpop.f32.mrb[0].mxu0
      %2789 = vmatprep.mubr.bf16.mxu0 %v2557
      %2790 = vmatmul.mubr.bf16.gmra.mrb[0].mxu0 %v2271
      %v2791 = vpop.f32.mrb[0].mxu0
      %v2792 = vadd.f32 %v2435, %v2791
      %v2793 = vpop.f32.mrb[0].mxu0
      %v2794 = vpop.f32.mrb[0].mxu0
      %v2795 = vadd.f32 %v2435, %v2794
      %v2796 = vpop.f32.mrb[0].mxu0
      %2797 = vmatprep.mubr.bf16.mxu0 %v2559
      %2798 = vmatmul.mubr.bf16.gmra.mrb[0].mxu0 %v2275
      %v2799 = vpop.f32.mrb[0].mxu0
      %v2800 = vadd.f32 %v2435, %v2799
      %v2801 = vpop.f32.mrb[0].mxu0
      %v2802 = vpop.f32.mrb[0].mxu0
      %v2803 = vadd.f32 %v2435, %v2802
      %v2804 = vpop.f32.mrb[0].mxu0
      %2805 = vmatprep.mubr.bf16.mxu0 %v2561
      %2806 = vmatmul.mubr.bf16.gmra.mrb[0].mxu0 %v2279
      %v2807 = vpop.f32.mrb[0].mxu0
      %v2808 = vadd.f32 %v2435, %v2807
      %v2809 = vpop.f32.mrb[0].mxu0
      %v2810 = vpop.f32.mrb[0].mxu0
      %v2811 = vadd.f32 %v2435, %v2810
      %v2812 = vpop.f32.mrb[0].mxu0
      %2813 = vmatprep.mubr.bf16.mxu0 %v2563
      %2814 = vmatmul.mubr.bf16.gmra.mrb[0].mxu0 %v2283
      %v2815 = vpop.f32.mrb[0].mxu0
      %v2816 = vadd.f32 %v2435, %v2815
      %v2817 = vpop.f32.mrb[0].mxu0
      %v2818 = vpop.f32.mrb[0].mxu0
      %v2819 = vadd.f32 %v2435, %v2818
      %v2820 = vpop.f32.mrb[0].mxu0
      %2821 = vmatprep.mubr.bf16.mxu0 %v2565
      %2822 = vmatmul.mubr.bf16.gmra.mrb[0].mxu0 %v2287
      %v2823 = vpop.f32.mrb[0].mxu0
      %v2824 = vadd.f32 %v2435, %v2823
      %v2825 = vpop.f32.mrb[0].mxu0
      %v2826 = vpop.f32.mrb[0].mxu0
      %v2827 = vadd.f32 %v2435, %v2826
      %v2828 = vpop.f32.mrb[0].mxu0
      %2829 = vmatprep.mubr.bf16.mxu0 %v2567
      %2830 = vmatmul.mubr.bf16.gmra.mrb[0].mxu0 %v2291
      %v2831 = vpop.f32.mrb[0].mxu0
      %v2832 = vadd.f32 %v2435, %v2831
      %v2833 = vpop.f32.mrb[0].mxu0
      %v2834 = vpop.f32.mrb[0].mxu0
      %v2835 = vadd.f32 %v2435, %v2834
      %v2836 = vpop.f32.mrb[0].mxu0
      %2837 = vmatprep.mubr.bf16.mxu0 %v2569
      %2838 = vmatmul.mubr.bf16.gmra.mrb[0].mxu0 %v2295
      %v2839 = vpop.f32.mrb[0].mxu0
      %v2840 = vadd.f32 %v2435, %v2839
      %v2841 = vpop.f32.mrb[0].mxu0
      %v2842 = vpop.f32.mrb[0].mxu0
      %v2843 = vadd.f32 %v2435, %v2842
      %v2844 = vpop.f32.mrb[0].mxu0
      %2845 = vmatprep.mubr.bf16.mxu0 %v2571
      %2846 = vmatmul.mubr.bf16.gmra.mrb[0].mxu0 %v2299
      %v2847 = vpop.f32.mrb[0].mxu0
      %v2848 = vadd.f32 %v2435, %v2847
      %v2849 = vpop.f32.mrb[0].mxu0
      %v2850 = vpop.f32.mrb[0].mxu0
      %v2851 = vadd.f32 %v2435, %v2850
      %v2852 = vpop.f32.mrb[0].mxu0
      %2853 = vmatprep.mubr.bf16.mxu0 %v2573
      %2854 = vmatmul.mubr.bf16.gmra.mrb[0].mxu0 %v2303
      %v2855 = vpop.f32.mrb[0].mxu0
      %v2856 = vadd.f32 %v2435, %v2855
      %v2857 = vpop.f32.mrb[0].mxu0
      %v2858 = vpop.f32.mrb[0].mxu0
      %v2859 = vadd.f32 %v2435, %v2858
      %v2860 = vpop.f32.mrb[0].mxu0
      %2861 = vmatprep.mubr.bf16.mxu0 %v2575
      %2862 = vmatmul.mubr.bf16.gmra.mrb[0].mxu0 %v2307
      %v2863 = vpop.f32.mrb[0].mxu0
      %v2864 = vadd.f32 %v2435, %v2863
      %v2865 = vpop.f32.mrb[0].mxu0
      %v2866 = vpop.f32.mrb[0].mxu0
      %v2867 = vadd.f32 %v2435, %v2866
      %v2868 = vpop.f32.mrb[0].mxu0
      %2869 = vdwg.mxu0
      %v2870 = vxor.u32 %v2616, 2147483648
      %v2871 = vxor.u32 %v2619, 2147483648
      %v2872 = vxor.u32 %v2624, 2147483648
      %v2873 = vxor.u32 %v2627, 2147483648
      %v2874 = vxor.u32 %v2632, 2147483648
      %v2875 = vxor.u32 %v2635, 2147483648
      %v2876 = vxor.u32 %v2640, 2147483648
      %v2877 = vxor.u32 %v2643, 2147483648
      %v2878 = vxor.u32 %v2648, 2147483648
      %v2879 = vxor.u32 %v2651, 2147483648
      %v2880 = vxor.u32 %v2656, 2147483648
      %v2881 = vxor.u32 %v2659, 2147483648
      %v2882 = vxor.u32 %v2664, 2147483648
      %v2883 = vxor.u32 %v2667, 2147483648
      %v2884 = vxor.u32 %v2672, 2147483648
      %v2885 = vxor.u32 %v2675, 2147483648
      %v2886 = vxor.u32 %v2680, 2147483648
      %v2887 = vxor.u32 %v2683, 2147483648
      %v2888 = vxor.u32 %v2688, 2147483648
      %v2889 = vxor.u32 %v2691, 2147483648
      %v2890 = vxor.u32 %v2696, 2147483648
      %v2891 = vxor.u32 %v2699, 2147483648
      %v2892 = vxor.u32 %v2704, 2147483648
      %v2893 = vxor.u32 %v2707, 2147483648
      %v2894 = vxor.u32 %v2712, 2147483648
      %v2895 = vxor.u32 %v2715, 2147483648
      %v2896 = vxor.u32 %v2720, 2147483648
      %v2897 = vxor.u32 %v2723, 2147483648
      %v2898 = vxor.u32 %v2728, 2147483648
      %v2899 = vxor.u32 %v2731, 2147483648
      %v2900 = vxor.u32 %v2736, 2147483648
      %v2901 = vxor.u32 %v2739, 2147483648
      %v2902 = vxor.u32 %v2744, 2147483648
      %v2903 = vxor.u32 %v2747, 2147483648
      %v2904 = vxor.u32 %v2752, 2147483648
      %v2905 = vxor.u32 %v2755, 2147483648
      %v2906 = vxor.u32 %v2760, 2147483648
      %v2907 = vxor.u32 %v2763, 2147483648
      %v2908 = vxor.u32 %v2768, 2147483648
      %v2909 = vxor.u32 %v2771, 2147483648
      %v2910 = vxor.u32 %v2776, 2147483648
      %v2911 = vxor.u32 %v2779, 2147483648
      %v2912 = vxor.u32 %v2784, 2147483648
      %v2913 = vxor.u32 %v2787, 2147483648
      %v2914 = vxor.u32 %v2792, 2147483648
      %v2915 = vxor.u32 %v2795, 2147483648
      %v2916 = vxor.u32 %v2800, 2147483648
      %v2917 = vxor.u32 %v2803, 2147483648
      %v2918 = vxor.u32 %v2808, 2147483648
      %v2919 = vxor.u32 %v2811, 2147483648
      %v2920 = vxor.u32 %v2816, 2147483648
      %v2921 = vxor.u32 %v2819, 2147483648
      %v2922 = vxor.u32 %v2824, 2147483648
      %v2923 = vxor.u32 %v2827, 2147483648
      %v2924 = vxor.u32 %v2832, 2147483648
      %v2925 = vxor.u32 %v2835, 2147483648
      %v2926 = vxor.u32 %v2840, 2147483648
      %v2927 = vxor.u32 %v2843, 2147483648
      %v2928 = vxor.u32 %v2848, 2147483648
      %v2929 = vxor.u32 %v2851, 2147483648
      %v2930 = vxor.u32 %v2856, 2147483648
      %v2931 = vxor.u32 %v2859, 2147483648
      %v2932 = vxor.u32 %v2864, 2147483648
      %v2933 = vxor.u32 %v2867, 2147483648
      %v2934 = vmul.f32 %v2870, 1.442695
      %v2935 = vpow.pop %v2934
      %v2936 = vmul.f32 %v2871, 1.442695
      %v2937 = vpow.pop %v2936
      %v2938 = vmul.f32 %v2872, 1.442695
      %v2939 = vpow.pop %v2938
      %v2940 = vmul.f32 %v2873, 1.442695
      %v2941 = vpow.pop %v2940
      %v2942 = vmul.f32 %v2874, 1.442695
      %v2943 = vpow.pop %v2942
      %v2944 = vmul.f32 %v2875, 1.442695
      %v2945 = vpow.pop %v2944
      %v2946 = vmul.f32 %v2876, 1.442695
      %v2947 = vpow.pop %v2946
      %v2948 = vmul.f32 %v2877, 1.442695
      %v2949 = vpow.pop %v2948
      %v2950 = vmul.f32 %v2878, 1.442695
      %v2951 = vpow.pop %v2950
      %v2952 = vmul.f32 %v2879, 1.442695
      %v2953 = vpow.pop %v2952
      %v2954 = vmul.f32 %v2880, 1.442695
      %v2955 = vpow.pop %v2954
      %v2956 = vmul.f32 %v2881, 1.442695
      %v2957 = vpow.pop %v2956
      %v2958 = vmul.f32 %v2882, 1.442695
      %v2959 = vpow.pop %v2958
      %v2960 = vmul.f32 %v2883, 1.442695
      %v2961 = vpow.pop %v2960
      %v2962 = vmul.f32 %v2884, 1.442695
      %v2963 = vpow.pop %v2962
      %v2964 = vmul.f32 %v2885, 1.442695
      %v2965 = vpow.pop %v2964
      %v2966 = vmul.f32 %v2886, 1.442695
      %v2967 = vpow.pop %v2966
      %v2968 = vmul.f32 %v2887, 1.442695
      %v2969 = vpow.pop %v2968
      %v2970 = vmul.f32 %v2888, 1.442695
      %v2971 = vpow.pop %v2970
      %v2972 = vmul.f32 %v2889, 1.442695
      %v2973 = vpow.pop %v2972
      %v2974 = vmul.f32 %v2890, 1.442695
      %v2975 = vpow.pop %v2974
      %v2976 = vmul.f32 %v2891, 1.442695
      %v2977 = vpow.pop %v2976
      %v2978 = vmul.f32 %v2892, 1.442695
      %v2979 = vpow.pop %v2978
      %v2980 = vmul.f32 %v2893, 1.442695
      %v2981 = vpow.pop %v2980
      %v2982 = vmul.f32 %v2894, 1.442695
      %v2983 = vpow.pop %v2982
      %v2984 = vmul.f32 %v2895, 1.442695
      %v2985 = vpow.pop %v2984
      %v2986 = vmul.f32 %v2896, 1.442695
      %v2987 = vpow.pop %v2986
      %v2988 = vmul.f32 %v2897, 1.442695
      %v2989 = vpow.pop %v2988
      %v2990 = vmul.f32 %v2898, 1.442695
      %v2991 = vpow.pop %v2990
      %v2992 = vmul.f32 %v2899, 1.442695
      %v2993 = vpow.pop %v2992
      %v2994 = vmul.f32 %v2900, 1.442695
      %v2995 = vpow.pop %v2994
      %v2996 = vmul.f32 %v2901, 1.442695
      %v2997 = vpow.pop %v2996
      %v2998 = vmul.f32 %v2902, 1.442695
      %v2999 = vpow.pop %v2998
      %v3000 = vmul.f32 %v2903, 1.442695
      %v3001 = vpow.pop %v3000
      %v3002 = vmul.f32 %v2904, 1.442695
      %v3003 = vpow.pop %v3002
      %v3004 = vmul.f32 %v2905, 1.442695
      %v3005 = vpow.pop %v3004
      %v3006 = vmul.f32 %v2906, 1.442695
      %v3007 = vpow.pop %v3006
      %v3008 = vmul.f32 %v2907, 1.442695
      %v3009 = vpow.pop %v3008
      %v3010 = vmul.f32 %v2908, 1.442695
      %v3011 = vpow.pop %v3010
      %v3012 = vmul.f32 %v2909, 1.442695
      %v3013 = vpow.pop %v3012
      %v3014 = vmul.f32 %v2910, 1.442695
      %v3015 = vpow.pop %v3014
      %v3016 = vmul.f32 %v2911, 1.442695
      %v3017 = vpow.pop %v3016
      %v3018 = vmul.f32 %v2912, 1.442695
      %v3019 = vpow.pop %v3018
      %v3020 = vmul.f32 %v2913, 1.442695
      %v3021 = vpow.pop %v3020
      %v3022 = vmul.f32 %v2914, 1.442695
      %v3023 = vpow.pop %v3022
      %v3024 = vmul.f32 %v2915, 1.442695
      %v3025 = vpow.pop %v3024
      %v3026 = vmul.f32 %v2916, 1.442695
      %v3027 = vpow.pop %v3026
      %v3028 = vmul.f32 %v2917, 1.442695
      %v3029 = vpow.pop %v3028
      %v3030 = vmul.f32 %v2918, 1.442695
      %v3031 = vpow.pop %v3030
      %v3032 = vmul.f32 %v2919, 1.442695
      %v3033 = vpow.pop %v3032
      %v3034 = vmul.f32 %v2920, 1.442695
      %v3035 = vpow.pop %v3034
      %v3036 = vmul.f32 %v2921, 1.442695
      %v3037 = vpow.pop %v3036
      %v3038 = vmul.f32 %v2922, 1.442695
      %v3039 = vpow.pop %v3038
      %v3040 = vmul.f32 %v2923, 1.442695
      %v3041 = vpow.pop %v3040
      %v3042 = vmul.f32 %v2924, 1.442695
      %v3043 = vpow.pop %v3042
      %v3044 = vmul.f32 %v2925, 1.442695
      %v3045 = vpow.pop %v3044
      %v3046 = vmul.f32 %v2926, 1.442695
      %v3047 = vpow.pop %v3046
      %v3048 = vmul.f32 %v2927, 1.442695
      %v3049 = vpow.pop %v3048
      %v3050 = vmul.f32 %v2928, 1.442695
      %v3051 = vpow.pop %v3050
      %v3052 = vmul.f32 %v2929, 1.442695
      %v3053 = vpow.pop %v3052
      %v3054 = vmul.f32 %v2930, 1.442695
      %v3055 = vpow.pop %v3054
      %v3056 = vmul.f32 %v2931, 1.442695
      %v3057 = vpow.pop %v3056
      %v3058 = vmul.f32 %v2932, 1.442695
      %v3059 = vpow.pop %v3058
      %v3060 = vmul.f32 %v2933, 1.442695
      %v3061 = vpow.pop %v3060
      %v3062 = vadd.f32 %v2935, 1.0
      %v3063 = vadd.f32 %v2937, 1.0
      %v3064 = vadd.f32 %v2939, 1.0
      %v3065 = vadd.f32 %v2941, 1.0
      %v3066 = vadd.f32 %v2943, 1.0
      %v3067 = vadd.f32 %v2945, 1.0
      %v3068 = vadd.f32 %v2947, 1.0
      %v3069 = vadd.f32 %v2949, 1.0
      %v3070 = vadd.f32 %v2951, 1.0
      %v3071 = vadd.f32 %v2953, 1.0
      %v3072 = vadd.f32 %v2955, 1.0
      %v3073 = vadd.f32 %v2957, 1.0
      %v3074 = vadd.f32 %v2959, 1.0
      %v3075 = vadd.f32 %v2961, 1.0
      %v3076 = vadd.f32 %v2963, 1.0
      %v3077 = vadd.f32 %v2965, 1.0
      %v3078 = vadd.f32 %v2967, 1.0
      %v3079 = vadd.f32 %v2969, 1.0
      %v3080 = vadd.f32 %v2971, 1.0
      %v3081 = vadd.f32 %v2973, 1.0
      %v3082 = vadd.f32 %v2975, 1.0
      %v3083 = vadd.f32 %v2977, 1.0
      %v3084 = vadd.f32 %v2979, 1.0
      %v3085 = vadd.f32 %v2981, 1.0
      %v3086 = vadd.f32 %v2983, 1.0
      %v3087 = vadd.f32 %v2985, 1.0
      %v3088 = vadd.f32 %v2987, 1.0
      %v3089 = vadd.f32 %v2989, 1.0
      %v3090 = vadd.f32 %v2991, 1.0
      %v3091 = vadd.f32 %v2993, 1.0
      %v3092 = vadd.f32 %v2995, 1.0
      %v3093 = vadd.f32 %v2997, 1.0
      %v3094 = vadd.f32 %v2999, 1.0
      %v3095 = vadd.f32 %v3001, 1.0
      %v3096 = vadd.f32 %v3003, 1.0
      %v3097 = vadd.f32 %v3005, 1.0
      %v3098 = vadd.f32 %v3007, 1.0
      %v3099 = vadd.f32 %v3009, 1.0
      %v3100 = vadd.f32 %v3011, 1.0
      %v3101 = vadd.f32 %v3013, 1.0
      %v3102 = vadd.f32 %v3015, 1.0
      %v3103 = vadd.f32 %v3017, 1.0
      %v3104 = vadd.f32 %v3019, 1.0
      %v3105 = vadd.f32 %v3021, 1.0
      %v3106 = vadd.f32 %v3023, 1.0
      %v3107 = vadd.f32 %v3025, 1.0
      %v3108 = vadd.f32 %v3027, 1.0
      %v3109 = vadd.f32 %v3029, 1.0
      %v3110 = vadd.f32 %v3031, 1.0
      %v3111 = vadd.f32 %v3033, 1.0
      %v3112 = vadd.f32 %v3035, 1.0
      %v3113 = vadd.f32 %v3037, 1.0
      %v3114 = vadd.f32 %v3039, 1.0
      %v3115 = vadd.f32 %v3041, 1.0
      %v3116 = vadd.f32 %v3043, 1.0
      %v3117 = vadd.f32 %v3045, 1.0
      %v3118 = vadd.f32 %v3047, 1.0
      %v3119 = vadd.f32 %v3049, 1.0
      %v3120 = vadd.f32 %v3051, 1.0
      %v3121 = vadd.f32 %v3053, 1.0
      %v3122 = vadd.f32 %v3055, 1.0
      %v3123 = vadd.f32 %v3057, 1.0
      %v3124 = vadd.f32 %v3059, 1.0
      %v3125 = vadd.f32 %v3061, 1.0
      %v3126 = vrcp.pop %v3062
      %v3127 = vmul.f32 1.0, %v3126
      %v3128 = vrcp.pop %v3063
      %v3129 = vmul.f32 1.0, %v3128
      %v3130 = vrcp.pop %v3064
      %v3131 = vmul.f32 1.0, %v3130
      %v3132 = vrcp.pop %v3065
      %v3133 = vmul.f32 1.0, %v3132
      %v3134 = vrcp.pop %v3066
      %v3135 = vmul.f32 1.0, %v3134
      %v3136 = vrcp.pop %v3067
      %v3137 = vmul.f32 1.0, %v3136
      %v3138 = vrcp.pop %v3068
      %v3139 = vmul.f32 1.0, %v3138
      %v3140 = vrcp.pop %v3069
      %v3141 = vmul.f32 1.0, %v3140
      %v3142 = vrcp.pop %v3070
      %v3143 = vmul.f32 1.0, %v3142
      %v3144 = vrcp.pop %v3071
      %v3145 = vmul.f32 1.0, %v3144
      %v3146 = vrcp.pop %v3072
      %v3147 = vmul.f32 1.0, %v3146
      %v3148 = vrcp.pop %v3073
      %v3149 = vmul.f32 1.0, %v3148
      %v3150 = vrcp.pop %v3074
      %v3151 = vmul.f32 1.0, %v3150
      %v3152 = vrcp.pop %v3075
      %v3153 = vmul.f32 1.0, %v3152
      %v3154 = vrcp.pop %v3076
      %v3155 = vmul.f32 1.0, %v3154
      %v3156 = vrcp.pop %v3077
      %v3157 = vmul.f32 1.0, %v3156
      %v3158 = vrcp.pop %v3078
      %v3159 = vmul.f32 1.0, %v3158
      %v3160 = vrcp.pop %v3079
      %v3161 = vmul.f32 1.0, %v3160
      %v3162 = vrcp.pop %v3080
      %v3163 = vmul.f32 1.0, %v3162
      %v3164 = vrcp.pop %v3081
      %v3165 = vmul.f32 1.0, %v3164
      %v3166 = vrcp.pop %v3082
      %v3167 = vmul.f32 1.0, %v3166
      %v3168 = vrcp.pop %v3083
      %v3169 = vmul.f32 1.0, %v3168
      %v3170 = vrcp.pop %v3084
      %v3171 = vmul.f32 1.0, %v3170
      %v3172 = vrcp.pop %v3085
      %v3173 = vmul.f32 1.0, %v3172
      %v3174 = vrcp.pop %v3086
      %v3175 = vmul.f32 1.0, %v3174
      %v3176 = vrcp.pop %v3087
      %v3177 = vmul.f32 1.0, %v3176
      %v3178 = vrcp.pop %v3088
      %v3179 = vmul.f32 1.0, %v3178
      %v3180 = vrcp.pop %v3089
      %v3181 = vmul.f32 1.0, %v3180
      %v3182 = vrcp.pop %v3090
      %v3183 = vmul.f32 1.0, %v3182
      %v3184 = vrcp.pop %v3091
      %v3185 = vmul.f32 1.0, %v3184
      %v3186 = vrcp.pop %v3092
      %v3187 = vmul.f32 1.0, %v3186
      %v3188 = vrcp.pop %v3093
      %v3189 = vmul.f32 1.0, %v3188
      %v3190 = vrcp.pop %v3094
      %v3191 = vmul.f32 1.0, %v3190
      %v3192 = vrcp.pop %v3095
      %v3193 = vmul.f32 1.0, %v3192
      %v3194 = vrcp.pop %v3096
      %v3195 = vmul.f32 1.0, %v3194
      %v3196 = vrcp.pop %v3097
      %v3197 = vmul.f32 1.0, %v3196
      %v3198 = vrcp.pop %v3098
      %v3199 = vmul.f32 1.0, %v3198
      %v3200 = vrcp.pop %v3099
      %v3201 = vmul.f32 1.0, %v3200
      %v3202 = vrcp.pop %v3100
      %v3203 = vmul.f32 1.0, %v3202
      %v3204 = vrcp.pop %v3101
      %v3205 = vmul.f32 1.0, %v3204
      %v3206 = vrcp.pop %v3102
      %v3207 = vmul.f32 1.0, %v3206
      %v3208 = vrcp.pop %v3103
      %v3209 = vmul.f32 1.0, %v3208
      %v3210 = vrcp.pop %v3104
      %v3211 = vmul.f32 1.0, %v3210
      %v3212 = vrcp.pop %v3105
      %v3213 = vmul.f32 1.0, %v3212
      %v3214 = vrcp.pop %v3106
      %v3215 = vmul.f32 1.0, %v3214
      %v3216 = vrcp.pop %v3107
      %v3217 = vmul.f32 1.0, %v3216
      %v3218 = vrcp.pop %v3108
      %v3219 = vmul.f32 1.0, %v3218
      %v3220 = vrcp.pop %v3109
      %v3221 = vmul.f32 1.0, %v3220
      %v3222 = vrcp.pop %v3110
      %v3223 = vmul.f32 1.0, %v3222
      %v3224 = vrcp.pop %v3111
      %v3225 = vmul.f32 1.0, %v3224
      %v3226 = vrcp.pop %v3112
      %v3227 = vmul.f32 1.0, %v3226
      %v3228 = vrcp.pop %v3113
      %v3229 = vmul.f32 1.0, %v3228
      %v3230 = vrcp.pop %v3114
      %v3231 = vmul.f32 1.0, %v3230
      %v3232 = vrcp.pop %v3115
      %v3233 = vmul.f32 1.0, %v3232
      %v3234 = vrcp.pop %v3116
      %v3235 = vmul.f32 1.0, %v3234
      %v3236 = vrcp.pop %v3117
      %v3237 = vmul.f32 1.0, %v3236
      %v3238 = vrcp.pop %v3118
      %v3239 = vmul.f32 1.0, %v3238
      %v3240 = vrcp.pop %v3119
      %v3241 = vmul.f32 1.0, %v3240
      %v3242 = vrcp.pop %v3120
      %v3243 = vmul.f32 1.0, %v3242
      %v3244 = vrcp.pop %v3121
      %v3245 = vmul.f32 1.0, %v3244
      %v3246 = vrcp.pop %v3122
      %v3247 = vmul.f32 1.0, %v3246
      %v3248 = vrcp.pop %v3123
      %v3249 = vmul.f32 1.0, %v3248
      %v3250 = vrcp.pop %v3124
      %v3251 = vmul.f32 1.0, %v3250
      %v3252 = vrcp.pop %v3125
      %v3253 = vmul.f32 1.0, %v3252
      %v3254 = vtanh.pop %v2616
      %v3255 = vtanh.pop %v2619
      %v3256 = vtanh.pop %v2624
      %v3257 = vtanh.pop %v2627
      %v3258 = vtanh.pop %v2632
      %v3259 = vtanh.pop %v2635
      %v3260 = vtanh.pop %v2640
      %v3261 = vtanh.pop %v2643
      %v3262 = vtanh.pop %v2648
      %v3263 = vtanh.pop %v2651
      %v3264 = vtanh.pop %v2656
      %v3265 = vtanh.pop %v2659
      %v3266 = vtanh.pop %v2664
      %v3267 = vtanh.pop %v2667
      %v3268 = vtanh.pop %v2672
      %v3269 = vtanh.pop %v2675
      %v3270 = vtanh.pop %v2680
      %v3271 = vtanh.pop %v2683
      %v3272 = vtanh.pop %v2688
      %v3273 = vtanh.pop %v2691
      %v3274 = vtanh.pop %v2696
      %v3275 = vtanh.pop %v2699
      %v3276 = vtanh.pop %v2704
      %v3277 = vtanh.pop %v2707
      %v3278 = vtanh.pop %v2712
      %v3279 = vtanh.pop %v2715
      %v3280 = vtanh.pop %v2720
      %v3281 = vtanh.pop %v2723
      %v3282 = vtanh.pop %v2728
      %v3283 = vtanh.pop %v2731
      %v3284 = vtanh.pop %v2736
      %v3285 = vtanh.pop %v2739
      %v3286 = vtanh.pop %v2744
      %v3287 = vtanh.pop %v2747
      %v3288 = vtanh.pop %v2752
      %v3289 = vtanh.pop %v2755
      %v3290 = vtanh.pop %v2760
      %v3291 = vtanh.pop %v2763
      %v3292 = vtanh.pop %v2768
      %v3293 = vtanh.pop %v2771
      %v3294 = vtanh.pop %v2776
      %v3295 = vtanh.pop %v2779
      %v3296 = vtanh.pop %v2784
      %v3297 = vtanh.pop %v2787
      %v3298 = vtanh.pop %v2792
      %v3299 = vtanh.pop %v2795
      %v3300 = vtanh.pop %v2800
      %v3301 = vtanh.pop %v2803
      %v3302 = vtanh.pop %v2808
      %v3303 = vtanh.pop %v2811
      %v3304 = vtanh.pop %v2816
      %v3305 = vtanh.pop %v2819
      %v3306 = vtanh.pop %v2824
      %v3307 = vtanh.pop %v2827
      %v3308 = vtanh.pop %v2832
      %v3309 = vtanh.pop %v2835
      %v3310 = vtanh.pop %v2840
      %v3311 = vtanh.pop %v2843
      %v3312 = vtanh.pop %v2848
      %v3313 = vtanh.pop %v2851
      %v3314 = vtanh.pop %v2856
      %v3315 = vtanh.pop %v2859
      %v3316 = vtanh.pop %v2864
      %v3317 = vtanh.pop %v2867
      %3382 = vrot.lane.b32.xlu0 %v3254, 64
      %v3383 = vpop.permute.xlu0 %3382
      %3384 = vrot.lane.b32.xlu0 %v3255, 64
      %v3385 = vpop.permute.xlu0 %3384
      %3386 = vrot.lane.b32.xlu0 %v3256, 64
      %v3387 = vpop.permute.xlu0 %3386
      %3388 = vrot.lane.b32.xlu0 %v3257, 64
      %v3389 = vpop.permute.xlu0 %3388
      %3390 = vrot.lane.b32.xlu0 %v3258, 64
      %v3391 = vpop.permute.xlu0 %3390
      %3392 = vrot.lane.b32.xlu0 %v3259, 64
      %v3393 = vpop.permute.xlu0 %3392
      %3394 = vrot.lane.b32.xlu0 %v3260, 64
      %v3395 = vpop.permute.xlu0 %3394
      %3396 = vrot.lane.b32.xlu0 %v3261, 64
      %v3397 = vpop.permute.xlu0 %3396
      %3398 = vrot.lane.b32.xlu0 %v3262, 64
      %v3399 = vpop.permute.xlu0 %3398
      %3400 = vrot.lane.b32.xlu0 %v3263, 64
      %v3401 = vpop.permute.xlu0 %3400
      %3402 = vrot.lane.b32.xlu0 %v3264, 64
      %v3403 = vpop.permute.xlu0 %3402
      %3404 = vrot.lane.b32.xlu0 %v3265, 64
      %v3405 = vpop.permute.xlu0 %3404
      %3406 = vrot.lane.b32.xlu0 %v3266, 64
      %v3407 = vpop.permute.xlu0 %3406
      %3408 = vrot.lane.b32.xlu0 %v3267, 64
      %v3409 = vpop.permute.xlu0 %3408
      %3410 = vrot.lane.b32.xlu0 %v3268, 64
      %v3411 = vpop.permute.xlu0 %3410
      %3412 = vrot.lane.b32.xlu0 %v3269, 64
      %v3413 = vpop.permute.xlu0 %3412
      %3414 = vrot.lane.b32.xlu0 %v3270, 64
      %v3415 = vpop.permute.xlu0 %3414
      %3416 = vrot.lane.b32.xlu0 %v3271, 64
      %v3417 = vpop.permute.xlu0 %3416
      %3418 = vrot.lane.b32.xlu0 %v3272, 64
      %v3419 = vpop.permute.xlu0 %3418
      %3420 = vrot.lane.b32.xlu0 %v3273, 64
      %v3421 = vpop.permute.xlu0 %3420
      %3422 = vrot.lane.b32.xlu0 %v3274, 64
      %v3423 = vpop.permute.xlu0 %3422
      %3424 = vrot.lane.b32.xlu0 %v3275, 64
      %v3425 = vpop.permute.xlu0 %3424
      %3426 = vrot.lane.b32.xlu0 %v3276, 64
      %v3427 = vpop.permute.xlu0 %3426
      %3428 = vrot.lane.b32.xlu0 %v3277, 64
      %v3429 = vpop.permute.xlu0 %3428
      %3430 = vrot.lane.b32.xlu0 %v3278, 64
      %v3431 = vpop.permute.xlu0 %3430
      %3432 = vrot.lane.b32.xlu0 %v3279, 64
      %v3433 = vpop.permute.xlu0 %3432
      %3434 = vrot.lane.b32.xlu0 %v3280, 64
      %v3435 = vpop.permute.xlu0 %3434
      %3436 = vrot.lane.b32.xlu0 %v3281, 64
      %v3437 = vpop.permute.xlu0 %3436
      %3438 = vrot.lane.b32.xlu0 %v3282, 64
      %v3439 = vpop.permute.xlu0 %3438
      %3440 = vrot.lane.b32.xlu0 %v3283, 64
      %v3441 = vpop.permute.xlu0 %3440
      %3442 = vrot.lane.b32.xlu0 %v3284, 64
      %v3443 = vpop.permute.xlu0 %3442
      %3444 = vrot.lane.b32.xlu0 %v3285, 64
      %v3445 = vpop.permute.xlu0 %3444
      %3446 = vrot.lane.b32.xlu0 %v3286, 64
      %v3447 = vpop.permute.xlu0 %3446
      %3448 = vrot.lane.b32.xlu0 %v3287, 64
      %v3449 = vpop.permute.xlu0 %3448
      %3450 = vrot.lane.b32.xlu0 %v3288, 64
      %v3451 = vpop.permute.xlu0 %3450
      %3452 = vrot.lane.b32.xlu0 %v3289, 64
      %v3453 = vpop.permute.xlu0 %3452
      %3454 = vrot.lane.b32.xlu0 %v3290, 64
      %v3455 = vpop.permute.xlu0 %3454
      %3456 = vrot.lane.b32.xlu0 %v3291, 64
      %v3457 = vpop.permute.xlu0 %3456
      %3458 = vrot.lane.b32.xlu0 %v3292, 64
      %v3459 = vpop.permute.xlu0 %3458
      %3460 = vrot.lane.b32.xlu0 %v3293, 64
      %v3461 = vpop.permute.xlu0 %3460
      %3462 = vrot.lane.b32.xlu0 %v3294, 64
      %v3463 = vpop.permute.xlu0 %3462
      %3464 = vrot.lane.b32.xlu0 %v3295, 64
      %v3465 = vpop.permute.xlu0 %3464
      %3466 = vrot.lane.b32.xlu0 %v3296, 64
      %v3467 = vpop.permute.xlu0 %3466
      %3468 = vrot.lane.b32.xlu0 %v3297, 64
      %v3469 = vpop.permute.xlu0 %3468
      %3470 = vrot.lane.b32.xlu0 %v3298, 64
      %v3471 = vpop.permute.xlu0 %3470
      %3472 = vrot.lane.b32.xlu0 %v3299, 64
      %v3473 = vpop.permute.xlu0 %3472
      %3474 = vrot.lane.b32.xlu0 %v3300, 64
      %v3475 = vpop.permute.xlu0 %3474
      %3476 = vrot.lane.b32.xlu0 %v3301, 64
      %v3477 = vpop.permute.xlu0 %3476
      %3478 = vrot.lane.b32.xlu0 %v3302, 64
      %v3479 = vpop.permute.xlu0 %3478
      %3480 = vrot.lane.b32.xlu0 %v3303, 64
      %v3481 = vpop.permute.xlu0 %3480
      %3482 = vrot.lane.b32.xlu0 %v3304, 64
      %v3483 = vpop.permute.xlu0 %3482
      %3484 = vrot.lane.b32.xlu0 %v3305, 64
      %v3485 = vpop.permute.xlu0 %3484
      %3486 = vrot.lane.b32.xlu0 %v3306, 64
      %v3487 = vpop.permute.xlu0 %3486
      %3488 = vrot.lane.b32.xlu0 %v3307, 64
      %v3489 = vpop.permute.xlu0 %3488
      %3490 = vrot.lane.b32.xlu0 %v3308, 64
      %v3491 = vpop.permute.xlu0 %3490
      %3492 = vrot.lane.b32.xlu0 %v3309, 64
      %v3493 = vpop.permute.xlu0 %3492
      %3494 = vrot.lane.b32.xlu0 %v3310, 64
      %v3495 = vpop.permute.xlu0 %3494
      %3496 = vrot.lane.b32.xlu0 %v3311, 64
      %v3497 = vpop.permute.xlu0 %3496
      %3498 = vrot.lane.b32.xlu0 %v3312, 64
      %v3499 = vpop.permute.xlu0 %3498
      %3500 = vrot.lane.b32.xlu0 %v3313, 64
      %v3501 = vpop.permute.xlu0 %3500
      %3502 = vrot.lane.b32.xlu0 %v3314, 64
      %v3503 = vpop.permute.xlu0 %3502
      %3504 = vrot.lane.b32.xlu0 %v3315, 64
      %v3505 = vpop.permute.xlu0 %3504
      %3506 = vrot.lane.b32.xlu0 %v3316, 64
      %v3507 = vpop.permute.xlu0 %3506
      %3508 = vrot.lane.b32.xlu0 %v3317, 64
      %v3509 = vpop.permute.xlu0 %3508
      %v3574 = vmul.f32 %v3127, %v3383
      %v3575 = vmul.f32 %v3129, %v3385
      %v3576 = vmul.f32 %v3131, %v3387
      %v3577 = vmul.f32 %v3133, %v3389
      %v3578 = vmul.f32 %v3135, %v3391
      %v3579 = vmul.f32 %v3137, %v3393
      %v3580 = vmul.f32 %v3139, %v3395
      %v3581 = vmul.f32 %v3141, %v3397
      %v3582 = vmul.f32 %v3143, %v3399
      %v3583 = vmul.f32 %v3145, %v3401
      %v3584 = vmul.f32 %v3147, %v3403
      %v3585 = vmul.f32 %v3149, %v3405
      %v3586 = vmul.f32 %v3151, %v3407
      %v3587 = vmul.f32 %v3153, %v3409
      %v3588 = vmul.f32 %v3155, %v3411
      %v3589 = vmul.f32 %v3157, %v3413
      %v3590 = vmul.f32 %v3159, %v3415
      %v3591 = vmul.f32 %v3161, %v3417
      %v3592 = vmul.f32 %v3163, %v3419
      %v3593 = vmul.f32 %v3165, %v3421
      %v3594 = vmul.f32 %v3167, %v3423
      %v3595 = vmul.f32 %v3169, %v3425
      %v3596 = vmul.f32 %v3171, %v3427
      %v3597 = vmul.f32 %v3173, %v3429
      %v3598 = vmul.f32 %v3175, %v3431
      %v3599 = vmul.f32 %v3177, %v3433
      %v3600 = vmul.f32 %v3179, %v3435
      %v3601 = vmul.f32 %v3181, %v3437
      %v3602 = vmul.f32 %v3183, %v3439
      %v3603 = vmul.f32 %v3185, %v3441
      %v3604 = vmul.f32 %v3187, %v3443
      %v3605 = vmul.f32 %v3189, %v3445
      %v3606 = vmul.f32 %v3191, %v3447
      %v3607 = vmul.f32 %v3193, %v3449
      %v3608 = vmul.f32 %v3195, %v3451
      %v3609 = vmul.f32 %v3197, %v3453
      %v3610 = vmul.f32 %v3199, %v3455
      %v3611 = vmul.f32 %v3201, %v3457
      %v3612 = vmul.f32 %v3203, %v3459
      %v3613 = vmul.f32 %v3205, %v3461
      %v3614 = vmul.f32 %v3207, %v3463
      %v3615 = vmul.f32 %v3209, %v3465
      %v3616 = vmul.f32 %v3211, %v3467
      %v3617 = vmul.f32 %v3213, %v3469
      %v3618 = vmul.f32 %v3215, %v3471
      %v3619 = vmul.f32 %v3217, %v3473
      %v3620 = vmul.f32 %v3219, %v3475
      %v3621 = vmul.f32 %v3221, %v3477
      %v3622 = vmul.f32 %v3223, %v3479
      %v3623 = vmul.f32 %v3225, %v3481
      %v3624 = vmul.f32 %v3227, %v3483
      %v3625 = vmul.f32 %v3229, %v3485
      %v3626 = vmul.f32 %v3231, %v3487
      %v3627 = vmul.f32 %v3233, %v3489
      %v3628 = vmul.f32 %v3235, %v3491
      %v3629 = vmul.f32 %v3237, %v3493
      %v3630 = vmul.f32 %v3239, %v3495
      %v3631 = vmul.f32 %v3241, %v3497
      %v3632 = vmul.f32 %v3243, %v3499
      %v3633 = vmul.f32 %v3245, %v3501
      %v3634 = vmul.f32 %v3247, %v3503
      %v3635 = vmul.f32 %v3249, %v3505
      %v3636 = vmul.f32 %v3251, %v3507
      %v3637 = vmul.f32 %v3253, %v3509
      %v3638 = vpack.c.bf16 %v3575, %v3574
      %v3639 = vpack.c.bf16 %v3577, %v3576
      %v3640 = vpack.c.bf16 %v3579, %v3578
      %v3641 = vpack.c.bf16 %v3581, %v3580
      %v3642 = vpack.c.bf16 %v3583, %v3582
      %v3643 = vpack.c.bf16 %v3585, %v3584
      %v3644 = vpack.c.bf16 %v3587, %v3586
      %v3645 = vpack.c.bf16 %v3589, %v3588
      %v3646 = vpack.c.bf16 %v3591, %v3590
      %v3647 = vpack.c.bf16 %v3593, %v3592
      %v3648 = vpack.c.bf16 %v3595, %v3594
      %v3649 = vpack.c.bf16 %v3597, %v3596
      %v3650 = vpack.c.bf16 %v3599, %v3598
      %v3651 = vpack.c.bf16 %v3601, %v3600
      %v3652 = vpack.c.bf16 %v3603, %v3602
      %v3653 = vpack.c.bf16 %v3605, %v3604
      %v3654 = vpack.c.bf16 %v3607, %v3606
      %v3655 = vpack.c.bf16 %v3609, %v3608
      %v3656 = vpack.c.bf16 %v3611, %v3610
      %v3657 = vpack.c.bf16 %v3613, %v3612
      %v3658 = vpack.c.bf16 %v3615, %v3614
      %v3659 = vpack.c.bf16 %v3617, %v3616
      %v3660 = vpack.c.bf16 %v3619, %v3618
      %v3661 = vpack.c.bf16 %v3621, %v3620
      %v3662 = vpack.c.bf16 %v3623, %v3622
      %v3663 = vpack.c.bf16 %v3625, %v3624
      %v3664 = vpack.c.bf16 %v3627, %v3626
      %v3665 = vpack.c.bf16 %v3629, %v3628
      %v3666 = vpack.c.bf16 %v3631, %v3630
      %v3667 = vpack.c.bf16 %v3633, %v3632
      %v3668 = vpack.c.bf16 %v3635, %v3634
      %v3669 = vpack.c.bf16 %v3637, %v3636
      %v3670 = vld [vmem:[%s569] sm:$0xf]
      %v3671 = vld [vmem:[%s569 + $0x4] sm:$0xf]
      %v3672 = vld [vmem:[%s569 + $0x8] sm:$0xf]
      %v3673 = vld [vmem:[%s569 + $0xc] sm:$0xf]
      %v3674 = vld [vmem:[%s569 + $0x10] sm:$0xf]
      %v3675 = vld [vmem:[%s569 + $0x14] sm:$0xf]
      %v3676 = vld [vmem:[%s569 + $0x18] sm:$0xf]
      %v3677 = vld [vmem:[%s569 + $0x1c] sm:$0xf]
      %v3678 = vld [vmem:[%s572] sm:$0x1]
      %v3680 = vlaneseq
      %v3681 = vshrl.u32 %v3680, 7
      %v3682 = vsub.s32 0, %v3681
      %v3683 = vrot.slane %v3678, %v3682
      %v3693 = vunpack.c.l.b16 %v3670
      %v3694 = vunpack.c.l.b16 %v3671
      %v3695 = vunpack.c.l.b16 %v3672
      %v3696 = vunpack.c.l.b16 %v3673
      %v3697 = vunpack.c.l.b16 %v3674
      %v3698 = vunpack.c.l.b16 %v3675
      %v3699 = vunpack.c.l.b16 %v3676
      %v3700 = vunpack.c.l.b16 %v3677
      %v3701 = vpack.c.b16 %v3694, %v3693
      %v3702 = vpack.c.b16 %v3696, %v3695
      %v3703 = vpack.c.b16 %v3698, %v3697
      %v3704 = vpack.c.b16 %v3700, %v3699
      %v3710 = vsel %vm1504, %v3638, 0
      %v3713 = vsel %vm1504, %v3639, 0
      %v3716 = vsel %vm1504, %v3640, 0
      %v3719 = vsel %vm1504, %v3641, 0
      %v3722 = vsel %vm1504, %v3642, 0
      %v3725 = vsel %vm1504, %v3643, 0
      %v3728 = vsel %vm1504, %v3644, 0
      %v3731 = vsel %vm1504, %v3645, 0
      %v3734 = vsel %vm1504, %v3646, 0
      %v3737 = vsel %vm1504, %v3647, 0
      %v3740 = vsel %vm1504, %v3648, 0
      %v3743 = vsel %vm1504, %v3649, 0
      %v3746 = vsel %vm1504, %v3650, 0
      %v3749 = vsel %vm1504, %v3651, 0
      %v3752 = vsel %vm1504, %v3652, 0
      %v3755 = vsel %vm1504, %v3653, 0
      %v3758 = vsel %vm1504, %v3654, 0
      %v3761 = vsel %vm1504, %v3655, 0
      %v3764 = vsel %vm1504, %v3656, 0
      %v3767 = vsel %vm1504, %v3657, 0
      %v3770 = vsel %vm1504, %v3658, 0
      %v3773 = vsel %vm1504, %v3659, 0
      %v3776 = vsel %vm1504, %v3660, 0
      %v3779 = vsel %vm1504, %v3661, 0
      %v3782 = vsel %vm1504, %v3662, 0
      %v3785 = vsel %vm1504, %v3663, 0
      %v3788 = vsel %vm1504, %v3664, 0
      %v3791 = vsel %vm1504, %v3665, 0
      %v3794 = vsel %vm1504, %v3666, 0
      %v3797 = vsel %vm1504, %v3667, 0
      %v3800 = vsel %vm1504, %v3668, 0
      %v3803 = vsel %vm1504, %v3669, 0
      %3805 = vmatprep.subr.bf16.mxu0 0
      %3806 = vmatpush1.bf16.msra.mxu0 %v3701
      %3807 = vmatprep.subr.bf16.mxu0 0
      %3808 = vmatpush1.bf16.msra.mxu0 %v3702
      %3809 = vmatprep.subr.bf16.mxu0 0
      %3810 = vmatpush1.bf16.msra.mxu0 %v3703
      %3811 = vmatprep.subr.bf16.mxu0 0
      %3812 = vmatpush1.bf16.msra.mxu0 %v3704
      %3813 = vmatprep.subr.bf16.mxu0 0
      %3814 = vmatpush1.bf16.msra.mxu0 0
      %3815 = vmatprep.subr.bf16.mxu0 0
      %3816 = vmatpush1.bf16.msra.mxu0 0
      %3817 = vmatprep.subr.bf16.mxu0 0
      %3818 = vmatpush1.bf16.msra.mxu0 0
      %3819 = vmatprep.subr.bf16.mxu0 0
      %3820 = vmatpush1.bf16.msra.mxu0 0
      %3821 = vmatprep.subr.bf16.mxu0 0
      %3822 = vmatpush1.bf16.msra.mxu0 0
      %3823 = vmatprep.subr.bf16.mxu0 0
      %3824 = vmatpush1.bf16.msra.mxu0 0
      %3825 = vmatprep.subr.bf16.mxu0 0
      %3826 = vmatpush1.bf16.msra.mxu0 0
      %3827 = vmatprep.subr.bf16.mxu0 0
      %3828 = vmatpush1.bf16.msra.mxu0 0
      %3829 = vmatprep.subr.bf16.mxu0 0
      %3830 = vmatpush1.bf16.msra.mxu0 0
      %3831 = vmatprep.subr.bf16.mxu0 0
      %3832 = vmatpush1.bf16.msra.mxu0 0
      %3833 = vmatprep.subr.bf16.mxu0 0
      %3834 = vmatpush1.bf16.msra.mxu0 0
      %3835 = vmatprep.subr.bf16.mxu0 0
      %3836 = vmatpush1.bf16.msra.mxu0 0
      %3837 = vmatprep.mubr.bf16.mxu0 0
      %3838 = vmatmul.mubr.bf16.gmra.mrb[0].mxu0 %v3710
      %v3839 = vpop.f32.mrb[0].mxu0
      %v3840 = vadd.f32 %v3683, %v3839
      %v3841 = vpop.f32.mrb[0].mxu0
      %v3842 = vpop.f32.mrb[0].mxu0
      %v3843 = vadd.f32 %v3683, %v3842
      %v3844 = vpop.f32.mrb[0].mxu0
      %3845 = vmatprep.mubr.bf16.mxu0 0
      %3846 = vmatmul.mubr.bf16.gmra.mrb[0].mxu0 %v3713
      %v3847 = vpop.f32.mrb[0].mxu0
      %v3848 = vadd.f32 %v3683, %v3847
      %v3849 = vpop.f32.mrb[0].mxu0
      %v3850 = vpop.f32.mrb[0].mxu0
      %v3851 = vadd.f32 %v3683, %v3850
      %v3852 = vpop.f32.mrb[0].mxu0
      %3853 = vmatprep.mubr.bf16.mxu0 0
      %3854 = vmatmul.mubr.bf16.gmra.mrb[0].mxu0 %v3716
      %v3855 = vpop.f32.mrb[0].mxu0
      %v3856 = vadd.f32 %v3683, %v3855
      %v3857 = vpop.f32.mrb[0].mxu0
      %v3858 = vpop.f32.mrb[0].mxu0
      %v3859 = vadd.f32 %v3683, %v3858
      %v3860 = vpop.f32.mrb[0].mxu0
      %3861 = vmatprep.mubr.bf16.mxu0 0
      %3862 = vmatmul.mubr.bf16.gmra.mrb[0].mxu0 %v3719
      %v3863 = vpop.f32.mrb[0].mxu0
      %v3864 = vadd.f32 %v3683, %v3863
      %v3865 = vpop.f32.mrb[0].mxu0
      %v3866 = vpop.f32.mrb[0].mxu0
      %v3867 = vadd.f32 %v3683, %v3866
      %v3868 = vpop.f32.mrb[0].mxu0
      %3869 = vmatprep.mubr.bf16.mxu0 0
      %3870 = vmatmul.mubr.bf16.gmra.mrb[0].mxu0 %v3722
      %v3871 = vpop.f32.mrb[0].mxu0
      %v3872 = vadd.f32 %v3683, %v3871
      %v3873 = vpop.f32.mrb[0].mxu0
      %v3874 = vpop.f32.mrb[0].mxu0
      %v3875 = vadd.f32 %v3683, %v3874
      %v3876 = vpop.f32.mrb[0].mxu0
      %3877 = vmatprep.mubr.bf16.mxu0 0
      %3878 = vmatmul.mubr.bf16.gmra.mrb[0].mxu0 %v3725
      %v3879 = vpop.f32.mrb[0].mxu0
      %v3880 = vadd.f32 %v3683, %v3879
      %v3881 = vpop.f32.mrb[0].mxu0
      %v3882 = vpop.f32.mrb[0].mxu0
      %v3883 = vadd.f32 %v3683, %v3882
      %v3884 = vpop.f32.mrb[0].mxu0
      %3885 = vmatprep.mubr.bf16.mxu0 0
      %3886 = vmatmul.mubr.bf16.gmra.mrb[0].mxu0 %v3728
      %v3887 = vpop.f32.mrb[0].mxu0
      %v3888 = vadd.f32 %v3683, %v3887
      %v3889 = vpop.f32.mrb[0].mxu0
      %v3890 = vpop.f32.mrb[0].mxu0
      %v3891 = vadd.f32 %v3683, %v3890
      %v3892 = vpop.f32.mrb[0].mxu0
      %3893 = vmatprep.mubr.bf16.mxu0 0
      %3894 = vmatmul.mubr.bf16.gmra.mrb[0].mxu0 %v3731
      %v3895 = vpop.f32.mrb[0].mxu0
      %v3896 = vadd.f32 %v3683, %v3895
      %v3897 = vpop.f32.mrb[0].mxu0
      %v3898 = vpop.f32.mrb[0].mxu0
      %v3899 = vadd.f32 %v3683, %v3898
      %v3900 = vpop.f32.mrb[0].mxu0
      %3901 = vmatprep.mubr.bf16.mxu0 0
      %3902 = vmatmul.mubr.bf16.gmra.mrb[0].mxu0 %v3734
      %v3903 = vpop.f32.mrb[0].mxu0
      %v3904 = vadd.f32 %v3683, %v3903
      %v3905 = vpop.f32.mrb[0].mxu0
      %v3906 = vpop.f32.mrb[0].mxu0
      %v3907 = vadd.f32 %v3683, %v3906
      %v3908 = vpop.f32.mrb[0].mxu0
      %3909 = vmatprep.mubr.bf16.mxu0 0
      %3910 = vmatmul.mubr.bf16.gmra.mrb[0].mxu0 %v3737
      %v3911 = vpop.f32.mrb[0].mxu0
      %v3912 = vadd.f32 %v3683, %v3911
      %v3913 = vpop.f32.mrb[0].mxu0
      %v3914 = vpop.f32.mrb[0].mxu0
      %v3915 = vadd.f32 %v3683, %v3914
      %v3916 = vpop.f32.mrb[0].mxu0
      %3917 = vmatprep.mubr.bf16.mxu0 0
      %3918 = vmatmul.mubr.bf16.gmra.mrb[0].mxu0 %v3740
      %v3919 = vpop.f32.mrb[0].mxu0
      %v3920 = vadd.f32 %v3683, %v3919
      %v3921 = vpop.f32.mrb[0].mxu0
      %v3922 = vpop.f32.mrb[0].mxu0
      %v3923 = vadd.f32 %v3683, %v3922
      %v3924 = vpop.f32.mrb[0].mxu0
      %3925 = vmatprep.mubr.bf16.mxu0 0
      %3926 = vmatmul.mubr.bf16.gmra.mrb[0].mxu0 %v3743
      %v3927 = vpop.f32.mrb[0].mxu0
      %v3928 = vadd.f32 %v3683, %v3927
      %v3929 = vpop.f32.mrb[0].mxu0
      %v3930 = vpop.f32.mrb[0].mxu0
      %v3931 = vadd.f32 %v3683, %v3930
      %v3932 = vpop.f32.mrb[0].mxu0
      %3933 = vmatprep.mubr.bf16.mxu0 0
      %3934 = vmatmul.mubr.bf16.gmra.mrb[0].mxu0 %v3746
      %v3935 = vpop.f32.mrb[0].mxu0
      %v3936 = vadd.f32 %v3683, %v3935
      %v3937 = vpop.f32.mrb[0].mxu0
      %v3938 = vpop.f32.mrb[0].mxu0
      %v3939 = vadd.f32 %v3683, %v3938
      %v3940 = vpop.f32.mrb[0].mxu0
      %3941 = vmatprep.mubr.bf16.mxu0 0
      %3942 = vmatmul.mubr.bf16.gmra.mrb[0].mxu0 %v3749
      %v3943 = vpop.f32.mrb[0].mxu0
      %v3944 = vadd.f32 %v3683, %v3943
      %v3945 = vpop.f32.mrb[0].mxu0
      %v3946 = vpop.f32.mrb[0].mxu0
      %v3947 = vadd.f32 %v3683, %v3946
      %v3948 = vpop.f32.mrb[0].mxu0
      %3949 = vmatprep.mubr.bf16.mxu0 0
      %3950 = vmatmul.mubr.bf16.gmra.mrb[0].mxu0 %v3752
      %v3951 = vpop.f32.mrb[0].mxu0
      %v3952 = vadd.f32 %v3683, %v3951
      %v3953 = vpop.f32.mrb[0].mxu0
      %v3954 = vpop.f32.mrb[0].mxu0
      %v3955 = vadd.f32 %v3683, %v3954
      %v3956 = vpop.f32.mrb[0].mxu0
      %3957 = vmatprep.mubr.bf16.mxu0 0
      %3958 = vmatmul.mubr.bf16.gmra.mrb[0].mxu0 %v3755
      %v3959 = vpop.f32.mrb[0].mxu0
      %v3960 = vadd.f32 %v3683, %v3959
      %v3961 = vpop.f32.mrb[0].mxu0
      %v3962 = vpop.f32.mrb[0].mxu0
      %v3963 = vadd.f32 %v3683, %v3962
      %v3964 = vpop.f32.mrb[0].mxu0
      %3965 = vmatprep.mubr.bf16.mxu0 0
      %3966 = vmatmul.mubr.bf16.gmra.mrb[0].mxu0 %v3758
      %v3967 = vpop.f32.mrb[0].mxu0
      %v3968 = vadd.f32 %v3683, %v3967
      %v3969 = vpop.f32.mrb[0].mxu0
      %v3970 = vpop.f32.mrb[0].mxu0
      %v3971 = vadd.f32 %v3683, %v3970
      %v3972 = vpop.f32.mrb[0].mxu0
      %3973 = vmatprep.mubr.bf16.mxu0 0
      %3974 = vmatmul.mubr.bf16.gmra.mrb[0].mxu0 %v3761
      %v3975 = vpop.f32.mrb[0].mxu0
      %v3976 = vadd.f32 %v3683, %v3975
      %v3977 = vpop.f32.mrb[0].mxu0
      %v3978 = vpop.f32.mrb[0].mxu0
      %v3979 = vadd.f32 %v3683, %v3978
      %v3980 = vpop.f32.mrb[0].mxu0
      %3981 = vmatprep.mubr.bf16.mxu0 0
      %3982 = vmatmul.mubr.bf16.gmra.mrb[0].mxu0 %v3764
      %v3983 = vpop.f32.mrb[0].mxu0
      %v3984 = vadd.f32 %v3683, %v3983
      %v3985 = vpop.f32.mrb[0].mxu0
      %v3986 = vpop.f32.mrb[0].mxu0
      %v3987 = vadd.f32 %v3683, %v3986
      %v3988 = vpop.f32.mrb[0].mxu0
      %3989 = vmatprep.mubr.bf16.mxu0 0
      %3990 = vmatmul.mubr.bf16.gmra.mrb[0].mxu0 %v3767
      %v3991 = vpop.f32.mrb[0].mxu0
      %v3992 = vadd.f32 %v3683, %v3991
      %v3993 = vpop.f32.mrb[0].mxu0
      %v3994 = vpop.f32.mrb[0].mxu0
      %v3995 = vadd.f32 %v3683, %v3994
      %v3996 = vpop.f32.mrb[0].mxu0
      %3997 = vmatprep.mubr.bf16.mxu0 0
      %3998 = vmatmul.mubr.bf16.gmra.mrb[0].mxu0 %v3770
      %v3999 = vpop.f32.mrb[0].mxu0
      %v4000 = vadd.f32 %v3683, %v3999
      %v4001 = vpop.f32.mrb[0].mxu0
      %v4002 = vpop.f32.mrb[0].mxu0
      %v4003 = vadd.f32 %v3683, %v4002
      %v4004 = vpop.f32.mrb[0].mxu0
      %4005 = vmatprep.mubr.bf16.mxu0 0
      %4006 = vmatmul.mubr.bf16.gmra.mrb[0].mxu0 %v3773
      %v4007 = vpop.f32.mrb[0].mxu0
      %v4008 = vadd.f32 %v3683, %v4007
      %v4009 = vpop.f32.mrb[0].mxu0
      %v4010 = vpop.f32.mrb[0].mxu0
      %v4011 = vadd.f32 %v3683, %v4010
      %v4012 = vpop.f32.mrb[0].mxu0
      %4013 = vmatprep.mubr.bf16.mxu0 0
      %4014 = vmatmul.mubr.bf16.gmra.mrb[0].mxu0 %v3776
      %v4015 = vpop.f32.mrb[0].mxu0
      %v4016 = vadd.f32 %v3683, %v4015
      %v4017 = vpop.f32.mrb[0].mxu0
      %v4018 = vpop.f32.mrb[0].mxu0
      %v4019 = vadd.f32 %v3683, %v4018
      %v4020 = vpop.f32.mrb[0].mxu0
      %4021 = vmatprep.mubr.bf16.mxu0 0
      %4022 = vmatmul.mubr.bf16.gmra.mrb[0].mxu0 %v3779
      %v4023 = vpop.f32.mrb[0].mxu0
      %v4024 = vadd.f32 %v3683, %v4023
      %v4025 = vpop.f32.mrb[0].mxu0
      %v4026 = vpop.f32.mrb[0].mxu0
      %v4027 = vadd.f32 %v3683, %v4026
      %v4028 = vpop.f32.mrb[0].mxu0
      %4029 = vmatprep.mubr.bf16.mxu0 0
      %4030 = vmatmul.mubr.bf16.gmra.mrb[0].mxu0 %v3782
      %v4031 = vpop.f32.mrb[0].mxu0
      %v4032 = vadd.f32 %v3683, %v4031
      %v4033 = vpop.f32.mrb[0].mxu0
      %v4034 = vpop.f32.mrb[0].mxu0
      %v4035 = vadd.f32 %v3683, %v4034
      %v4036 = vpop.f32.mrb[0].mxu0
      %4037 = vmatprep.mubr.bf16.mxu0 0
      %4038 = vmatmul.mubr.bf16.gmra.mrb[0].mxu0 %v3785
      %v4039 = vpop.f32.mrb[0].mxu0
      %v4040 = vadd.f32 %v3683, %v4039
      %v4041 = vpop.f32.mrb[0].mxu0
      %v4042 = vpop.f32.mrb[0].mxu0
      %v4043 = vadd.f32 %v3683, %v4042
      %v4044 = vpop.f32.mrb[0].mxu0
      %4045 = vmatprep.mubr.bf16.mxu0 0
      %4046 = vmatmul.mubr.bf16.gmra.mrb[0].mxu0 %v3788
      %v4047 = vpop.f32.mrb[0].mxu0
      %v4048 = vadd.f32 %v3683, %v4047
      %v4049 = vpop.f32.mrb[0].mxu0
      %v4050 = vpop.f32.mrb[0].mxu0
      %v4051 = vadd.f32 %v3683, %v4050
      %v4052 = vpop.f32.mrb[0].mxu0
      %4053 = vmatprep.mubr.bf16.mxu0 0
      %4054 = vmatmul.mubr.bf16.gmra.mrb[0].mxu0 %v3791
      %v4055 = vpop.f32.mrb[0].mxu0
      %v4056 = vadd.f32 %v3683, %v4055
      %v4057 = vpop.f32.mrb[0].mxu0
      %v4058 = vpop.f32.mrb[0].mxu0
      %v4059 = vadd.f32 %v3683, %v4058
      %v4060 = vpop.f32.mrb[0].mxu0
      %4061 = vmatprep.mubr.bf16.mxu0 0
      %4062 = vmatmul.mubr.bf16.gmra.mrb[0].mxu0 %v3794
      %v4063 = vpop.f32.mrb[0].mxu0
      %v4064 = vadd.f32 %v3683, %v4063
      %v4065 = vpop.f32.mrb[0].mxu0
      %v4066 = vpop.f32.mrb[0].mxu0
      %v4067 = vadd.f32 %v3683, %v4066
      %v4068 = vpop.f32.mrb[0].mxu0
      %4069 = vmatprep.mubr.bf16.mxu0 0
      %4070 = vmatmul.mubr.bf16.gmra.mrb[0].mxu0 %v3797
      %v4071 = vpop.f32.mrb[0].mxu0
      %v4072 = vadd.f32 %v3683, %v4071
      %v4073 = vpop.f32.mrb[0].mxu0
      %v4074 = vpop.f32.mrb[0].mxu0
      %v4075 = vadd.f32 %v3683, %v4074
      %v4076 = vpop.f32.mrb[0].mxu0
      %4077 = vmatprep.mubr.bf16.mxu0 0
      %4078 = vmatmul.mubr.bf16.gmra.mrb[0].mxu0 %v3800
      %v4079 = vpop.f32.mrb[0].mxu0
      %v4080 = vadd.f32 %v3683, %v4079
      %v4081 = vpop.f32.mrb[0].mxu0
      %v4082 = vpop.f32.mrb[0].mxu0
      %v4083 = vadd.f32 %v3683, %v4082
      %v4084 = vpop.f32.mrb[0].mxu0
      %4085 = vmatprep.mubr.bf16.mxu0 0
      %4086 = vmatmul.mubr.bf16.gmra.mrb[0].mxu0 %v3803
      %v4087 = vpop.f32.mrb[0].mxu0
      %v4088 = vadd.f32 %v3683, %v4087
      %v4089 = vpop.f32.mrb[0].mxu0
      %v4090 = vpop.f32.mrb[0].mxu0
      %v4091 = vadd.f32 %v3683, %v4090
      %v4092 = vpop.f32.mrb[0].mxu0
      %4093 = vdwg.mxu0
      %v4094 = vadd.f32 %v1369, %v3840
      %v4095 = vadd.f32 %v1370, %v3843
      %v4096 = vadd.f32 %v1371, %v3848
      %v4097 = vadd.f32 %v1372, %v3851
      %v4098 = vadd.f32 %v1373, %v3856
      %v4099 = vadd.f32 %v1374, %v3859
      %v4100 = vadd.f32 %v1375, %v3864
      %v4101 = vadd.f32 %v1376, %v3867
      %v4102 = vadd.f32 %v1377, %v3872
      %v4103 = vadd.f32 %v1378, %v3875
      %v4104 = vadd.f32 %v1379, %v3880
      %v4105 = vadd.f32 %v1380, %v3883
      %v4106 = vadd.f32 %v1381, %v3888
      %v4107 = vadd.f32 %v1382, %v3891
      %v4108 = vadd.f32 %v1383, %v3896
      %v4109 = vadd.f32 %v1384, %v3899
      %v4110 = vadd.f32 %v1385, %v3904
      %v4111 = vadd.f32 %v1386, %v3907
      %v4112 = vadd.f32 %v1387, %v3912
      %v4113 = vadd.f32 %v1388, %v3915
      %v4114 = vadd.f32 %v1389, %v3920
      %v4115 = vadd.f32 %v1390, %v3923
      %v4116 = vadd.f32 %v1391, %v3928
      %v4117 = vadd.f32 %v1392, %v3931
      %v4118 = vadd.f32 %v1393, %v3936
      %v4119 = vadd.f32 %v1394, %v3939
      %v4120 = vadd.f32 %v1395, %v3944
      %v4121 = vadd.f32 %v1396, %v3947
      %v4122 = vadd.f32 %v1397, %v3952
      %v4123 = vadd.f32 %v1398, %v3955
      %v4124 = vadd.f32 %v1399, %v3960
      %v4125 = vadd.f32 %v1400, %v3963
      %v4126 = vadd.f32 %v1401, %v3968
      %v4127 = vadd.f32 %v1402, %v3971
      %v4128 = vadd.f32 %v1403, %v3976
      %v4129 = vadd.f32 %v1404, %v3979
      %v4130 = vadd.f32 %v1405, %v3984
      %v4131 = vadd.f32 %v1406, %v3987
      %v4132 = vadd.f32 %v1407, %v3992
      %v4133 = vadd.f32 %v1408, %v3995
      %v4134 = vadd.f32 %v1409, %v4000
      %v4135 = vadd.f32 %v1410, %v4003
      %v4136 = vadd.f32 %v1411, %v4008
      %v4137 = vadd.f32 %v1412, %v4011
      %v4138 = vadd.f32 %v1413, %v4016
      %v4139 = vadd.f32 %v1414, %v4019
      %v4140 = vadd.f32 %v1415, %v4024
      %v4141 = vadd.f32 %v1416, %v4027
      %v4142 = vadd.f32 %v1417, %v4032
      %v4143 = vadd.f32 %v1418, %v4035
      %v4144 = vadd.f32 %v1419, %v4040
      %v4145 = vadd.f32 %v1420, %v4043
      %v4146 = vadd.f32 %v1421, %v4048
      %v4147 = vadd.f32 %v1422, %v4051
      %v4148 = vadd.f32 %v1423, %v4056
      %v4149 = vadd.f32 %v1424, %v4059
      %v4150 = vadd.f32 %v1425, %v4064
      %v4151 = vadd.f32 %v1426, %v4067
      %v4152 = vadd.f32 %v1427, %v4072
      %v4153 = vadd.f32 %v1428, %v4075
      %v4154 = vadd.f32 %v1429, %v4080
      %v4155 = vadd.f32 %v1430, %v4083
      %v4156 = vadd.f32 %v1431, %v4088
      %v4157 = vadd.f32 %v1432, %v4091
      %v4158 = vmul.f32 %v4094, 0.70710677
      %v4159 = vmul.f32 %v4095, 0.70710677
      %v4160 = vmul.f32 %v4096, 0.70710677
      %v4161 = vmul.f32 %v4097, 0.70710677
      %v4162 = vmul.f32 %v4098, 0.70710677
      %v4163 = vmul.f32 %v4099, 0.70710677
      %v4164 = vmul.f32 %v4100, 0.70710677
      %v4165 = vmul.f32 %v4101, 0.70710677
      %v4166 = vmul.f32 %v4102, 0.70710677
      %v4167 = vmul.f32 %v4103, 0.70710677
      %v4168 = vmul.f32 %v4104, 0.70710677
      %v4169 = vmul.f32 %v4105, 0.70710677
      %v4170 = vmul.f32 %v4106, 0.70710677
      %v4171 = vmul.f32 %v4107, 0.70710677
      %v4172 = vmul.f32 %v4108, 0.70710677
      %v4173 = vmul.f32 %v4109, 0.70710677
      %v4174 = vmul.f32 %v4110, 0.70710677
      %v4175 = vmul.f32 %v4111, 0.70710677
      %v4176 = vmul.f32 %v4112, 0.70710677
      %v4177 = vmul.f32 %v4113, 0.70710677
      %v4178 = vmul.f32 %v4114, 0.70710677
      %v4179 = vmul.f32 %v4115, 0.70710677
      %v4180 = vmul.f32 %v4116, 0.70710677
      %v4181 = vmul.f32 %v4117, 0.70710677
      %v4182 = vmul.f32 %v4118, 0.70710677
      %v4183 = vmul.f32 %v4119, 0.70710677
      %v4184 = vmul.f32 %v4120, 0.70710677
      %v4185 = vmul.f32 %v4121, 0.70710677
      %v4186 = vmul.f32 %v4122, 0.70710677
      %v4187 = vmul.f32 %v4123, 0.70710677
      %v4188 = vmul.f32 %v4124, 0.70710677
      %v4189 = vmul.f32 %v4125, 0.70710677
      %v4190 = vmul.f32 %v4126, 0.70710677
      %v4191 = vmul.f32 %v4127, 0.70710677
      %v4192 = vmul.f32 %v4128, 0.70710677
      %v4193 = vmul.f32 %v4129, 0.70710677
      %v4194 = vmul.f32 %v4130, 0.70710677
      %v4195 = vmul.f32 %v4131, 0.70710677
      %v4196 = vmul.f32 %v4132, 0.70710677
      %v4197 = vmul.f32 %v4133, 0.70710677
      %v4198 = vmul.f32 %v4134, 0.70710677
      %v4199 = vmul.f32 %v4135, 0.70710677
      %v4200 = vmul.f32 %v4136, 0.70710677
      %v4201 = vmul.f32 %v4137, 0.70710677
      %v4202 = vmul.f32 %v4138, 0.70710677
      %v4203 = vmul.f32 %v4139, 0.70710677
      %v4204 = vmul.f32 %v4140, 0.70710677
      %v4205 = vmul.f32 %v4141, 0.70710677
      %v4206 = vmul.f32 %v4142, 0.70710677
      %v4207 = vmul.f32 %v4143, 0.70710677
      %v4208 = vmul.f32 %v4144, 0.70710677
      %v4209 = vmul.f32 %v4145, 0.70710677
      %v4210 = vmul.f32 %v4146, 0.70710677
      %v4211 = vmul.f32 %v4147, 0.70710677
      %v4212 = vmul.f32 %v4148, 0.70710677
      %v4213 = vmul.f32 %v4149, 0.70710677
      %v4214 = vmul.f32 %v4150, 0.70710677
      %v4215 = vmul.f32 %v4151, 0.70710677
      %v4216 = vmul.f32 %v4152, 0.70710677
      %v4217 = vmul.f32 %v4153, 0.70710677
      %v4218 = vmul.f32 %v4154, 0.70710677
      %v4219 = vmul.f32 %v4155, 0.70710677
      %v4220 = vmul.f32 %v4156, 0.70710677
      %v4221 = vmul.f32 %v4157, 0.70710677
      %4222 = vst.msk [vmem:[#allocation2] sm:$0xff] %vm1504, %v4158
      %4223 = vst.msk [vmem:[#allocation2 + $0x8] sm:$0xff] %vm1504, %v4159
      %4224 = vst.msk [vmem:[#allocation2 + $0x10] sm:$0xff] %vm1504, %v4160
      %4225 = vst.msk [vmem:[#allocation2 + $0x18] sm:$0xff] %vm1504, %v4161
      %4226 = vst.msk [vmem:[#allocation2 + $0x20] sm:$0xff] %vm1504, %v4162
      %4227 = vst.msk [vmem:[#allocation2 + $0x28] sm:$0xff] %vm1504, %v4163
      %4228 = vst.msk [vmem:[#allocation2 + $0x30] sm:$0xff] %vm1504, %v4164
      %4229 = vst.msk [vmem:[#allocation2 + $0x38] sm:$0xff] %vm1504, %v4165
      %4230 = vst.msk [vmem:[#allocation2 + $0x40] sm:$0xff] %vm1504, %v4166
      %4231 = vst.msk [vmem:[#allocation2 + $0x48] sm:$0xff] %vm1504, %v4167
      %4232 = vst.msk [vmem:[#allocation2 + $0x50] sm:$0xff] %vm1504, %v4168
      %4233 = vst.msk [vmem:[#allocation2 + $0x58] sm:$0xff] %vm1504, %v4169
      %4234 = vst.msk [vmem:[#allocation2 + $0x60] sm:$0xff] %vm1504, %v4170
      %4235 = vst.msk [vmem:[#allocation2 + $0x68] sm:$0xff] %vm1504, %v4171
      %4236 = vst.msk [vmem:[#allocation2 + $0x70] sm:$0xff] %vm1504, %v4172
      %4237 = vst.msk [vmem:[#allocation2 + $0x78] sm:$0xff] %vm1504, %v4173
      %4238 = vst.msk [vmem:[#allocation2 + $0x80] sm:$0xff] %vm1504, %v4174
      %4239 = vst.msk [vmem:[#allocation2 + $0x88] sm:$0xff] %vm1504, %v4175
      %4240 = vst.msk [vmem:[#allocation2 + $0x90] sm:$0xff] %vm1504, %v4176
      %4241 = vst.msk [vmem:[#allocation2 + $0x98] sm:$0xff] %vm1504, %v4177
      %4242 = vst.msk [vmem:[#allocation2 + $0xa0] sm:$0xff] %vm1504, %v4178
      %4243 = vst.msk [vmem:[#allocation2 + $0xa8] sm:$0xff] %vm1504, %v4179
      %4244 = vst.msk [vmem:[#allocation2 + $0xb0] sm:$0xff] %vm1504, %v4180
      %4245 = vst.msk [vmem:[#allocation2 + $0xb8] sm:$0xff] %vm1504, %v4181
      %4246 = vst.msk [vmem:[#allocation2 + $0xc0] sm:$0xff] %vm1504, %v4182
      %4247 = vst.msk [vmem:[#allocation2 + $0xc8] sm:$0xff] %vm1504, %v4183
      %4248 = vst.msk [vmem:[#allocation2 + $0xd0] sm:$0xff] %vm1504, %v4184
      %4249 = vst.msk [vmem:[#allocation2 + $0xd8] sm:$0xff] %vm1504, %v4185
      %4250 = vst.msk [vmem:[#allocation2 + $0xe0] sm:$0xff] %vm1504, %v4186
      %4251 = vst.msk [vmem:[#allocation2 + $0xe8] sm:$0xff] %vm1504, %v4187
      %4252 = vst.msk [vmem:[#allocation2 + $0xf0] sm:$0xff] %vm1504, %v4188
      %4253 = vst.msk [vmem:[#allocation2 + $0xf8] sm:$0xff] %vm1504, %v4189
      %4254 = vst.msk [vmem:[#allocation2 + $0x100] sm:$0xff] %vm1504, %v4190
      %4255 = vst.msk [vmem:[#allocation2 + $0x108] sm:$0xff] %vm1504, %v4191
      %4256 = vst.msk [vmem:[#allocation2 + $0x110] sm:$0xff] %vm1504, %v4192
      %4257 = vst.msk [vmem:[#allocation2 + $0x118] sm:$0xff] %vm1504, %v4193
      %4258 = vst.msk [vmem:[#allocation2 + $0x120] sm:$0xff] %vm1504, %v4194
      %4259 = vst.msk [vmem:[#allocation2 + $0x128] sm:$0xff] %vm1504, %v4195
      %4260 = vst.msk [vmem:[#allocation2 + $0x130] sm:$0xff] %vm1504, %v4196
      %4261 = vst.msk [vmem:[#allocation2 + $0x138] sm:$0xff] %vm1504, %v4197
      %4262 = vst.msk [vmem:[#allocation2 + $0x140] sm:$0xff] %vm1504, %v4198
      %4263 = vst.msk [vmem:[#allocation2 + $0x148] sm:$0xff] %vm1504, %v4199
      %4264 = vst.msk [vmem:[#allocation2 + $0x150] sm:$0xff] %vm1504, %v4200
      %4265 = vst.msk [vmem:[#allocation2 + $0x158] sm:$0xff] %vm1504, %v4201
      %4266 = vst.msk [vmem:[#allocation2 + $0x160] sm:$0xff] %vm1504, %v4202
      %4267 = vst.msk [vmem:[#allocation2 + $0x168] sm:$0xff] %vm1504, %v4203
      %4268 = vst.msk [vmem:[#allocation2 + $0x170] sm:$0xff] %vm1504, %v4204
      %4269 = vst.msk [vmem:[#allocation2 + $0x178] sm:$0xff] %vm1504, %v4205
      %4270 = vst.msk [vmem:[#allocation2 + $0x180] sm:$0xff] %vm1504, %v4206
      %4271 = vst.msk [vmem:[#allocation2 + $0x188] sm:$0xff] %vm1504, %v4207
      %4272 = vst.msk [vmem:[#allocation2 + $0x190] sm:$0xff] %vm1504, %v4208
      %4273 = vst.msk [vmem:[#allocation2 + $0x198] sm:$0xff] %vm1504, %v4209
      %4274 = vst.msk [vmem:[#allocation2 + $0x1a0] sm:$0xff] %vm1504, %v4210
      %4275 = vst.msk [vmem:[#allocation2 + $0x1a8] sm:$0xff] %vm1504, %v4211
      %4276 = vst.msk [vmem:[#allocation2 + $0x1b0] sm:$0xff] %vm1504, %v4212
      %4277 = vst.msk [vmem:[#allocation2 + $0x1b8] sm:$0xff] %vm1504, %v4213
      %4278 = vst.msk [vmem:[#allocation2 + $0x1c0] sm:$0xff] %vm1504, %v4214
      %4279 = vst.msk [vmem:[#allocation2 + $0x1c8] sm:$0xff] %vm1504, %v4215
      %4280 = vst.msk [vmem:[#allocation2 + $0x1d0] sm:$0xff] %vm1504, %v4216
      %4281 = vst.msk [vmem:[#allocation2 + $0x1d8] sm:$0xff] %vm1504, %v4217
      %4282 = vst.msk [vmem:[#allocation2 + $0x1e0] sm:$0xff] %vm1504, %v4218
      %4283 = vst.msk [vmem:[#allocation2 + $0x1e8] sm:$0xff] %vm1504, %v4219
      %4284 = vst.msk [vmem:[#allocation2 + $0x1f0] sm:$0xff] %vm1504, %v4220
      %4285 = vst.msk [vmem:[#allocation2 + $0x1f8] sm:$0xff] %vm1504, %v4221
      %v4286 = vld [vmem:[#allocation3] sm:$0xff]
      %v4287 = vld [vmem:[#allocation3 + $0x8] sm:$0xff]
      %v4288 = vld [vmem:[#allocation3 + $0x10] sm:$0xff]
      %v4289 = vld [vmem:[#allocation3 + $0x18] sm:$0xff]
      %v4290 = vld [vmem:[#allocation3 + $0x20] sm:$0xff]
      %v4291 = vld [vmem:[#allocation3 + $0x28] sm:$0xff]
      %v4292 = vld [vmem:[#allocation3 + $0x30] sm:$0xff]
      %v4293 = vld [vmem:[#allocation3 + $0x38] sm:$0xff]
      %v4294 = vld [vmem:[#allocation3 + $0x40] sm:$0xff]
      %v4295 = vld [vmem:[#allocation3 + $0x48] sm:$0xff]
      %v4296 = vld [vmem:[#allocation3 + $0x50] sm:$0xff]
      %v4297 = vld [vmem:[#allocation3 + $0x58] sm:$0xff]
      %v4298 = vld [vmem:[#allocation3 + $0x60] sm:$0xff]
      %v4299 = vld [vmem:[#allocation3 + $0x68] sm:$0xff]
      %v4300 = vld [vmem:[#allocation3 + $0x70] sm:$0xff]
      %v4301 = vld [vmem:[#allocation3 + $0x78] sm:$0xff]
      %v4302 = vld [vmem:[#allocation3 + $0x80] sm:$0xff]
      %v4303 = vld [vmem:[#allocation3 + $0x88] sm:$0xff]
      %v4304 = vld [vmem:[#allocation3 + $0x90] sm:$0xff]
      %v4305 = vld [vmem:[#allocation3 + $0x98] sm:$0xff]
      %v4306 = vld [vmem:[#allocation3 + $0xa0] sm:$0xff]
      %v4307 = vld [vmem:[#allocation3 + $0xa8] sm:$0xff]
      %v4308 = vld [vmem:[#allocation3 + $0xb0] sm:$0xff]
      %v4309 = vld [vmem:[#allocation3 + $0xb8] sm:$0xff]
      %v4310 = vld [vmem:[#allocation3 + $0xc0] sm:$0xff]
      %v4311 = vld [vmem:[#allocation3 + $0xc8] sm:$0xff]
      %v4312 = vld [vmem:[#allocation3 + $0xd0] sm:$0xff]
      %v4313 = vld [vmem:[#allocation3 + $0xd8] sm:$0xff]
      %v4314 = vld [vmem:[#allocation3 + $0xe0] sm:$0xff]
      %v4315 = vld [vmem:[#allocation3 + $0xe8] sm:$0xff]
      %v4316 = vld [vmem:[#allocation3 + $0xf0] sm:$0xff]
      %v4317 = vld [vmem:[#allocation3 + $0xf8] sm:$0xff]
      %v4318 = vld [vmem:[#allocation3 + $0x100] sm:$0xff]
      %v4319 = vld [vmem:[#allocation3 + $0x108] sm:$0xff]
      %v4320 = vld [vmem:[#allocation3 + $0x110] sm:$0xff]
      %v4321 = vld [vmem:[#allocation3 + $0x118] sm:$0xff]
      %v4322 = vld [vmem:[#allocation3 + $0x120] sm:$0xff]
      %v4323 = vld [vmem:[#allocation3 + $0x128] sm:$0xff]
      %v4324 = vld [vmem:[#allocation3 + $0x130] sm:$0xff]
      %v4325 = vld [vmem:[#allocation3 + $0x138] sm:$0xff]
      %v4326 = vld [vmem:[#allocation3 + $0x140] sm:$0xff]
      %v4327 = vld [vmem:[#allocation3 + $0x148] sm:$0xff]
      %v4328 = vld [vmem:[#allocation3 + $0x150] sm:$0xff]
      %v4329 = vld [vmem:[#allocation3 + $0x158] sm:$0xff]
      %v4330 = vld [vmem:[#allocation3 + $0x160] sm:$0xff]
      %v4331 = vld [vmem:[#allocation3 + $0x168] sm:$0xff]
      %v4332 = vld [vmem:[#allocation3 + $0x170] sm:$0xff]
      %v4333 = vld [vmem:[#allocation3 + $0x178] sm:$0xff]
      %v4334 = vld [vmem:[#allocation3 + $0x180] sm:$0xff]
      %v4335 = vld [vmem:[#allocation3 + $0x188] sm:$0xff]
      %v4336 = vld [vmem:[#allocation3 + $0x190] sm:$0xff]
      %v4337 = vld [vmem:[#allocation3 + $0x198] sm:$0xff]
      %v4338 = vld [vmem:[#allocation3 + $0x1a0] sm:$0xff]
      %v4339 = vld [vmem:[#allocation3 + $0x1a8] sm:$0xff]
      %v4340 = vld [vmem:[#allocation3 + $0x1b0] sm:$0xff]
      %v4341 = vld [vmem:[#allocation3 + $0x1b8] sm:$0xff]
      %v4342 = vld [vmem:[#allocation3 + $0x1c0] sm:$0xff]
      %v4343 = vld [vmem:[#allocation3 + $0x1c8] sm:$0xff]
      %v4344 = vld [vmem:[#allocation3 + $0x1d0] sm:$0xff]
      %v4345 = vld [vmem:[#allocation3 + $0x1d8] sm:$0xff]
      %v4346 = vld [vmem:[#allocation3 + $0x1e0] sm:$0xff]
      %v4347 = vld [vmem:[#allocation3 + $0x1e8] sm:$0xff]
      %v4348 = vld [vmem:[#allocation3 + $0x1f0] sm:$0xff]
      %v4349 = vld [vmem:[#allocation3 + $0x1f8] sm:$0xff]
      %4414 = vrot.lane.b32.xlu0 %v3840, 64
      %v4415 = vpop.permute.xlu0 %4414
      %4416 = vrot.lane.b32.xlu0 %v3843, 64
      %v4417 = vpop.permute.xlu0 %4416
      %4418 = vrot.lane.b32.xlu0 %v3848, 64
      %v4419 = vpop.permute.xlu0 %4418
      %4420 = vrot.lane.b32.xlu0 %v3851, 64
      %v4421 = vpop.permute.xlu0 %4420
      %4422 = vrot.lane.b32.xlu0 %v3856, 64
      %v4423 = vpop.permute.xlu0 %4422
      %4424 = vrot.lane.b32.xlu0 %v3859, 64
      %v4425 = vpop.permute.xlu0 %4424
      %4426 = vrot.lane.b32.xlu0 %v3864, 64
      %v4427 = vpop.permute.xlu0 %4426
      %4428 = vrot.lane.b32.xlu0 %v3867, 64
      %v4429 = vpop.permute.xlu0 %4428
      %4430 = vrot.lane.b32.xlu0 %v3872, 64
      %v4431 = vpop.permute.xlu0 %4430
      %4432 = vrot.lane.b32.xlu0 %v3875, 64
      %v4433 = vpop.permute.xlu0 %4432
      %4434 = vrot.lane.b32.xlu0 %v3880, 64
      %v4435 = vpop.permute.xlu0 %4434
      %4436 = vrot.lane.b32.xlu0 %v3883, 64
      %v4437 = vpop.permute.xlu0 %4436
      %4438 = vrot.lane.b32.xlu0 %v3888, 64
      %v4439 = vpop.permute.xlu0 %4438
      %4440 = vrot.lane.b32.xlu0 %v3891, 64
      %v4441 = vpop.permute.xlu0 %4440
      %4442 = vrot.lane.b32.xlu0 %v3896, 64
      %v4443 = vpop.permute.xlu0 %4442
      %4444 = vrot.lane.b32.xlu0 %v3899, 64
      %v4445 = vpop.permute.xlu0 %4444
      %4446 = vrot.lane.b32.xlu0 %v3904, 64
      %v4447 = vpop.permute.xlu0 %4446
      %4448 = vrot.lane.b32.xlu0 %v3907, 64
      %v4449 = vpop.permute.xlu0 %4448
      %4450 = vrot.lane.b32.xlu0 %v3912, 64
      %v4451 = vpop.permute.xlu0 %4450
      %4452 = vrot.lane.b32.xlu0 %v3915, 64
      %v4453 = vpop.permute.xlu0 %4452
      %4454 = vrot.lane.b32.xlu0 %v3920, 64
      %v4455 = vpop.permute.xlu0 %4454
      %4456 = vrot.lane.b32.xlu0 %v3923, 64
      %v4457 = vpop.permute.xlu0 %4456
      %4458 = vrot.lane.b32.xlu0 %v3928, 64
      %v4459 = vpop.permute.xlu0 %4458
      %4460 = vrot.lane.b32.xlu0 %v3931, 64
      %v4461 = vpop.permute.xlu0 %4460
      %4462 = vrot.lane.b32.xlu0 %v3936, 64
      %v4463 = vpop.permute.xlu0 %4462
      %4464 = vrot.lane.b32.xlu0 %v3939, 64
      %v4465 = vpop.permute.xlu0 %4464
      %4466 = vrot.lane.b32.xlu0 %v3944, 64
      %v4467 = vpop.permute.xlu0 %4466
      %4468 = vrot.lane.b32.xlu0 %v3947, 64
      %v4469 = vpop.permute.xlu0 %4468
      %4470 = vrot.lane.b32.xlu0 %v3952, 64
      %v4471 = vpop.permute.xlu0 %4470
      %4472 = vrot.lane.b32.xlu0 %v3955, 64
      %v4473 = vpop.permute.xlu0 %4472
      %4474 = vrot.lane.b32.xlu0 %v3960, 64
      %v4475 = vpop.permute.xlu0 %4474
      %4476 = vrot.lane.b32.xlu0 %v3963, 64
      %v4477 = vpop.permute.xlu0 %4476
      %4478 = vrot.lane.b32.xlu0 %v3968, 64
      %v4479 = vpop.permute.xlu0 %4478
      %4480 = vrot.lane.b32.xlu0 %v3971, 64
      %v4481 = vpop.permute.xlu0 %4480
      %4482 = vrot.lane.b32.xlu0 %v3976, 64
      %v4483 = vpop.permute.xlu0 %4482
      %4484 = vrot.lane.b32.xlu0 %v3979, 64
      %v4485 = vpop.permute.xlu0 %4484
      %4486 = vrot.lane.b32.xlu0 %v3984, 64
      %v4487 = vpop.permute.xlu0 %4486
      %4488 = vrot.lane.b32.xlu0 %v3987, 64
      %v4489 = vpop.permute.xlu0 %4488
      %4490 = vrot.lane.b32.xlu0 %v3992, 64
      %v4491 = vpop.permute.xlu0 %4490
      %4492 = vrot.lane.b32.xlu0 %v3995, 64
      %v4493 = vpop.permute.xlu0 %4492
      %4494 = vrot.lane.b32.xlu0 %v4000, 64
      %v4495 = vpop.permute.xlu0 %4494
      %4496 = vrot.lane.b32.xlu0 %v4003, 64
      %v4497 = vpop.permute.xlu0 %4496
      %4498 = vrot.lane.b32.xlu0 %v4008, 64
      %v4499 = vpop.permute.xlu0 %4498
      %4500 = vrot.lane.b32.xlu0 %v4011, 64
      %v4501 = vpop.permute.xlu0 %4500
      %4502 = vrot.lane.b32.xlu0 %v4016, 64
      %v4503 = vpop.permute.xlu0 %4502
      %4504 = vrot.lane.b32.xlu0 %v4019, 64
      %v4505 = vpop.permute.xlu0 %4504
      %4506 = vrot.lane.b32.xlu0 %v4024, 64
      %v4507 = vpop.permute.xlu0 %4506
      %4508 = vrot.lane.b32.xlu0 %v4027, 64
      %v4509 = vpop.permute.xlu0 %4508
      %4510 = vrot.lane.b32.xlu0 %v4032, 64
      %v4511 = vpop.permute.xlu0 %4510
      %4512 = vrot.lane.b32.xlu0 %v4035, 64
      %v4513 = vpop.permute.xlu0 %4512
      %4514 = vrot.lane.b32.xlu0 %v4040, 64
      %v4515 = vpop.permute.xlu0 %4514
      %4516 = vrot.lane.b32.xlu0 %v4043, 64
      %v4517 = vpop.permute.xlu0 %4516
      %4518 = vrot.lane.b32.xlu0 %v4048, 64
      %v4519 = vpop.permute.xlu0 %4518
      %4520 = vrot.lane.b32.xlu0 %v4051, 64
      %v4521 = vpop.permute.xlu0 %4520
      %4522 = vrot.lane.b32.xlu0 %v4056, 64
      %v4523 = vpop.permute.xlu0 %4522
      %4524 = vrot.lane.b32.xlu0 %v4059, 64
      %v4525 = vpop.permute.xlu0 %4524
      %4526 = vrot.lane.b32.xlu0 %v4064, 64
      %v4527 = vpop.permute.xlu0 %4526
      %4528 = vrot.lane.b32.xlu0 %v4067, 64
      %v4529 = vpop.permute.xlu0 %4528
      %4530 = vrot.lane.b32.xlu0 %v4072, 64
      %v4531 = vpop.permute.xlu0 %4530
      %4532 = vrot.lane.b32.xlu0 %v4075, 64
      %v4533 = vpop.permute.xlu0 %4532
      %4534 = vrot.lane.b32.xlu0 %v4080, 64
      %v4535 = vpop.permute.xlu0 %4534
      %4536 = vrot.lane.b32.xlu0 %v4083, 64
      %v4537 = vpop.permute.xlu0 %4536
      %4538 = vrot.lane.b32.xlu0 %v4088, 64
      %v4539 = vpop.permute.xlu0 %4538
      %4540 = vrot.lane.b32.xlu0 %v4091, 64
      %v4541 = vpop.permute.xlu0 %4540
      %v4606 = vadd.f32 %v4286, %v4415
      %v4607 = vadd.f32 %v4287, %v4417
      %v4608 = vadd.f32 %v4288, %v4419
      %v4609 = vadd.f32 %v4289, %v4421
      %v4610 = vadd.f32 %v4290, %v4423
      %v4611 = vadd.f32 %v4291, %v4425
      %v4612 = vadd.f32 %v4292, %v4427
      %v4613 = vadd.f32 %v4293, %v4429
      %v4614 = vadd.f32 %v4294, %v4431
      %v4615 = vadd.f32 %v4295, %v4433
      %v4616 = vadd.f32 %v4296, %v4435
      %v4617 = vadd.f32 %v4297, %v4437
      %v4618 = vadd.f32 %v4298, %v4439
      %v4619 = vadd.f32 %v4299, %v4441
      %v4620 = vadd.f32 %v4300, %v4443
      %v4621 = vadd.f32 %v4301, %v4445
      %v4622 = vadd.f32 %v4302, %v4447
      %v4623 = vadd.f32 %v4303, %v4449
      %v4624 = vadd.f32 %v4304, %v4451
      %v4625 = vadd.f32 %v4305, %v4453
      %v4626 = vadd.f32 %v4306, %v4455
      %v4627 = vadd.f32 %v4307, %v4457
      %v4628 = vadd.f32 %v4308, %v4459
      %v4629 = vadd.f32 %v4309, %v4461
      %v4630 = vadd.f32 %v4310, %v4463
      %v4631 = vadd.f32 %v4311, %v4465
      %v4632 = vadd.f32 %v4312, %v4467
      %v4633 = vadd.f32 %v4313, %v4469
      %v4634 = vadd.f32 %v4314, %v4471
      %v4635 = vadd.f32 %v4315, %v4473
      %v4636 = vadd.f32 %v4316, %v4475
      %v4637 = vadd.f32 %v4317, %v4477
      %v4638 = vadd.f32 %v4318, %v4479
      %v4639 = vadd.f32 %v4319, %v4481
      %v4640 = vadd.f32 %v4320, %v4483
      %v4641 = vadd.f32 %v4321, %v4485
      %v4642 = vadd.f32 %v4322, %v4487
      %v4643 = vadd.f32 %v4323, %v4489
      %v4644 = vadd.f32 %v4324, %v4491
      %v4645 = vadd.f32 %v4325, %v4493
      %v4646 = vadd.f32 %v4326, %v4495
      %v4647 = vadd.f32 %v4327, %v4497
      %v4648 = vadd.f32 %v4328, %v4499
      %v4649 = vadd.f32 %v4329, %v4501
      %v4650 = vadd.f32 %v4330, %v4503
      %v4651 = vadd.f32 %v4331, %v4505
      %v4652 = vadd.f32 %v4332, %v4507
      %v4653 = vadd.f32 %v4333, %v4509
      %v4654 = vadd.f32 %v4334, %v4511
      %v4655 = vadd.f32 %v4335, %v4513
      %v4656 = vadd.f32 %v4336, %v4515
      %v4657 = vadd.f32 %v4337, %v4517
      %v4658 = vadd.f32 %v4338, %v4519
      %v4659 = vadd.f32 %v4339, %v4521
      %v4660 = vadd.f32 %v4340, %v4523
      %v4661 = vadd.f32 %v4341, %v4525
      %v4662 = vadd.f32 %v4342, %v4527
      %v4663 = vadd.f32 %v4343, %v4529
      %v4664 = vadd.f32 %v4344, %v4531
      %v4665 = vadd.f32 %v4345, %v4533
      %v4666 = vadd.f32 %v4346, %v4535
      %v4667 = vadd.f32 %v4347, %v4537
      %v4668 = vadd.f32 %v4348, %v4539
      %v4669 = vadd.f32 %v4349, %v4541
      %4670 = vst.msk [vmem:[#allocation3] sm:$0xff] %vm1504, %v4606
      %4671 = vst.msk [vmem:[#allocation3 + $0x8] sm:$0xff] %vm1504, %v4607
      %4672 = vst.msk [vmem:[#allocation3 + $0x10] sm:$0xff] %vm1504, %v4608
      %4673 = vst.msk [vmem:[#allocation3 + $0x18] sm:$0xff] %vm1504, %v4609
      %4674 = vst.msk [vmem:[#allocation3 + $0x20] sm:$0xff] %vm1504, %v4610
      %4675 = vst.msk [vmem:[#allocation3 + $0x28] sm:$0xff] %vm1504, %v4611
      %4676 = vst.msk [vmem:[#allocation3 + $0x30] sm:$0xff] %vm1504, %v4612
      %4677 = vst.msk [vmem:[#allocation3 + $0x38] sm:$0xff] %vm1504, %v4613
      %4678 = vst.msk [vmem:[#allocation3 + $0x40] sm:$0xff] %vm1504, %v4614
      %4679 = vst.msk [vmem:[#allocation3 + $0x48] sm:$0xff] %vm1504, %v4615
      %4680 = vst.msk [vmem:[#allocation3 + $0x50] sm:$0xff] %vm1504, %v4616
      %4681 = vst.msk [vmem:[#allocation3 + $0x58] sm:$0xff] %vm1504, %v4617
      %4682 = vst.msk [vmem:[#allocation3 + $0x60] sm:$0xff] %vm1504, %v4618
      %4683 = vst.msk [vmem:[#allocation3 + $0x68] sm:$0xff] %vm1504, %v4619
      %4684 = vst.msk [vmem:[#allocation3 + $0x70] sm:$0xff] %vm1504, %v4620
      %4685 = vst.msk [vmem:[#allocation3 + $0x78] sm:$0xff] %vm1504, %v4621
      %4686 = vst.msk [vmem:[#allocation3 + $0x80] sm:$0xff] %vm1504, %v4622
      %4687 = vst.msk [vmem:[#allocation3 + $0x88] sm:$0xff] %vm1504, %v4623
      %4688 = vst.msk [vmem:[#allocation3 + $0x90] sm:$0xff] %vm1504, %v4624
      %4689 = vst.msk [vmem:[#allocation3 + $0x98] sm:$0xff] %vm1504, %v4625
      %4690 = vst.msk [vmem:[#allocation3 + $0xa0] sm:$0xff] %vm1504, %v4626
      %4691 = vst.msk [vmem:[#allocation3 + $0xa8] sm:$0xff] %vm1504, %v4627
      %4692 = vst.msk [vmem:[#allocation3 + $0xb0] sm:$0xff] %vm1504, %v4628
      %4693 = vst.msk [vmem:[#allocation3 + $0xb8] sm:$0xff] %vm1504, %v4629
      %4694 = vst.msk [vmem:[#allocation3 + $0xc0] sm:$0xff] %vm1504, %v4630
      %4695 = vst.msk [vmem:[#allocation3 + $0xc8] sm:$0xff] %vm1504, %v4631
      %4696 = vst.msk [vmem:[#allocation3 + $0xd0] sm:$0xff] %vm1504, %v4632
      %4697 = vst.msk [vmem:[#allocation3 + $0xd8] sm:$0xff] %vm1504, %v4633
      %4698 = vst.msk [vmem:[#allocation3 + $0xe0] sm:$0xff] %vm1504, %v4634
      %4699 = vst.msk [vmem:[#allocation3 + $0xe8] sm:$0xff] %vm1504, %v4635
      %4700 = vst.msk [vmem:[#allocation3 + $0xf0] sm:$0xff] %vm1504, %v4636
      %4701 = vst.msk [vmem:[#allocation3 + $0xf8] sm:$0xff] %vm1504, %v4637
      %4702 = vst.msk [vmem:[#allocation3 + $0x100] sm:$0xff] %vm1504, %v4638
      %4703 = vst.msk [vmem:[#allocation3 + $0x108] sm:$0xff] %vm1504, %v4639
      %4704 = vst.msk [vmem:[#allocation3 + $0x110] sm:$0xff] %vm1504, %v4640
      %4705 = vst.msk [vmem:[#allocation3 + $0x118] sm:$0xff] %vm1504, %v4641
      %4706 = vst.msk [vmem:[#allocation3 + $0x120] sm:$0xff] %vm1504, %v4642
      %4707 = vst.msk [vmem:[#allocation3 + $0x128] sm:$0xff] %vm1504, %v4643
      %4708 = vst.msk [vmem:[#allocation3 + $0x130] sm:$0xff] %vm1504, %v4644
      %4709 = vst.msk [vmem:[#allocation3 + $0x138] sm:$0xff] %vm1504, %v4645
      %4710 = vst.msk [vmem:[#allocation3 + $0x140] sm:$0xff] %vm1504, %v4646
      %4711 = vst.msk [vmem:[#allocation3 + $0x148] sm:$0xff] %vm1504, %v4647
      %4712 = vst.msk [vmem:[#allocation3 + $0x150] sm:$0xff] %vm1504, %v4648
      %4713 = vst.msk [vmem:[#allocation3 + $0x158] sm:$0xff] %vm1504, %v4649
      %4714 = vst.msk [vmem:[#allocation3 + $0x160] sm:$0xff] %vm1504, %v4650
      %4715 = vst.msk [vmem:[#allocation3 + $0x168] sm:$0xff] %vm1504, %v4651
      %4716 = vst.msk [vmem:[#allocation3 + $0x170] sm:$0xff] %vm1504, %v4652
      %4717 = vst.msk [vmem:[#allocation3 + $0x178] sm:$0xff] %vm1504, %v4653
      %4718 = vst.msk [vmem:[#allocation3 + $0x180] sm:$0xff] %vm1504, %v4654
      %4719 = vst.msk [vmem:[#allocation3 + $0x188] sm:$0xff] %vm1504, %v4655
      %4720 = vst.msk [vmem:[#allocation3 + $0x190] sm:$0xff] %vm1504, %v4656
      %4721 = vst.msk [vmem:[#allocation3 + $0x198] sm:$0xff] %vm1504, %v4657
      %4722 = vst.msk [vmem:[#allocation3 + $0x1a0] sm:$0xff] %vm1504, %v4658
      %4723 = vst.msk [vmem:[#allocation3 + $0x1a8] sm:$0xff] %vm1504, %v4659
      %4724 = vst.msk [vmem:[#allocation3 + $0x1b0] sm:$0xff] %vm1504, %v4660
      %4725 = vst.msk [vmem:[#allocation3 + $0x1b8] sm:$0xff] %vm1504, %v4661
      %4726 = vst.msk [vmem:[#allocation3 + $0x1c0] sm:$0xff] %vm1504, %v4662
      %4727 = vst.msk [vmem:[#allocation3 + $0x1c8] sm:$0xff] %vm1504, %v4663
      %4728 = vst.msk [vmem:[#allocation3 + $0x1d0] sm:$0xff] %vm1504, %v4664
      %4729 = vst.msk [vmem:[#allocation3 + $0x1d8] sm:$0xff] %vm1504, %v4665
      %4730 = vst.msk [vmem:[#allocation3 + $0x1e0] sm:$0xff] %vm1504, %v4666
      %4731 = vst.msk [vmem:[#allocation3 + $0x1e8] sm:$0xff] %vm1504, %v4667
      %4732 = vst.msk [vmem:[#allocation3 + $0x1f0] sm:$0xff] %vm1504, %v4668
      %4733 = vst.msk [vmem:[#allocation3 + $0x1f8] sm:$0xff] %vm1504, %v4669
      %p4734 = scmp.eq.s32.totalorder %s38, 5
      // Predicated region
      $region77: #{diffwave_forward.1} parent=71 // pred_check
        %p4735 = pneg %p4734
      $region78: #{diffwave_forward.1} parent=71 // pred_check_branch
        %4737 = sbr.rel (%p4735) target = $region80
      $region79: #{diffwave_forward.1} parent=71 // pred_region
        %v4738 = vld [vmem:[#allocation3] sm:$0xff]
        %v4739 = vld [vmem:[#allocation3 + $0x8] sm:$0xff]
        %v4740 = vld [vmem:[#allocation3 + $0x10] sm:$0xff]
        %v4741 = vld [vmem:[#allocation3 + $0x18] sm:$0xff]
        %v4742 = vld [vmem:[#allocation3 + $0x20] sm:$0xff]
        %v4743 = vld [vmem:[#allocation3 + $0x28] sm:$0xff]
        %v4744 = vld [vmem:[#allocation3 + $0x30] sm:$0xff]
        %v4745 = vld [vmem:[#allocation3 + $0x38] sm:$0xff]
        %v4746 = vld [vmem:[#allocation3 + $0x40] sm:$0xff]
        %v4747 = vld [vmem:[#allocation3 + $0x48] sm:$0xff]
        %v4748 = vld [vmem:[#allocation3 + $0x50] sm:$0xff]
        %v4749 = vld [vmem:[#allocation3 + $0x58] sm:$0xff]
        %v4750 = vld [vmem:[#allocation3 + $0x60] sm:$0xff]
        %v4751 = vld [vmem:[#allocation3 + $0x68] sm:$0xff]
        %v4752 = vld [vmem:[#allocation3 + $0x70] sm:$0xff]
        %v4753 = vld [vmem:[#allocation3 + $0x78] sm:$0xff]
        %v4754 = vld [vmem:[#allocation3 + $0x80] sm:$0xff]
        %v4755 = vld [vmem:[#allocation3 + $0x88] sm:$0xff]
        %v4756 = vld [vmem:[#allocation3 + $0x90] sm:$0xff]
        %v4757 = vld [vmem:[#allocation3 + $0x98] sm:$0xff]
        %v4758 = vld [vmem:[#allocation3 + $0xa0] sm:$0xff]
        %v4759 = vld [vmem:[#allocation3 + $0xa8] sm:$0xff]
        %v4760 = vld [vmem:[#allocation3 + $0xb0] sm:$0xff]
        %v4761 = vld [vmem:[#allocation3 + $0xb8] sm:$0xff]
        %v4762 = vld [vmem:[#allocation3 + $0xc0] sm:$0xff]
        %v4763 = vld [vmem:[#allocation3 + $0xc8] sm:$0xff]
        %v4764 = vld [vmem:[#allocation3 + $0xd0] sm:$0xff]
        %v4765 = vld [vmem:[#allocation3 + $0xd8] sm:$0xff]
        %v4766 = vld [vmem:[#allocation3 + $0xe0] sm:$0xff]
        %v4767 = vld [vmem:[#allocation3 + $0xe8] sm:$0xff]
        %v4768 = vld [vmem:[#allocation3 + $0xf0] sm:$0xff]
        %v4769 = vld [vmem:[#allocation3 + $0xf8] sm:$0xff]
        %v4770 = vld [vmem:[#allocation3 + $0x100] sm:$0xff]
        %v4771 = vld [vmem:[#allocation3 + $0x108] sm:$0xff]
        %v4772 = vld [vmem:[#allocation3 + $0x110] sm:$0xff]
        %v4773 = vld [vmem:[#allocation3 + $0x118] sm:$0xff]
        %v4774 = vld [vmem:[#allocation3 + $0x120] sm:$0xff]
        %v4775 = vld [vmem:[#allocation3 + $0x128] sm:$0xff]
        %v4776 = vld [vmem:[#allocation3 + $0x130] sm:$0xff]
        %v4777 = vld [vmem:[#allocation3 + $0x138] sm:$0xff]
        %v4778 = vld [vmem:[#allocation3 + $0x140] sm:$0xff]
        %v4779 = vld [vmem:[#allocation3 + $0x148] sm:$0xff]
        %v4780 = vld [vmem:[#allocation3 + $0x150] sm:$0xff]
        %v4781 = vld [vmem:[#allocation3 + $0x158] sm:$0xff]
        %v4782 = vld [vmem:[#allocation3 + $0x160] sm:$0xff]
        %v4783 = vld [vmem:[#allocation3 + $0x168] sm:$0xff]
        %v4784 = vld [vmem:[#allocation3 + $0x170] sm:$0xff]
        %v4785 = vld [vmem:[#allocation3 + $0x178] sm:$0xff]
        %v4786 = vld [vmem:[#allocation3 + $0x180] sm:$0xff]
        %v4787 = vld [vmem:[#allocation3 + $0x188] sm:$0xff]
        %v4788 = vld [vmem:[#allocation3 + $0x190] sm:$0xff]
        %v4789 = vld [vmem:[#allocation3 + $0x198] sm:$0xff]
        %v4790 = vld [vmem:[#allocation3 + $0x1a0] sm:$0xff]
        %v4791 = vld [vmem:[#allocation3 + $0x1a8] sm:$0xff]
        %v4792 = vld [vmem:[#allocation3 + $0x1b0] sm:$0xff]
        %v4793 = vld [vmem:[#allocation3 + $0x1b8] sm:$0xff]
        %v4794 = vld [vmem:[#allocation3 + $0x1c0] sm:$0xff]
        %v4795 = vld [vmem:[#allocation3 + $0x1c8] sm:$0xff]
        %v4796 = vld [vmem:[#allocation3 + $0x1d0] sm:$0xff]
        %v4797 = vld [vmem:[#allocation3 + $0x1d8] sm:$0xff]
        %v4798 = vld [vmem:[#allocation3 + $0x1e0] sm:$0xff]
        %v4799 = vld [vmem:[#allocation3 + $0x1e8] sm:$0xff]
        %v4800 = vld [vmem:[#allocation3 + $0x1f0] sm:$0xff]
        %v4801 = vld [vmem:[#allocation3 + $0x1f8] sm:$0xff]
        %v4802 = vld [vmem:[%s10] sm:$0xff]
        %v4803 = vld [vmem:[%s10 + $0x8] sm:$0xff]
        %v4804 = vld [vmem:[%s10 + $0x10] sm:$0xff]
        %v4805 = vld [vmem:[%s10 + $0x18] sm:$0xff]
        %v4806 = vld [vmem:[%s10 + $0x20] sm:$0xff]
        %v4807 = vld [vmem:[%s10 + $0x28] sm:$0xff]
        %v4808 = vld [vmem:[%s10 + $0x30] sm:$0xff]
        %v4809 = vld [vmem:[%s10 + $0x38] sm:$0xff]
        %v4810 = vld [vmem:[%s11] sm:$0x1]
        %v4812 = vlaneseq
        %v4813 = vshrl.u32 %v4812, 7
        %v4814 = vsub.s32 0, %v4813
        %v4815 = vrot.slane %v4810, %v4814
        %v4818 = vsel %vm1504, %v4738, 0
        %v4821 = vsel %vm1504, %v4739, 0
        %v4824 = vsel %vm1504, %v4740, 0
        %v4827 = vsel %vm1504, %v4741, 0
        %v4830 = vsel %vm1504, %v4742, 0
        %v4833 = vsel %vm1504, %v4743, 0
        %v4836 = vsel %vm1504, %v4744, 0
        %v4839 = vsel %vm1504, %v4745, 0
        %v4842 = vsel %vm1504, %v4746, 0
        %v4845 = vsel %vm1504, %v4747, 0
        %v4848 = vsel %vm1504, %v4748, 0
        %v4851 = vsel %vm1504, %v4749, 0
        %v4854 = vsel %vm1504, %v4750, 0
        %v4857 = vsel %vm1504, %v4751, 0
        %v4860 = vsel %vm1504, %v4752, 0
        %v4863 = vsel %vm1504, %v4753, 0
        %v4866 = vsel %vm1504, %v4754, 0
        %v4869 = vsel %vm1504, %v4755, 0
        %v4872 = vsel %vm1504, %v4756, 0
        %v4875 = vsel %vm1504, %v4757, 0
        %v4878 = vsel %vm1504, %v4758, 0
        %v4881 = vsel %vm1504, %v4759, 0
        %v4884 = vsel %vm1504, %v4760, 0
        %v4887 = vsel %vm1504, %v4761, 0
        %v4890 = vsel %vm1504, %v4762, 0
        %v4893 = vsel %vm1504, %v4763, 0
        %v4896 = vsel %vm1504, %v4764, 0
        %v4899 = vsel %vm1504, %v4765, 0
        %v4902 = vsel %vm1504, %v4766, 0
        %v4905 = vsel %vm1504, %v4767, 0
        %v4908 = vsel %vm1504, %v4768, 0
        %v4911 = vsel %vm1504, %v4769, 0
        %v4914 = vsel %vm1504, %v4770, 0
        %v4917 = vsel %vm1504, %v4771, 0
        %v4920 = vsel %vm1504, %v4772, 0
        %v4923 = vsel %vm1504, %v4773, 0
        %v4926 = vsel %vm1504, %v4774, 0
        %v4929 = vsel %vm1504, %v4775, 0
        %v4932 = vsel %vm1504, %v4776, 0
        %v4935 = vsel %vm1504, %v4777, 0
        %v4938 = vsel %vm1504, %v4778, 0
        %v4941 = vsel %vm1504, %v4779, 0
        %v4944 = vsel %vm1504, %v4780, 0
        %v4947 = vsel %vm1504, %v4781, 0
        %v4950 = vsel %vm1504, %v4782, 0
        %v4953 = vsel %vm1504, %v4783, 0
        %v4956 = vsel %vm1504, %v4784, 0
        %v4959 = vsel %vm1504, %v4785, 0
        %v4962 = vsel %vm1504, %v4786, 0
        %v4965 = vsel %vm1504, %v4787, 0
        %v4968 = vsel %vm1504, %v4788, 0
        %v4971 = vsel %vm1504, %v4789, 0
        %v4974 = vsel %vm1504, %v4790, 0
        %v4977 = vsel %vm1504, %v4791, 0
        %v4980 = vsel %vm1504, %v4792, 0
        %v4983 = vsel %vm1504, %v4793, 0
        %v4986 = vsel %vm1504, %v4794, 0
        %v4989 = vsel %vm1504, %v4795, 0
        %v4992 = vsel %vm1504, %v4796, 0
        %v4995 = vsel %vm1504, %v4797, 0
        %v4998 = vsel %vm1504, %v4798, 0
        %v5001 = vsel %vm1504, %v4799, 0
        %v5004 = vsel %vm1504, %v4800, 0
        %v5007 = vsel %vm1504, %v4801, 0
        %5009 = vmatprep.subr.mxu0 0.0
        %5010 = vmatpush1.msra.mxu0 %v4802
        %5011 = vmatprep.subr.mxu0 0.0
        %5012 = vmatpush1.msra.mxu0 %v4803
        %5013 = vmatprep.subr.mxu0 0.0
        %5014 = vmatpush1.msra.mxu0 %v4804
        %5015 = vmatprep.subr.mxu0 0.0
        %5016 = vmatpush1.msra.mxu0 %v4805
        %5017 = vmatprep.subr.mxu0 0.0
        %5018 = vmatpush1.msra.mxu0 %v4806
        %5019 = vmatprep.subr.mxu0 0.0
        %5020 = vmatpush1.msra.mxu0 %v4807
        %5021 = vmatprep.subr.mxu0 0.0
        %5022 = vmatpush1.msra.mxu0 %v4808
        %5023 = vmatprep.subr.mxu0 0.0
        %5024 = vmatpush1.msra.mxu0 %v4809
        %5025 = vmatprep.subr.mxu0 0.0
        %5026 = vmatpush1.msra.mxu0 0.0
        %5027 = vmatprep.subr.mxu0 0.0
        %5028 = vmatpush1.msra.mxu0 0.0
        %5029 = vmatprep.subr.mxu0 0.0
        %5030 = vmatpush1.msra.mxu0 0.0
        %5031 = vmatprep.subr.mxu0 0.0
        %5032 = vmatpush1.msra.mxu0 0.0
        %5033 = vmatprep.subr.mxu0 0.0
        %5034 = vmatpush1.msra.mxu0 0.0
        %5035 = vmatprep.subr.mxu0 0.0
        %5036 = vmatpush1.msra.mxu0 0.0
        %5037 = vmatprep.subr.mxu0 0.0
        %5038 = vmatpush1.msra.mxu0 0.0
        %5039 = vmatprep.subr.mxu0 0.0
        %5040 = vmatpush1.msra.mxu0 0.0
        %5041 = vmatprep.subr.mxu0 0.0
        %5042 = vmatpush1.msra.mxu0 0.0
        %5043 = vmatprep.subr.mxu0 0.0
        %5044 = vmatpush1.msra.mxu0 0.0
        %5045 = vmatprep.subr.mxu0 0.0
        %5046 = vmatpush1.msra.mxu0 0.0
        %5047 = vmatprep.subr.mxu0 0.0
        %5048 = vmatpush1.msra.mxu0 0.0
        %5049 = vmatprep.subr.mxu0 0.0
        %5050 = vmatpush1.msra.mxu0 0.0
        %5051 = vmatprep.subr.mxu0 0.0
        %5052 = vmatpush1.msra.mxu0 0.0
        %5053 = vmatprep.subr.mxu0 0.0
        %5054 = vmatpush1.msra.mxu0 0.0
        %5055 = vmatprep.subr.mxu0 0.0
        %5056 = vmatpush1.msra.mxu0 0.0
        %5057 = vmatprep.subr.mxu0 0.0
        %5058 = vmatpush1.msra.mxu0 0.0
        %5059 = vmatprep.subr.mxu0 0.0
        %5060 = vmatpush1.msra.mxu0 0.0
        %5061 = vmatprep.subr.mxu0 0.0
        %5062 = vmatpush1.msra.mxu0 0.0
        %5063 = vmatprep.subr.mxu0 0.0
        %5064 = vmatpush1.msra.mxu0 0.0
        %5065 = vmatprep.subr.mxu0 0.0
        %5066 = vmatpush1.msra.mxu0 0.0
        %5067 = vmatprep.subr.mxu0 0.0
        %5068 = vmatpush1.msra.mxu0 0.0
        %5069 = vmatprep.subr.mxu0 0.0
        %5070 = vmatpush1.msra.mxu0 0.0
        %5071 = vmatprep.subr.mxu0 0.0
        %5072 = vmatpush1.msra.mxu0 0.0
        %5073 = vmatprep.mubr.f32.mxu0 0.0
        %5074 = vmatmul.mubr.f32.gmra.mrb[0].mxu0 %v4818
        %v5075 = vpop.f32.mrb[0].mxu0
        %v5076 = vadd.f32 %v4815, %v5075
        %v5077 = vpop.f32.mrb[0].mxu0
        %5078 = vmatprep.mubr.f32.mxu0 0.0
        %5079 = vmatmul.mubr.f32.gmra.mrb[0].mxu0 %v4821
        %v5080 = vpop.f32.mrb[0].mxu0
        %v5081 = vadd.f32 %v4815, %v5080
        %v5082 = vpop.f32.mrb[0].mxu0
        %5083 = vmatprep.mubr.f32.mxu0 0.0
        %5084 = vmatmul.mubr.f32.gmra.mrb[0].mxu0 %v4824
        %v5085 = vpop.f32.mrb[0].mxu0
        %v5086 = vadd.f32 %v4815, %v5085
        %v5087 = vpop.f32.mrb[0].mxu0
        %5088 = vmatprep.mubr.f32.mxu0 0.0
        %5089 = vmatmul.mubr.f32.gmra.mrb[0].mxu0 %v4827
        %v5090 = vpop.f32.mrb[0].mxu0
        %v5091 = vadd.f32 %v4815, %v5090
        %v5092 = vpop.f32.mrb[0].mxu0
        %5093 = vmatprep.mubr.f32.mxu0 0.0
        %5094 = vmatmul.mubr.f32.gmra.mrb[0].mxu0 %v4830
        %v5095 = vpop.f32.mrb[0].mxu0
        %v5096 = vadd.f32 %v4815, %v5095
        %v5097 = vpop.f32.mrb[0].mxu0
        %5098 = vmatprep.mubr.f32.mxu0 0.0
        %5099 = vmatmul.mubr.f32.gmra.mrb[0].mxu0 %v4833
        %v5100 = vpop.f32.mrb[0].mxu0
        %v5101 = vadd.f32 %v4815, %v5100
        %v5102 = vpop.f32.mrb[0].mxu0
        %5103 = vmatprep.mubr.f32.mxu0 0.0
        %5104 = vmatmul.mubr.f32.gmra.mrb[0].mxu0 %v4836
        %v5105 = vpop.f32.mrb[0].mxu0
        %v5106 = vadd.f32 %v4815, %v5105
        %v5107 = vpop.f32.mrb[0].mxu0
        %5108 = vmatprep.mubr.f32.mxu0 0.0
        %5109 = vmatmul.mubr.f32.gmra.mrb[0].mxu0 %v4839
        %v5110 = vpop.f32.mrb[0].mxu0
        %v5111 = vadd.f32 %v4815, %v5110
        %v5112 = vpop.f32.mrb[0].mxu0
        %5113 = vmatprep.mubr.f32.mxu0 0.0
        %5114 = vmatmul.mubr.f32.gmra.mrb[0].mxu0 %v4842
        %v5115 = vpop.f32.mrb[0].mxu0
        %v5116 = vadd.f32 %v4815, %v5115
        %v5117 = vpop.f32.mrb[0].mxu0
        %5118 = vmatprep.mubr.f32.mxu0 0.0
        %5119 = vmatmul.mubr.f32.gmra.mrb[0].mxu0 %v4845
        %v5120 = vpop.f32.mrb[0].mxu0
        %v5121 = vadd.f32 %v4815, %v5120
        %v5122 = vpop.f32.mrb[0].mxu0
        %5123 = vmatprep.mubr.f32.mxu0 0.0
        %5124 = vmatmul.mubr.f32.gmra.mrb[0].mxu0 %v4848
        %v5125 = vpop.f32.mrb[0].mxu0
        %v5126 = vadd.f32 %v4815, %v5125
        %v5127 = vpop.f32.mrb[0].mxu0
        %5128 = vmatprep.mubr.f32.mxu0 0.0
        %5129 = vmatmul.mubr.f32.gmra.mrb[0].mxu0 %v4851
        %v5130 = vpop.f32.mrb[0].mxu0
        %v5131 = vadd.f32 %v4815, %v5130
        %v5132 = vpop.f32.mrb[0].mxu0
        %5133 = vmatprep.mubr.f32.mxu0 0.0
        %5134 = vmatmul.mubr.f32.gmra.mrb[0].mxu0 %v4854
        %v5135 = vpop.f32.mrb[0].mxu0
        %v5136 = vadd.f32 %v4815, %v5135
        %v5137 = vpop.f32.mrb[0].mxu0
        %5138 = vmatprep.mubr.f32.mxu0 0.0
        %5139 = vmatmul.mubr.f32.gmra.mrb[0].mxu0 %v4857
        %v5140 = vpop.f32.mrb[0].mxu0
        %v5141 = vadd.f32 %v4815, %v5140
        %v5142 = vpop.f32.mrb[0].mxu0
        %5143 = vmatprep.mubr.f32.mxu0 0.0
        %5144 = vmatmul.mubr.f32.gmra.mrb[0].mxu0 %v4860
        %v5145 = vpop.f32.mrb[0].mxu0
        %v5146 = vadd.f32 %v4815, %v5145
        %v5147 = vpop.f32.mrb[0].mxu0
        %5148 = vmatprep.mubr.f32.mxu0 0.0
        %5149 = vmatmul.mubr.f32.gmra.mrb[0].mxu0 %v4863
        %v5150 = vpop.f32.mrb[0].mxu0
        %v5151 = vadd.f32 %v4815, %v5150
        %v5152 = vpop.f32.mrb[0].mxu0
        %5153 = vmatprep.mubr.f32.mxu0 0.0
        %5154 = vmatmul.mubr.f32.gmra.mrb[0].mxu0 %v4866
        %v5155 = vpop.f32.mrb[0].mxu0
        %v5156 = vadd.f32 %v4815, %v5155
        %v5157 = vpop.f32.mrb[0].mxu0
        %5158 = vmatprep.mubr.f32.mxu0 0.0
        %5159 = vmatmul.mubr.f32.gmra.mrb[0].mxu0 %v4869
        %v5160 = vpop.f32.mrb[0].mxu0
        %v5161 = vadd.f32 %v4815, %v5160
        %v5162 = vpop.f32.mrb[0].mxu0
        %5163 = vmatprep.mubr.f32.mxu0 0.0
        %5164 = vmatmul.mubr.f32.gmra.mrb[0].mxu0 %v4872
        %v5165 = vpop.f32.mrb[0].mxu0
        %v5166 = vadd.f32 %v4815, %v5165
        %v5167 = vpop.f32.mrb[0].mxu0
        %5168 = vmatprep.mubr.f32.mxu0 0.0
        %5169 = vmatmul.mubr.f32.gmra.mrb[0].mxu0 %v4875
        %v5170 = vpop.f32.mrb[0].mxu0
        %v5171 = vadd.f32 %v4815, %v5170
        %v5172 = vpop.f32.mrb[0].mxu0
        %5173 = vmatprep.mubr.f32.mxu0 0.0
        %5174 = vmatmul.mubr.f32.gmra.mrb[0].mxu0 %v4878
        %v5175 = vpop.f32.mrb[0].mxu0
        %v5176 = vadd.f32 %v4815, %v5175
        %v5177 = vpop.f32.mrb[0].mxu0
        %5178 = vmatprep.mubr.f32.mxu0 0.0
        %5179 = vmatmul.mubr.f32.gmra.mrb[0].mxu0 %v4881
        %v5180 = vpop.f32.mrb[0].mxu0
        %v5181 = vadd.f32 %v4815, %v5180
        %v5182 = vpop.f32.mrb[0].mxu0
        %5183 = vmatprep.mubr.f32.mxu0 0.0
        %5184 = vmatmul.mubr.f32.gmra.mrb[0].mxu0 %v4884
        %v5185 = vpop.f32.mrb[0].mxu0
        %v5186 = vadd.f32 %v4815, %v5185
        %v5187 = vpop.f32.mrb[0].mxu0
        %5188 = vmatprep.mubr.f32.mxu0 0.0
        %5189 = vmatmul.mubr.f32.gmra.mrb[0].mxu0 %v4887
        %v5190 = vpop.f32.mrb[0].mxu0
        %v5191 = vadd.f32 %v4815, %v5190
        %v5192 = vpop.f32.mrb[0].mxu0
        %5193 = vmatprep.mubr.f32.mxu0 0.0
        %5194 = vmatmul.mubr.f32.gmra.mrb[0].mxu0 %v4890
        %v5195 = vpop.f32.mrb[0].mxu0
        %v5196 = vadd.f32 %v4815, %v5195
        %v5197 = vpop.f32.mrb[0].mxu0
        %5198 = vmatprep.mubr.f32.mxu0 0.0
        %5199 = vmatmul.mubr.f32.gmra.mrb[0].mxu0 %v4893
        %v5200 = vpop.f32.mrb[0].mxu0
        %v5201 = vadd.f32 %v4815, %v5200
        %v5202 = vpop.f32.mrb[0].mxu0
        %5203 = vmatprep.mubr.f32.mxu0 0.0
        %5204 = vmatmul.mubr.f32.gmra.mrb[0].mxu0 %v4896
        %v5205 = vpop.f32.mrb[0].mxu0
        %v5206 = vadd.f32 %v4815, %v5205
        %v5207 = vpop.f32.mrb[0].mxu0
        %5208 = vmatprep.mubr.f32.mxu0 0.0
        %5209 = vmatmul.mubr.f32.gmra.mrb[0].mxu0 %v4899
        %v5210 = vpop.f32.mrb[0].mxu0
        %v5211 = vadd.f32 %v4815, %v5210
        %v5212 = vpop.f32.mrb[0].mxu0
        %5213 = vmatprep.mubr.f32.mxu0 0.0
        %5214 = vmatmul.mubr.f32.gmra.mrb[0].mxu0 %v4902
        %v5215 = vpop.f32.mrb[0].mxu0
        %v5216 = vadd.f32 %v4815, %v5215
        %v5217 = vpop.f32.mrb[0].mxu0
        %5218 = vmatprep.mubr.f32.mxu0 0.0
        %5219 = vmatmul.mubr.f32.gmra.mrb[0].mxu0 %v4905
        %v5220 = vpop.f32.mrb[0].mxu0
        %v5221 = vadd.f32 %v4815, %v5220
        %v5222 = vpop.f32.mrb[0].mxu0
        %5223 = vmatprep.mubr.f32.mxu0 0.0
        %5224 = vmatmul.mubr.f32.gmra.mrb[0].mxu0 %v4908
        %v5225 = vpop.f32.mrb[0].mxu0
        %v5226 = vadd.f32 %v4815, %v5225
        %v5227 = vpop.f32.mrb[0].mxu0
        %5228 = vmatprep.mubr.f32.mxu0 0.0
        %5229 = vmatmul.mubr.f32.gmra.mrb[0].mxu0 %v4911
        %v5230 = vpop.f32.mrb[0].mxu0
        %v5231 = vadd.f32 %v4815, %v5230
        %v5232 = vpop.f32.mrb[0].mxu0
        %5233 = vmatprep.mubr.f32.mxu0 0.0
        %5234 = vmatmul.mubr.f32.gmra.mrb[0].mxu0 %v4914
        %v5235 = vpop.f32.mrb[0].mxu0
        %v5236 = vadd.f32 %v4815, %v5235
        %v5237 = vpop.f32.mrb[0].mxu0
        %5238 = vmatprep.mubr.f32.mxu0 0.0
        %5239 = vmatmul.mubr.f32.gmra.mrb[0].mxu0 %v4917
        %v5240 = vpop.f32.mrb[0].mxu0
        %v5241 = vadd.f32 %v4815, %v5240
        %v5242 = vpop.f32.mrb[0].mxu0
        %5243 = vmatprep.mubr.f32.mxu0 0.0
        %5244 = vmatmul.mubr.f32.gmra.mrb[0].mxu0 %v4920
        %v5245 = vpop.f32.mrb[0].mxu0
        %v5246 = vadd.f32 %v4815, %v5245
        %v5247 = vpop.f32.mrb[0].mxu0
        %5248 = vmatprep.mubr.f32.mxu0 0.0
        %5249 = vmatmul.mubr.f32.gmra.mrb[0].mxu0 %v4923
        %v5250 = vpop.f32.mrb[0].mxu0
        %v5251 = vadd.f32 %v4815, %v5250
        %v5252 = vpop.f32.mrb[0].mxu0
        %5253 = vmatprep.mubr.f32.mxu0 0.0
        %5254 = vmatmul.mubr.f32.gmra.mrb[0].mxu0 %v4926
        %v5255 = vpop.f32.mrb[0].mxu0
        %v5256 = vadd.f32 %v4815, %v5255
        %v5257 = vpop.f32.mrb[0].mxu0
        %5258 = vmatprep.mubr.f32.mxu0 0.0
        %5259 = vmatmul.mubr.f32.gmra.mrb[0].mxu0 %v4929
        %v5260 = vpop.f32.mrb[0].mxu0
        %v5261 = vadd.f32 %v4815, %v5260
        %v5262 = vpop.f32.mrb[0].mxu0
        %5263 = vmatprep.mubr.f32.mxu0 0.0
        %5264 = vmatmul.mubr.f32.gmra.mrb[0].mxu0 %v4932
        %v5265 = vpop.f32.mrb[0].mxu0
        %v5266 = vadd.f32 %v4815, %v5265
        %v5267 = vpop.f32.mrb[0].mxu0
        %5268 = vmatprep.mubr.f32.mxu0 0.0
        %5269 = vmatmul.mubr.f32.gmra.mrb[0].mxu0 %v4935
        %v5270 = vpop.f32.mrb[0].mxu0
        %v5271 = vadd.f32 %v4815, %v5270
        %v5272 = vpop.f32.mrb[0].mxu0
        %5273 = vmatprep.mubr.f32.mxu0 0.0
        %5274 = vmatmul.mubr.f32.gmra.mrb[0].mxu0 %v4938
        %v5275 = vpop.f32.mrb[0].mxu0
        %v5276 = vadd.f32 %v4815, %v5275
        %v5277 = vpop.f32.mrb[0].mxu0
        %5278 = vmatprep.mubr.f32.mxu0 0.0
        %5279 = vmatmul.mubr.f32.gmra.mrb[0].mxu0 %v4941
        %v5280 = vpop.f32.mrb[0].mxu0
        %v5281 = vadd.f32 %v4815, %v5280
        %v5282 = vpop.f32.mrb[0].mxu0
        %5283 = vmatprep.mubr.f32.mxu0 0.0
        %5284 = vmatmul.mubr.f32.gmra.mrb[0].mxu0 %v4944
        %v5285 = vpop.f32.mrb[0].mxu0
        %v5286 = vadd.f32 %v4815, %v5285
        %v5287 = vpop.f32.mrb[0].mxu0
        %5288 = vmatprep.mubr.f32.mxu0 0.0
        %5289 = vmatmul.mubr.f32.gmra.mrb[0].mxu0 %v4947
        %v5290 = vpop.f32.mrb[0].mxu0
        %v5291 = vadd.f32 %v4815, %v5290
        %v5292 = vpop.f32.mrb[0].mxu0
        %5293 = vmatprep.mubr.f32.mxu0 0.0
        %5294 = vmatmul.mubr.f32.gmra.mrb[0].mxu0 %v4950
        %v5295 = vpop.f32.mrb[0].mxu0
        %v5296 = vadd.f32 %v4815, %v5295
        %v5297 = vpop.f32.mrb[0].mxu0
        %5298 = vmatprep.mubr.f32.mxu0 0.0
        %5299 = vmatmul.mubr.f32.gmra.mrb[0].mxu0 %v4953
        %v5300 = vpop.f32.mrb[0].mxu0
        %v5301 = vadd.f32 %v4815, %v5300
        %v5302 = vpop.f32.mrb[0].mxu0
        %5303 = vmatprep.mubr.f32.mxu0 0.0
        %5304 = vmatmul.mubr.f32.gmra.mrb[0].mxu0 %v4956
        %v5305 = vpop.f32.mrb[0].mxu0
        %v5306 = vadd.f32 %v4815, %v5305
        %v5307 = vpop.f32.mrb[0].mxu0
        %5308 = vmatprep.mubr.f32.mxu0 0.0
        %5309 = vmatmul.mubr.f32.gmra.mrb[0].mxu0 %v4959
        %v5310 = vpop.f32.mrb[0].mxu0
        %v5311 = vadd.f32 %v4815, %v5310
        %v5312 = vpop.f32.mrb[0].mxu0
        %5313 = vmatprep.mubr.f32.mxu0 0.0
        %5314 = vmatmul.mubr.f32.gmra.mrb[0].mxu0 %v4962
        %v5315 = vpop.f32.mrb[0].mxu0
        %v5316 = vadd.f32 %v4815, %v5315
        %v5317 = vpop.f32.mrb[0].mxu0
        %5318 = vmatprep.mubr.f32.mxu0 0.0
        %5319 = vmatmul.mubr.f32.gmra.mrb[0].mxu0 %v4965
        %v5320 = vpop.f32.mrb[0].mxu0
        %v5321 = vadd.f32 %v4815, %v5320
        %v5322 = vpop.f32.mrb[0].mxu0
        %5323 = vmatprep.mubr.f32.mxu0 0.0
        %5324 = vmatmul.mubr.f32.gmra.mrb[0].mxu0 %v4968
        %v5325 = vpop.f32.mrb[0].mxu0
        %v5326 = vadd.f32 %v4815, %v5325
        %v5327 = vpop.f32.mrb[0].mxu0
        %5328 = vmatprep.mubr.f32.mxu0 0.0
        %5329 = vmatmul.mubr.f32.gmra.mrb[0].mxu0 %v4971
        %v5330 = vpop.f32.mrb[0].mxu0
        %v5331 = vadd.f32 %v4815, %v5330
        %v5332 = vpop.f32.mrb[0].mxu0
        %5333 = vmatprep.mubr.f32.mxu0 0.0
        %5334 = vmatmul.mubr.f32.gmra.mrb[0].mxu0 %v4974
        %v5335 = vpop.f32.mrb[0].mxu0
        %v5336 = vadd.f32 %v4815, %v5335
        %v5337 = vpop.f32.mrb[0].mxu0
        %5338 = vmatprep.mubr.f32.mxu0 0.0
        %5339 = vmatmul.mubr.f32.gmra.mrb[0].mxu0 %v4977
        %v5340 = vpop.f32.mrb[0].mxu0
        %v5341 = vadd.f32 %v4815, %v5340
        %v5342 = vpop.f32.mrb[0].mxu0
        %5343 = vmatprep.mubr.f32.mxu0 0.0
        %5344 = vmatmul.mubr.f32.gmra.mrb[0].mxu0 %v4980
        %v5345 = vpop.f32.mrb[0].mxu0
        %v5346 = vadd.f32 %v4815, %v5345
        %v5347 = vpop.f32.mrb[0].mxu0
        %5348 = vmatprep.mubr.f32.mxu0 0.0
        %5349 = vmatmul.mubr.f32.gmra.mrb[0].mxu0 %v4983
        %v5350 = vpop.f32.mrb[0].mxu0
        %v5351 = vadd.f32 %v4815, %v5350
        %v5352 = vpop.f32.mrb[0].mxu0
        %5353 = vmatprep.mubr.f32.mxu0 0.0
        %5354 = vmatmul.mubr.f32.gmra.mrb[0].mxu0 %v4986
        %v5355 = vpop.f32.mrb[0].mxu0
        %v5356 = vadd.f32 %v4815, %v5355
        %v5357 = vpop.f32.mrb[0].mxu0
        %5358 = vmatprep.mubr.f32.mxu0 0.0
        %5359 = vmatmul.mubr.f32.gmra.mrb[0].mxu0 %v4989
        %v5360 = vpop.f32.mrb[0].mxu0
        %v5361 = vadd.f32 %v4815, %v5360
        %v5362 = vpop.f32.mrb[0].mxu0
        %5363 = vmatprep.mubr.f32.mxu0 0.0
        %5364 = vmatmul.mubr.f32.gmra.mrb[0].mxu0 %v4992
        %v5365 = vpop.f32.mrb[0].mxu0
        %v5366 = vadd.f32 %v4815, %v5365
        %v5367 = vpop.f32.mrb[0].mxu0
        %5368 = vmatprep.mubr.f32.mxu0 0.0
        %5369 = vmatmul.mubr.f32.gmra.mrb[0].mxu0 %v4995
        %v5370 = vpop.f32.mrb[0].mxu0
        %v5371 = vadd.f32 %v4815, %v5370
        %v5372 = vpop.f32.mrb[0].mxu0
        %5373 = vmatprep.mubr.f32.mxu0 0.0
        %5374 = vmatmul.mubr.f32.gmra.mrb[0].mxu0 %v4998
        %v5375 = vpop.f32.mrb[0].mxu0
        %v5376 = vadd.f32 %v4815, %v5375
        %v5377 = vpop.f32.mrb[0].mxu0
        %5378 = vmatprep.mubr.f32.mxu0 0.0
        %5379 = vmatmul.mubr.f32.gmra.mrb[0].mxu0 %v5001
        %v5380 = vpop.f32.mrb[0].mxu0
        %v5381 = vadd.f32 %v4815, %v5380
        %v5382 = vpop.f32.mrb[0].mxu0
        %5383 = vmatprep.mubr.f32.mxu0 0.0
        %5384 = vmatmul.mubr.f32.gmra.mrb[0].mxu0 %v5004
        %v5385 = vpop.f32.mrb[0].mxu0
        %v5386 = vadd.f32 %v4815, %v5385
        %v5387 = vpop.f32.mrb[0].mxu0
        %5388 = vmatprep.mubr.f32.mxu0 0.0
        %5389 = vmatmul.mubr.f32.gmra.mrb[0].mxu0 %v5007
        %v5390 = vpop.f32.mrb[0].mxu0
        %v5391 = vadd.f32 %v4815, %v5390
        %v5392 = vpop.f32.mrb[0].mxu0
        %5393 = vdwg.mxu0
        %v5394 = vmax.f32 %v5076, 0.0
        %v5395 = vmax.f32 %v5081, 0.0
        %v5396 = vmax.f32 %v5086, 0.0
        %v5397 = vmax.f32 %v5091, 0.0
        %v5398 = vmax.f32 %v5096, 0.0
        %v5399 = vmax.f32 %v5101, 0.0
        %v5400 = vmax.f32 %v5106, 0.0
        %v5401 = vmax.f32 %v5111, 0.0
        %v5402 = vmax.f32 %v5116, 0.0
        %v5403 = vmax.f32 %v5121, 0.0
        %v5404 = vmax.f32 %v5126, 0.0
        %v5405 = vmax.f32 %v5131, 0.0
        %v5406 = vmax.f32 %v5136, 0.0
        %v5407 = vmax.f32 %v5141, 0.0
        %v5408 = vmax.f32 %v5146, 0.0
        %v5409 = vmax.f32 %v5151, 0.0
        %v5410 = vmax.f32 %v5156, 0.0
        %v5411 = vmax.f32 %v5161, 0.0
        %v5412 = vmax.f32 %v5166, 0.0
        %v5413 = vmax.f32 %v5171, 0.0
        %v5414 = vmax.f32 %v5176, 0.0
        %v5415 = vmax.f32 %v5181, 0.0
        %v5416 = vmax.f32 %v5186, 0.0
        %v5417 = vmax.f32 %v5191, 0.0
        %v5418 = vmax.f32 %v5196, 0.0
        %v5419 = vmax.f32 %v5201, 0.0
        %v5420 = vmax.f32 %v5206, 0.0
        %v5421 = vmax.f32 %v5211, 0.0
        %v5422 = vmax.f32 %v5216, 0.0
        %v5423 = vmax.f32 %v5221, 0.0
        %v5424 = vmax.f32 %v5226, 0.0
        %v5425 = vmax.f32 %v5231, 0.0
        %v5426 = vmax.f32 %v5236, 0.0
        %v5427 = vmax.f32 %v5241, 0.0
        %v5428 = vmax.f32 %v5246, 0.0
        %v5429 = vmax.f32 %v5251, 0.0
        %v5430 = vmax.f32 %v5256, 0.0
        %v5431 = vmax.f32 %v5261, 0.0
        %v5432 = vmax.f32 %v5266, 0.0
        %v5433 = vmax.f32 %v5271, 0.0
        %v5434 = vmax.f32 %v5276, 0.0
        %v5435 = vmax.f32 %v5281, 0.0
        %v5436 = vmax.f32 %v5286, 0.0
        %v5437 = vmax.f32 %v5291, 0.0
        %v5438 = vmax.f32 %v5296, 0.0
        %v5439 = vmax.f32 %v5301, 0.0
        %v5440 = vmax.f32 %v5306, 0.0
        %v5441 = vmax.f32 %v5311, 0.0
        %v5442 = vmax.f32 %v5316, 0.0
        %v5443 = vmax.f32 %v5321, 0.0
        %v5444 = vmax.f32 %v5326, 0.0
        %v5445 = vmax.f32 %v5331, 0.0
        %v5446 = vmax.f32 %v5336, 0.0
        %v5447 = vmax.f32 %v5341, 0.0
        %v5448 = vmax.f32 %v5346, 0.0
        %v5449 = vmax.f32 %v5351, 0.0
        %v5450 = vmax.f32 %v5356, 0.0
        %v5451 = vmax.f32 %v5361, 0.0
        %v5452 = vmax.f32 %v5366, 0.0
        %v5453 = vmax.f32 %v5371, 0.0
        %v5454 = vmax.f32 %v5376, 0.0
        %v5455 = vmax.f32 %v5381, 0.0
        %v5456 = vmax.f32 %v5386, 0.0
        %v5457 = vmax.f32 %v5391, 0.0
        %v5458 = vld [vmem:[%s12] sm:$0x1]
        %v5460 = vlaneseq
        %v5461 = vshrl.u32 %v5460, 7
        %v5462 = vsub.s32 0, %v5461
        %v5463 = vrot.slane %v5458, %v5462
        %v5465 = vmul.f32 %v5394, %v5463
        %v5466 = vmul.f32 %v5395, %v5463
        %v5467 = vmul.f32 %v5396, %v5463
        %v5468 = vmul.f32 %v5397, %v5463
        %v5469 = vmul.f32 %v5398, %v5463
        %v5470 = vmul.f32 %v5399, %v5463
        %v5471 = vmul.f32 %v5400, %v5463
        %v5472 = vmul.f32 %v5401, %v5463
        %v5473 = vmul.f32 %v5402, %v5463
        %v5474 = vmul.f32 %v5403, %v5463
        %v5475 = vmul.f32 %v5404, %v5463
        %v5476 = vmul.f32 %v5405, %v5463
        %v5477 = vmul.f32 %v5406, %v5463
        %v5478 = vmul.f32 %v5407, %v5463
        %v5479 = vmul.f32 %v5408, %v5463
        %v5480 = vmul.f32 %v5409, %v5463
        %v5481 = vmul.f32 %v5410, %v5463
        %v5482 = vmul.f32 %v5411, %v5463
        %v5483 = vmul.f32 %v5412, %v5463
        %v5484 = vmul.f32 %v5413, %v5463
        %v5485 = vmul.f32 %v5414, %v5463
        %v5486 = vmul.f32 %v5415, %v5463
        %v5487 = vmul.f32 %v5416, %v5463
        %v5488 = vmul.f32 %v5417, %v5463
        %v5489 = vmul.f32 %v5418, %v5463
        %v5490 = vmul.f32 %v5419, %v5463
        %v5491 = vmul.f32 %v5420, %v5463
        %v5492 = vmul.f32 %v5421, %v5463
        %v5493 = vmul.f32 %v5422, %v5463
        %v5494 = vmul.f32 %v5423, %v5463
        %v5495 = vmul.f32 %v5424, %v5463
        %v5496 = vmul.f32 %v5425, %v5463
        %v5497 = vmul.f32 %v5426, %v5463
        %v5498 = vmul.f32 %v5427, %v5463
        %v5499 = vmul.f32 %v5428, %v5463
        %v5500 = vmul.f32 %v5429, %v5463
        %v5501 = vmul.f32 %v5430, %v5463
        %v5502 = vmul.f32 %v5431, %v5463
        %v5503 = vmul.f32 %v5432, %v5463
        %v5504 = vmul.f32 %v5433, %v5463
        %v5505 = vmul.f32 %v5434, %v5463
        %v5506 = vmul.f32 %v5435, %v5463
        %v5507 = vmul.f32 %v5436, %v5463
        %v5508 = vmul.f32 %v5437, %v5463
        %v5509 = vmul.f32 %v5438, %v5463
        %v5510 = vmul.f32 %v5439, %v5463
        %v5511 = vmul.f32 %v5440, %v5463
        %v5512 = vmul.f32 %v5441, %v5463
        %v5513 = vmul.f32 %v5442, %v5463
        %v5514 = vmul.f32 %v5443, %v5463
        %v5515 = vmul.f32 %v5444, %v5463
        %v5516 = vmul.f32 %v5445, %v5463
        %v5517 = vmul.f32 %v5446, %v5463
        %v5518 = vmul.f32 %v5447, %v5463
        %v5519 = vmul.f32 %v5448, %v5463
        %v5520 = vmul.f32 %v5449, %v5463
        %v5521 = vmul.f32 %v5450, %v5463
        %v5522 = vmul.f32 %v5451, %v5463
        %v5523 = vmul.f32 %v5452, %v5463
        %v5524 = vmul.f32 %v5453, %v5463
        %v5525 = vmul.f32 %v5454, %v5463
        %v5526 = vmul.f32 %v5455, %v5463
        %v5527 = vmul.f32 %v5456, %v5463
        %v5528 = vmul.f32 %v5457, %v5463
        %v5529 = vsel %vm1504, %v5465, 0.0
        %5530 = vadd.xlane.f32.xlu0 %v5529
        %v5531 = vpop.xlane.xlu0 %5530
        %v5532 = vsel %vm1504, %v5466, 0.0
        %5533 = vadd.xlane.f32.xlu0 %v5532
        %v5534 = vpop.xlane.xlu0 %5533
        %v5535 = vsel %vm1504, %v5467, 0.0
        %5536 = vadd.xlane.f32.xlu0 %v5535
        %v5537 = vpop.xlane.xlu0 %5536
        %v5538 = vsel %vm1504, %v5468, 0.0
        %5539 = vadd.xlane.f32.xlu0 %v5538
        %v5540 = vpop.xlane.xlu0 %5539
        %v5541 = vsel %vm1504, %v5469, 0.0
        %5542 = vadd.xlane.f32.xlu0 %v5541
        %v5543 = vpop.xlane.xlu0 %5542
        %v5544 = vsel %vm1504, %v5470, 0.0
        %5545 = vadd.xlane.f32.xlu0 %v5544
        %v5546 = vpop.xlane.xlu0 %5545
        %v5547 = vsel %vm1504, %v5471, 0.0
        %5548 = vadd.xlane.f32.xlu0 %v5547
        %v5549 = vpop.xlane.xlu0 %5548
        %v5550 = vsel %vm1504, %v5472, 0.0
        %5551 = vadd.xlane.f32.xlu0 %v5550
        %v5552 = vpop.xlane.xlu0 %5551
        %v5553 = vsel %vm1504, %v5473, 0.0
        %5554 = vadd.xlane.f32.xlu0 %v5553
        %v5555 = vpop.xlane.xlu0 %5554
        %v5556 = vsel %vm1504, %v5474, 0.0
        %5557 = vadd.xlane.f32.xlu0 %v5556
        %v5558 = vpop.xlane.xlu0 %5557
        %v5559 = vsel %vm1504, %v5475, 0.0
        %5560 = vadd.xlane.f32.xlu0 %v5559
        %v5561 = vpop.xlane.xlu0 %5560
        %v5562 = vsel %vm1504, %v5476, 0.0
        %5563 = vadd.xlane.f32.xlu0 %v5562
        %v5564 = vpop.xlane.xlu0 %5563
        %v5565 = vsel %vm1504, %v5477, 0.0
        %5566 = vadd.xlane.f32.xlu0 %v5565
        %v5567 = vpop.xlane.xlu0 %5566
        %v5568 = vsel %vm1504, %v5478, 0.0
        %5569 = vadd.xlane.f32.xlu0 %v5568
        %v5570 = vpop.xlane.xlu0 %5569
        %v5571 = vsel %vm1504, %v5479, 0.0
        %5572 = vadd.xlane.f32.xlu0 %v5571
        %v5573 = vpop.xlane.xlu0 %5572
        %v5574 = vsel %vm1504, %v5480, 0.0
        %5575 = vadd.xlane.f32.xlu0 %v5574
        %v5576 = vpop.xlane.xlu0 %5575
        %v5577 = vsel %vm1504, %v5481, 0.0
        %5578 = vadd.xlane.f32.xlu0 %v5577
        %v5579 = vpop.xlane.xlu0 %5578
        %v5580 = vsel %vm1504, %v5482, 0.0
        %5581 = vadd.xlane.f32.xlu0 %v5580
        %v5582 = vpop.xlane.xlu0 %5581
        %v5583 = vsel %vm1504, %v5483, 0.0
        %5584 = vadd.xlane.f32.xlu0 %v5583
        %v5585 = vpop.xlane.xlu0 %5584
        %v5586 = vsel %vm1504, %v5484, 0.0
        %5587 = vadd.xlane.f32.xlu0 %v5586
        %v5588 = vpop.xlane.xlu0 %5587
        %v5589 = vsel %vm1504, %v5485, 0.0
        %5590 = vadd.xlane.f32.xlu0 %v5589
        %v5591 = vpop.xlane.xlu0 %5590
        %v5592 = vsel %vm1504, %v5486, 0.0
        %5593 = vadd.xlane.f32.xlu0 %v5592
        %v5594 = vpop.xlane.xlu0 %5593
        %v5595 = vsel %vm1504, %v5487, 0.0
        %5596 = vadd.xlane.f32.xlu0 %v5595
        %v5597 = vpop.xlane.xlu0 %5596
        %v5598 = vsel %vm1504, %v5488, 0.0
        %5599 = vadd.xlane.f32.xlu0 %v5598
        %v5600 = vpop.xlane.xlu0 %5599
        %v5601 = vsel %vm1504, %v5489, 0.0
        %5602 = vadd.xlane.f32.xlu0 %v5601
        %v5603 = vpop.xlane.xlu0 %5602
        %v5604 = vsel %vm1504, %v5490, 0.0
        %5605 = vadd.xlane.f32.xlu0 %v5604
        %v5606 = vpop.xlane.xlu0 %5605
        %v5607 = vsel %vm1504, %v5491, 0.0
        %5608 = vadd.xlane.f32.xlu0 %v5607
        %v5609 = vpop.xlane.xlu0 %5608
        %v5610 = vsel %vm1504, %v5492, 0.0
        %5611 = vadd.xlane.f32.xlu0 %v5610
        %v5612 = vpop.xlane.xlu0 %5611
        %v5613 = vsel %vm1504, %v5493, 0.0
        %5614 = vadd.xlane.f32.xlu0 %v5613
        %v5615 = vpop.xlane.xlu0 %5614
        %v5616 = vsel %vm1504, %v5494, 0.0
        %5617 = vadd.xlane.f32.xlu0 %v5616
        %v5618 = vpop.xlane.xlu0 %5617
        %v5619 = vsel %vm1504, %v5495, 0.0
        %5620 = vadd.xlane.f32.xlu0 %v5619
        %v5621 = vpop.xlane.xlu0 %5620
        %v5622 = vsel %vm1504, %v5496, 0.0
        %5623 = vadd.xlane.f32.xlu0 %v5622
        %v5624 = vpop.xlane.xlu0 %5623
        %v5625 = vsel %vm1504, %v5497, 0.0
        %5626 = vadd.xlane.f32.xlu0 %v5625
        %v5627 = vpop.xlane.xlu0 %5626
        %v5628 = vsel %vm1504, %v5498, 0.0
        %5629 = vadd.xlane.f32.xlu0 %v5628
        %v5630 = vpop.xlane.xlu0 %5629
        %v5631 = vsel %vm1504, %v5499, 0.0
        %5632 = vadd.xlane.f32.xlu0 %v5631
        %v5633 = vpop.xlane.xlu0 %5632
        %v5634 = vsel %vm1504, %v5500, 0.0
        %5635 = vadd.xlane.f32.xlu0 %v5634
        %v5636 = vpop.xlane.xlu0 %5635
        %v5637 = vsel %vm1504, %v5501, 0.0
        %5638 = vadd.xlane.f32.xlu0 %v5637
        %v5639 = vpop.xlane.xlu0 %5638
        %v5640 = vsel %vm1504, %v5502, 0.0
        %5641 = vadd.xlane.f32.xlu0 %v5640
        %v5642 = vpop.xlane.xlu0 %5641
        %v5643 = vsel %vm1504, %v5503, 0.0
        %5644 = vadd.xlane.f32.xlu0 %v5643
        %v5645 = vpop.xlane.xlu0 %5644
        %v5646 = vsel %vm1504, %v5504, 0.0
        %5647 = vadd.xlane.f32.xlu0 %v5646
        %v5648 = vpop.xlane.xlu0 %5647
        %v5649 = vsel %vm1504, %v5505, 0.0
        %5650 = vadd.xlane.f32.xlu0 %v5649
        %v5651 = vpop.xlane.xlu0 %5650
        %v5652 = vsel %vm1504, %v5506, 0.0
        %5653 = vadd.xlane.f32.xlu0 %v5652
        %v5654 = vpop.xlane.xlu0 %5653
        %v5655 = vsel %vm1504, %v5507, 0.0
        %5656 = vadd.xlane.f32.xlu0 %v5655
        %v5657 = vpop.xlane.xlu0 %5656
        %v5658 = vsel %vm1504, %v5508, 0.0
        %5659 = vadd.xlane.f32.xlu0 %v5658
        %v5660 = vpop.xlane.xlu0 %5659
        %v5661 = vsel %vm1504, %v5509, 0.0
        %5662 = vadd.xlane.f32.xlu0 %v5661
        %v5663 = vpop.xlane.xlu0 %5662
        %v5664 = vsel %vm1504, %v5510, 0.0
        %5665 = vadd.xlane.f32.xlu0 %v5664
        %v5666 = vpop.xlane.xlu0 %5665
        %v5667 = vsel %vm1504, %v5511, 0.0
        %5668 = vadd.xlane.f32.xlu0 %v5667
        %v5669 = vpop.xlane.xlu0 %5668
        %v5670 = vsel %vm1504, %v5512, 0.0
        %5671 = vadd.xlane.f32.xlu0 %v5670
        %v5672 = vpop.xlane.xlu0 %5671
        %v5673 = vsel %vm1504, %v5513, 0.0
        %5674 = vadd.xlane.f32.xlu0 %v5673
        %v5675 = vpop.xlane.xlu0 %5674
        %v5676 = vsel %vm1504, %v5514, 0.0
        %5677 = vadd.xlane.f32.xlu0 %v5676
        %v5678 = vpop.xlane.xlu0 %5677
        %v5679 = vsel %vm1504, %v5515, 0.0
        %5680 = vadd.xlane.f32.xlu0 %v5679
        %v5681 = vpop.xlane.xlu0 %5680
        %v5682 = vsel %vm1504, %v5516, 0.0
        %5683 = vadd.xlane.f32.xlu0 %v5682
        %v5684 = vpop.xlane.xlu0 %5683
        %v5685 = vsel %vm1504, %v5517, 0.0
        %5686 = vadd.xlane.f32.xlu0 %v5685
        %v5687 = vpop.xlane.xlu0 %5686
        %v5688 = vsel %vm1504, %v5518, 0.0
        %5689 = vadd.xlane.f32.xlu0 %v5688
        %v5690 = vpop.xlane.xlu0 %5689
        %v5691 = vsel %vm1504, %v5519, 0.0
        %5692 = vadd.xlane.f32.xlu0 %v5691
        %v5693 = vpop.xlane.xlu0 %5692
        %v5694 = vsel %vm1504, %v5520, 0.0
        %5695 = vadd.xlane.f32.xlu0 %v5694
        %v5696 = vpop.xlane.xlu0 %5695
        %v5697 = vsel %vm1504, %v5521, 0.0
        %5698 = vadd.xlane.f32.xlu0 %v5697
        %v5699 = vpop.xlane.xlu0 %5698
        %v5700 = vsel %vm1504, %v5522, 0.0
        %5701 = vadd.xlane.f32.xlu0 %v5700
        %v5702 = vpop.xlane.xlu0 %5701
        %v5703 = vsel %vm1504, %v5523, 0.0
        %5704 = vadd.xlane.f32.xlu0 %v5703
        %v5705 = vpop.xlane.xlu0 %5704
        %v5706 = vsel %vm1504, %v5524, 0.0
        %5707 = vadd.xlane.f32.xlu0 %v5706
        %v5708 = vpop.xlane.xlu0 %5707
        %v5709 = vsel %vm1504, %v5525, 0.0
        %5710 = vadd.xlane.f32.xlu0 %v5709
        %v5711 = vpop.xlane.xlu0 %5710
        %v5712 = vsel %vm1504, %v5526, 0.0
        %5713 = vadd.xlane.f32.xlu0 %v5712
        %v5714 = vpop.xlane.xlu0 %5713
        %v5715 = vsel %vm1504, %v5527, 0.0
        %5716 = vadd.xlane.f32.xlu0 %v5715
        %v5717 = vpop.xlane.xlu0 %5716
        %v5718 = vsel %vm1504, %v5528, 0.0
        %5719 = vadd.xlane.f32.xlu0 %v5718
        %v5720 = vpop.xlane.xlu0 %5719
        %v5721 = vld [vmem:[#allocation7] sm:$0x1]
        %v5723 = vlaneseq
        %v5724 = vshrl.u32 %v5723, 7
        %v5725 = vsub.s32 0, %v5724
        %v5726 = vrot.slane %v5721, %v5725
        %v5728 = vadd.f32 %v5531, %v5726
        %v5729 = vadd.f32 %v5534, %v5726
        %v5730 = vadd.f32 %v5537, %v5726
        %v5731 = vadd.f32 %v5540, %v5726
        %v5732 = vadd.f32 %v5543, %v5726
        %v5733 = vadd.f32 %v5546, %v5726
        %v5734 = vadd.f32 %v5549, %v5726
        %v5735 = vadd.f32 %v5552, %v5726
        %v5736 = vadd.f32 %v5555, %v5726
        %v5737 = vadd.f32 %v5558, %v5726
        %v5738 = vadd.f32 %v5561, %v5726
        %v5739 = vadd.f32 %v5564, %v5726
        %v5740 = vadd.f32 %v5567, %v5726
        %v5741 = vadd.f32 %v5570, %v5726
        %v5742 = vadd.f32 %v5573, %v5726
        %v5743 = vadd.f32 %v5576, %v5726
        %v5744 = vadd.f32 %v5579, %v5726
        %v5745 = vadd.f32 %v5582, %v5726
        %v5746 = vadd.f32 %v5585, %v5726
        %v5747 = vadd.f32 %v5588, %v5726
        %v5748 = vadd.f32 %v5591, %v5726
        %v5749 = vadd.f32 %v5594, %v5726
        %v5750 = vadd.f32 %v5597, %v5726
        %v5751 = vadd.f32 %v5600, %v5726
        %v5752 = vadd.f32 %v5603, %v5726
        %v5753 = vadd.f32 %v5606, %v5726
        %v5754 = vadd.f32 %v5609, %v5726
        %v5755 = vadd.f32 %v5612, %v5726
        %v5756 = vadd.f32 %v5615, %v5726
        %v5757 = vadd.f32 %v5618, %v5726
        %v5758 = vadd.f32 %v5621, %v5726
        %v5759 = vadd.f32 %v5624, %v5726
        %v5760 = vadd.f32 %v5627, %v5726
        %v5761 = vadd.f32 %v5630, %v5726
        %v5762 = vadd.f32 %v5633, %v5726
        %v5763 = vadd.f32 %v5636, %v5726
        %v5764 = vadd.f32 %v5639, %v5726
        %v5765 = vadd.f32 %v5642, %v5726
        %v5766 = vadd.f32 %v5645, %v5726
        %v5767 = vadd.f32 %v5648, %v5726
        %v5768 = vadd.f32 %v5651, %v5726
        %v5769 = vadd.f32 %v5654, %v5726
        %v5770 = vadd.f32 %v5657, %v5726
        %v5771 = vadd.f32 %v5660, %v5726
        %v5772 = vadd.f32 %v5663, %v5726
        %v5773 = vadd.f32 %v5666, %v5726
        %v5774 = vadd.f32 %v5669, %v5726
        %v5775 = vadd.f32 %v5672, %v5726
        %v5776 = vadd.f32 %v5675, %v5726
        %v5777 = vadd.f32 %v5678, %v5726
        %v5778 = vadd.f32 %v5681, %v5726
        %v5779 = vadd.f32 %v5684, %v5726
        %v5780 = vadd.f32 %v5687, %v5726
        %v5781 = vadd.f32 %v5690, %v5726
        %v5782 = vadd.f32 %v5693, %v5726
        %v5783 = vadd.f32 %v5696, %v5726
        %v5784 = vadd.f32 %v5699, %v5726
        %v5785 = vadd.f32 %v5702, %v5726
        %v5786 = vadd.f32 %v5705, %v5726
        %v5787 = vadd.f32 %v5708, %v5726
        %v5788 = vadd.f32 %v5711, %v5726
        %v5789 = vadd.f32 %v5714, %v5726
        %v5790 = vadd.f32 %v5717, %v5726
        %v5791 = vadd.f32 %v5720, %v5726
        %vm5792 = vcmask 7168
        %5793 = vst.msk [vmem:[%s577] sm:$0xff] %vm5792, %v5728
        %5794 = vst.msk [vmem:[%s577 + $0x8] sm:$0xff] %vm5792, %v5729
        %5795 = vst.msk [vmem:[%s577 + $0x10] sm:$0xff] %vm5792, %v5730
        %5796 = vst.msk [vmem:[%s577 + $0x18] sm:$0xff] %vm5792, %v5731
        %5797 = vst.msk [vmem:[%s577 + $0x20] sm:$0xff] %vm5792, %v5732
        %5798 = vst.msk [vmem:[%s577 + $0x28] sm:$0xff] %vm5792, %v5733
        %5799 = vst.msk [vmem:[%s577 + $0x30] sm:$0xff] %vm5792, %v5734
        %5800 = vst.msk [vmem:[%s577 + $0x38] sm:$0xff] %vm5792, %v5735
        %5801 = vst.msk [vmem:[%s577 + $0x40] sm:$0xff] %vm5792, %v5736
        %5802 = vst.msk [vmem:[%s577 + $0x48] sm:$0xff] %vm5792, %v5737
        %5803 = vst.msk [vmem:[%s577 + $0x50] sm:$0xff] %vm5792, %v5738
        %5804 = vst.msk [vmem:[%s577 + $0x58] sm:$0xff] %vm5792, %v5739
        %5805 = vst.msk [vmem:[%s577 + $0x60] sm:$0xff] %vm5792, %v5740
        %5806 = vst.msk [vmem:[%s577 + $0x68] sm:$0xff] %vm5792, %v5741
        %5807 = vst.msk [vmem:[%s577 + $0x70] sm:$0xff] %vm5792, %v5742
        %5808 = vst.msk [vmem:[%s577 + $0x78] sm:$0xff] %vm5792, %v5743
        %5809 = vst.msk [vmem:[%s577 + $0x80] sm:$0xff] %vm5792, %v5744
        %5810 = vst.msk [vmem:[%s577 + $0x88] sm:$0xff] %vm5792, %v5745
        %5811 = vst.msk [vmem:[%s577 + $0x90] sm:$0xff] %vm5792, %v5746
        %5812 = vst.msk [vmem:[%s577 + $0x98] sm:$0xff] %vm5792, %v5747
        %5813 = vst.msk [vmem:[%s577 + $0xa0] sm:$0xff] %vm5792, %v5748
        %5814 = vst.msk [vmem:[%s577 + $0xa8] sm:$0xff] %vm5792, %v5749
        %5815 = vst.msk [vmem:[%s577 + $0xb0] sm:$0xff] %vm5792, %v5750
        %5816 = vst.msk [vmem:[%s577 + $0xb8] sm:$0xff] %vm5792, %v5751
        %5817 = vst.msk [vmem:[%s577 + $0xc0] sm:$0xff] %vm5792, %v5752
        %5818 = vst.msk [vmem:[%s577 + $0xc8] sm:$0xff] %vm5792, %v5753
        %5819 = vst.msk [vmem:[%s577 + $0xd0] sm:$0xff] %vm5792, %v5754
        %5820 = vst.msk [vmem:[%s577 + $0xd8] sm:$0xff] %vm5792, %v5755
        %5821 = vst.msk [vmem:[%s577 + $0xe0] sm:$0xff] %vm5792, %v5756
        %5822 = vst.msk [vmem:[%s577 + $0xe8] sm:$0xff] %vm5792, %v5757
        %5823 = vst.msk [vmem:[%s577 + $0xf0] sm:$0xff] %vm5792, %v5758
        %5824 = vst.msk [vmem:[%s577 + $0xf8] sm:$0xff] %vm5792, %v5759
        %5825 = vst.msk [vmem:[%s577 + $0x100] sm:$0xff] %vm5792, %v5760
        %5826 = vst.msk [vmem:[%s577 + $0x108] sm:$0xff] %vm5792, %v5761
        %5827 = vst.msk [vmem:[%s577 + $0x110] sm:$0xff] %vm5792, %v5762
        %5828 = vst.msk [vmem:[%s577 + $0x118] sm:$0xff] %vm5792, %v5763
        %5829 = vst.msk [vmem:[%s577 + $0x120] sm:$0xff] %vm5792, %v5764
        %5830 = vst.msk [vmem:[%s577 + $0x128] sm:$0xff] %vm5792, %v5765
        %5831 = vst.msk [vmem:[%s577 + $0x130] sm:$0xff] %vm5792, %v5766
        %5832 = vst.msk [vmem:[%s577 + $0x138] sm:$0xff] %vm5792, %v5767
        %5833 = vst.msk [vmem:[%s577 + $0x140] sm:$0xff] %vm5792, %v5768
        %5834 = vst.msk [vmem:[%s577 + $0x148] sm:$0xff] %vm5792, %v5769
        %5835 = vst.msk [vmem:[%s577 + $0x150] sm:$0xff] %vm5792, %v5770
        %5836 = vst.msk [vmem:[%s577 + $0x158] sm:$0xff] %vm5792, %v5771
        %5837 = vst.msk [vmem:[%s577 + $0x160] sm:$0xff] %vm5792, %v5772
        %5838 = vst.msk [vmem:[%s577 + $0x168] sm:$0xff] %vm5792, %v5773
        %5839 = vst.msk [vmem:[%s577 + $0x170] sm:$0xff] %vm5792, %v5774
        %5840 = vst.msk [vmem:[%s577 + $0x178] sm:$0xff] %vm5792, %v5775
        %5841 = vst.msk [vmem:[%s577 + $0x180] sm:$0xff] %vm5792, %v5776
        %5842 = vst.msk [vmem:[%s577 + $0x188] sm:$0xff] %vm5792, %v5777
        %5843 = vst.msk [vmem:[%s577 + $0x190] sm:$0xff] %vm5792, %v5778
        %5844 = vst.msk [vmem:[%s577 + $0x198] sm:$0xff] %vm5792, %v5779
        %5845 = vst.msk [vmem:[%s577 + $0x1a0] sm:$0xff] %vm5792, %v5780
        %5846 = vst.msk [vmem:[%s577 + $0x1a8] sm:$0xff] %vm5792, %v5781
        %5847 = vst.msk [vmem:[%s577 + $0x1b0] sm:$0xff] %vm5792, %v5782
        %5848 = vst.msk [vmem:[%s577 + $0x1b8] sm:$0xff] %vm5792, %v5783
        %5849 = vst.msk [vmem:[%s577 + $0x1c0] sm:$0xff] %vm5792, %v5784
        %5850 = vst.msk [vmem:[%s577 + $0x1c8] sm:$0xff] %vm5792, %v5785
        %5851 = vst.msk [vmem:[%s577 + $0x1d0] sm:$0xff] %vm5792, %v5786
        %5852 = vst.msk [vmem:[%s577 + $0x1d8] sm:$0xff] %vm5792, %v5787
        %5853 = vst.msk [vmem:[%s577 + $0x1e0] sm:$0xff] %vm5792, %v5788
        %5854 = vst.msk [vmem:[%s577 + $0x1e8] sm:$0xff] %vm5792, %v5789
        %5855 = vst.msk [vmem:[%s577 + $0x1f0] sm:$0xff] %vm5792, %v5790
        %5856 = vst.msk [vmem:[%s577 + $0x1f8] sm:$0xff] %vm5792, %v5791
      $region80: #{diffwave_forward.1} parent=71 // pred_fallthru
        _
      %p5857 = scmp.lt.s32.totalorder %s37, 1
      %s5858 = scalar_select %p5857, %s37, 1
      %s5859 = smul.addr %s5858, 64
      %s5860 = smul.addr %s5859, 8
      %s5861 = scalar_lea.vmem %s14, %s5860
      // Predicated region
      $region81: #{diffwave_forward.1} parent=71 // pred_check
        %p5862 = pneg %p373
      $region82: #{diffwave_forward.1} parent=71 // pred_check_branch
        %5864 = sbr.rel (%p5862) target = $region84
      $region83: #{diffwave_forward.1} parent=71 // pred_region
        _
      $region84: #{diffwave_forward.1} parent=71 // pred_fallthru
        _
    $region72: #{diffwave_forward.1} parent=5 // pred_fallthru
      _
    %p5865 = scmp.le.s32.totalorder 2, %s28
    // Predicated region
    $region85: #{diffwave_forward.1} parent=5 // pred_check
      %p5866 = pneg %p5865
    $region86: #{diffwave_forward.1} parent=5 // pred_check_branch
      %5868 = sbr.rel (%p5866) target = $region88
    $region87: #{diffwave_forward.1} parent=5 // pred_region
      %s5869 = ssub.s32 %s28, 2
      // Predicated region
      $region89: #{diffwave_forward.1} parent=87 // pred_check
        %p5870 = pneg %p379
      $region90: #{diffwave_forward.1} parent=87 // pred_check_branch
        %5872 = sbr.rel (%p5870) target = $region92
      $region91: #{diffwave_forward.1} parent=87 // pred_region
        %p5873 = scmp.lt.s32.totalorder %s39, 1
        %s5874 = scalar_select %p5873, %s39, 1
        %s5875 = smul.addr %s5874, 64
        %s5876 = smul.addr %s5875, 8
        %s5877 = scalar_lea.vmem %s14, %s5876
      $region92: #{diffwave_forward.1} parent=87 // pred_fallthru
        _
    $region88: #{diffwave_forward.1} parent=5 // pred_fallthru
      _
  $region6: #{diffwave_forward.1} parent=0 // loop_footer
    %s32 = sadd.s32 1, %s28
  $region7: #{diffwave_forward.1} parent=0 // loop_footer_branch
    %27 = sbr.rel target = $region3
  $region8: #{diffwave_forward.1} parent=0 // loop_exit
    _

</llo_original>
